<compile_context>
chip_gen: v6e
topology: v6e:2x2x1
jax: 0.10.0
libtpu: 0.0.40
codegen_flags: <defaults>
</compile_context>

<pallas_src>
import functools

import jax
import jax.numpy as jnp
import numpy as np
from jax.experimental import pallas as pl
from jax.experimental.pallas import tpu as pltpu


# ----------------------------- fused Pallas kernel ------------------------------

def _fused_bilstm_classifier_kernel(
    x_ref,           # (T*2B, 2D) bf16  packed time-major input (fwd|bwd block rows)
    wih_ref,         # (2D, 4H)   bf16  [W_ih_f.T ; W_ih_b.T] stacked along rows
    b_rows_ref,      # (2B, 4H)   f32   per-row-block gate bias (fwd rows | bwd rows)
    whh_ref,         # (2H, 4H)   bf16  [W_hh_f.T ; W_hh_b.T] stacked along rows
    b1_ref,          # (1, DIM)   f32
    b2_ref,          # (1, DIM)   f32
    b3_ref,          # (1, NPAD)  f32   cols >= n_out are -1e30
    w1_hbm,          # (2H, DIM)  bf16  HBM (pl.ANY)
    w2_hbm,          # (DIM, DIM) bf16  HBM (pl.ANY)
    w3_hbm,          # (DIM, NPAD) bf16 HBM (pl.ANY), cols >= n_out are zero
    o_ref,           # (B, NPAD)  f32   log-probs (cols >= n_out garbage, sliced off)
    w1_vmem,         # VMEM scratch (2H, DIM)   bf16
    w2_vmem,         # VMEM scratch (DIM, DIM)  bf16
    w3_vmem,         # VMEM scratch (DIM, NPAD) bf16
    dma_sem,         # DMA semaphores (3,)
    *, T, B, H,
):
    f32 = jnp.float32
    bf16 = jnp.bfloat16

    # ---- prefetch classifier weights HBM -> VMEM, overlapped with the recurrence
    cp1 = pltpu.make_async_copy(w1_hbm, w1_vmem, dma_sem.at[0])
    cp2 = pltpu.make_async_copy(w2_hbm, w2_vmem, dma_sem.at[1])
    cp3 = pltpu.make_async_copy(w3_hbm, w3_vmem, dma_sem.at[2])
    cp1.start()
    cp2.start()
    cp3.start()

    # ---- hoisted input projection: ONE matmul for both directions.
    # x rows are packed per step t as [x[t] (fwd, cols 0:D) ; x[T-1-t] (bwd, cols D:2D)],
    # and wih stacks [W_ih_f.T ; W_ih_b.T] on its rows, so gx already carries the
    # packed (fwd|bwd) gate pre-activations for every step.
    gx = jnp.dot(x_ref[...], wih_ref[...], preferred_element_type=f32)   # (T*2B, 4H)

    b_rows = b_rows_ref[...]                                             # (2B, 4H)
    # Pre-sliced per-step gates-from-input (data-independent of the recurrence).
    gx_steps = [gx[t * 2 * B:(t + 1) * 2 * B, :] + b_rows for t in range(T)]

    whh = whh_ref[...]                                                   # (2H, 4H) bf16

    # Direction mask for the packed hidden state:
    #   forward rows (row < B) keep columns [0, H), backward rows keep [H, 2H).
    row = jax.lax.broadcasted_iota(jnp.int32, (2 * B, 2 * H), 0)
    col = jax.lax.broadcasted_iota(jnp.int32, (2 * B, 2 * H), 1)
    dir_mask = ((row < B) == (col < H)).astype(f32)

    h_pad = jnp.zeros((2 * B, 2 * H), f32)   # rows 0:B = [h_f | 0], rows B:2B = [0 | h_b]
    c = jnp.zeros((2 * B, H), f32)

    # Fully unrolled recurrence (T is small & static); both directions share vregs
    # and one MXU push per step: (2B, 2H) @ (2H, 4H).
    # Gate column order after prepare_params: [i | f | o | g].
    for t in range(T):
        gates = gx_steps[t] + jnp.dot(h_pad.astype(bf16), whh,
                                      preferred_element_type=f32)        # (2B, 4H)
        sig = jax.nn.sigmoid(gates[:, :3 * H])                           # i, f, o at once
        i_g = sig[:, 0 * H:1 * H]
        f_g = sig[:, 1 * H:2 * H]
        o_g = sig[:, 2 * H:3 * H]
        g_g = jnp.tanh(gates[:, 3 * H:])
        c = f_g * c + i_g * g_g
        h = o_g * jnp.tanh(c)                                            # (2B, H)
        h_pad = jnp.concatenate([h, h], axis=1) * dir_mask

    # features = [h_fwd_last | h_bwd_last]  == torch hT.transpose(0,1).view(B,-1)
    # (exact: the masked halves of h_pad are hard zeros)
    feats = h_pad[:B, :] + h_pad[B:, :]                                  # (B, 2H)

    # Classifier weights must be resident now; the DMAs ran under the recurrence.
    cp1.wait()
    cp2.wait()
    cp3.wait()

    # ---- classifier (3 stacked Linear, no nonlinearity) + log_softmax(dim=1)
    h1 = jnp.dot(feats.astype(bf16), w1_vmem[...], preferred_element_type=f32) + b1_ref[...]
    h2 = jnp.dot(h1.astype(bf16), w2_vmem[...], preferred_element_type=f32) + b2_ref[...]
    logits = jnp.dot(h2.astype(bf16), w3_vmem[...], preferred_element_type=f32) + b3_ref[...]
    m = jnp.max(logits, axis=-1, keepdims=True)
    s = logits - m
    lse = jnp.log(jnp.sum(jnp.exp(s), axis=-1, keepdims=True))
    o_ref[...] = s - lse


# ----------------------------- pallas_call glue -----------------------------

def _full_spec(shape):
    nd = len(shape)
    return pl.BlockSpec(shape, lambda i, _nd=nd: (0,) * _nd)


# ------------------------------ model wrapper -------------------------------

def init_params(key, vector_dim=128, proj_dim=128, n_out=2, DIM=512):
    """PyTorch-layout parameters (weights are (out, in))."""
    H = proj_dim
    ks = jax.random.split(key, 16)

    def uni(k, shape, fan_in):
        bound = 1.0 / np.sqrt(fan_in)
        return jax.random.uniform(k, shape, jnp.float32, -bound, bound)

    return {
        # projection (present for parity with the module; its output is discarded,
        # so the kernel never touches these)
        "proj_w": uni(ks[0], (proj_dim, vector_dim), vector_dim),
        "proj_b": uni(ks[1], (proj_dim,), vector_dim),
        # LSTM forward direction
        "w_ih_f": uni(ks[2], (4 * H, proj_dim), H),
        "w_hh_f": uni(ks[3], (4 * H, H), H),
        "b_ih_f": uni(ks[4], (4 * H,), H),
        "b_hh_f": uni(ks[5], (4 * H,), H),
        # LSTM reverse direction
        "w_ih_b": uni(ks[6], (4 * H, proj_dim), H),
        "w_hh_b": uni(ks[7], (4 * H, H), H),
        "b_ih_b": uni(ks[8], (4 * H,), H),
        "b_hh_b": uni(ks[9], (4 * H,), H),
        # classifier
        "c1_w": uni(ks[10], (DIM, 2 * H), 2 * H),
        "c1_b": uni(ks[11], (DIM,), 2 * H),
        "c2_w": uni(ks[12], (DIM, DIM), DIM),
        "c2_b": uni(ks[13], (DIM,), DIM),
        "c3_w": uni(ks[14], (n_out, DIM), DIM),
        "c3_b": uni(ks[15], (n_out,), DIM),
    }


def prepare_params(params):
    """One-time re-layout of PyTorch-style params into the kernel layout.

    - weights transposed to (in, out) and cast to bf16 (f32 accumulation in-kernel),
    - gate columns permuted from PyTorch [i,f,g,o] to [i,f,o,g] (sigmoid gates contiguous),
    - input->gate weights of both directions stacked block-diagonally on rows,
    - classifier output lane-padded to 128 (padded bias = -1e30 so log_softmax ignores it).
    """
    H = params["w_hh_f"].shape[1]
    DIM = params["c2_w"].shape[0]
    n_out = params["c3_w"].shape[0]
    npad = max(128, ((n_out + 127) // 128) * 128)   # lane-dense classifier output
    bf16 = jnp.bfloat16

    def perm_gates(w):  # (..., 4H) columns [i|f|g|o] -> [i|f|o|g]
        i, f, g, o = jnp.split(w, 4, axis=-1)
        return jnp.concatenate([i, f, o, g], axis=-1)

    wih_f = perm_gates(params["w_ih_f"].T)                       # (D, 4H)
    wih_b = perm_gates(params["w_ih_b"].T)                       # (D, 4H)
    whh_f = perm_gates(params["w_hh_f"].T)                       # (H, 4H)
    whh_b = perm_gates(params["w_hh_b"].T)                       # (H, 4H)
    b_f = perm_gates((params["b_ih_f"] + params["b_hh_f"]).reshape(1, 4 * H))
    b_b = perm_gates((params["b_ih_b"] + params["b_hh_b"]).reshape(1, 4 * H))

    c3_w_pad = jnp.zeros((DIM, npad), jnp.float32).at[:, :n_out].set(params["c3_w"].T)
    c3_b_pad = jnp.full((1, npad), -1e30, jnp.float32).at[:, :n_out].set(params["c3_b"])

    return {
        "wih_pack": jnp.concatenate([wih_f, wih_b], axis=0).astype(bf16),   # (2D, 4H)
        "whh_stack": jnp.concatenate([whh_f, whh_b], axis=0).astype(bf16),  # (2H, 4H)
        "b_f": b_f, "b_b": b_b,                                             # (1, 4H) f32
        "c1_w_t": params["c1_w"].T.astype(bf16), "c1_b": params["c1_b"].reshape(1, -1),
        "c2_w_t": params["c2_w"].T.astype(bf16), "c2_b": params["c2_b"].reshape(1, -1),
        "c3_w_pad": c3_w_pad.astype(bf16), "c3_b_pad": c3_b_pad,
    }


def lstm_forward(kparams, data, *, n_out):
    """Fused Pallas forward pass. data: (B, T, D) float32, D == proj_dim."""
    B, T, D = data.shape
    H = kparams["whh_stack"].shape[1] // 4
    DIM = kparams["c2_w_t"].shape[0]
    npad = kparams["c3_w_pad"].shape[1]

    # NOTE: the PyTorch module computes self.projection(vectors) and discards the
    # result (the LSTM runs on the raw vectors).  We do not emit that dead matmul.

    # Layout plumbing (tiny, outside the kernel): pack both directions into one
    # block-structured LHS of shape (T*2B, 2D):
    #   rows [t*2B,     t*2B+B)  = x[:, t, :]       in cols [0, D)   (forward)
    #   rows [t*2B+B, (t+1)*2B)  = x[:, T-1-t, :]   in cols [D, 2D)  (backward)
    x_tm = jnp.transpose(data, (1, 0, 2))                          # (T, B, D)
    zeros = jnp.zeros_like(x_tm)
    fwd = jnp.concatenate([x_tm, zeros], axis=2)                   # (T, B, 2D)
    bwd = jnp.concatenate([zeros, x_tm[::-1]], axis=2)             # (T, B, 2D)
    x_pack = jnp.concatenate([fwd, bwd], axis=1).reshape(T * 2 * B, 2 * D)
    x_pack = x_pack.astype(jnp.bfloat16)

    # Per-row-block gate bias: forward rows get b_f, backward rows get b_b.
    b_rows = jnp.concatenate([jnp.broadcast_to(kparams["b_f"], (B, 4 * H)),
                              jnp.broadcast_to(kparams["b_b"], (B, 4 * H))], axis=0)

    args = (
        x_pack,
        kparams["wih_pack"],
        b_rows,
        kparams["whh_stack"],
        kparams["c1_b"], kparams["c2_b"], kparams["c3_b_pad"],
        kparams["c1_w_t"], kparams["c2_w_t"], kparams["c3_w_pad"],   # stay in HBM
    )
    kernel = functools.partial(_fused_bilstm_classifier_kernel, T=T, B=B, H=H)

    in_specs = [_full_spec(a.shape) for a in args[:7]] + \
               [pl.BlockSpec(memory_space=pl.ANY)] * 3

    out_pad = pl.pallas_call(
        kernel,
        out_shape=jax.ShapeDtypeStruct((B, npad), jnp.float32),
        grid=(1,),
        in_specs=in_specs,
        out_specs=_full_spec((B, npad)),
        scratch_shapes=[
            pltpu.VMEM((2 * H, DIM), jnp.bfloat16),
            pltpu.VMEM((DIM, DIM), jnp.bfloat16),
            pltpu.VMEM((DIM, npad), jnp.bfloat16),
            pltpu.SemaphoreType.DMA((3,)),
        ],
        compiler_params=pltpu.CompilerParams(dimension_semantics=("arbitrary",)),
    )(*args)
    return out_pad[:, :n_out]


# ------------------------------ pure-JAX reference ------------------------------

def lstm_forward_ref(params, data):
    B, T, D = data.shape
    H = params["w_hh_f"].shape[1]
    hi = jax.lax.Precision.HIGHEST

    def run(x, wih, whh, b_ih, b_hh, reverse):
        xs = x[:, ::-1, :] if reverse else x

        def step(carry, x_t):
            h, c = carry
            gates = (jnp.dot(x_t, wih.T, precision=hi)
                     + jnp.dot(h, whh.T, precision=hi) + b_ih + b_hh)
            i = jax.nn.sigmoid(gates[:, :H])
            f = jax.nn.sigmoid(gates[:, H:2 * H])
            g = jnp.tanh(gates[:, 2 * H:3 * H])
            o = jax.nn.sigmoid(gates[:, 3 * H:])
            c = f * c + i * g
            h = o * jnp.tanh(c)
            return (h, c), None

        (h, _), _ = jax.lax.scan(step,
                                 (jnp.zeros((B, H)), jnp.zeros((B, H))),
                                 jnp.transpose(xs, (1, 0, 2)))
        return h

    h_f = run(data, params["w_ih_f"], params["w_hh_f"], params["b_ih_f"], params["b_hh_f"], False)
    h_b = run(data, params["w_ih_b"], params["w_hh_b"], params["b_ih_b"], params["b_hh_b"], True)
    feats = jnp.concatenate([h_f, h_b], axis=-1)
    h = jnp.dot(feats, params["c1_w"].T, precision=hi) + params["c1_b"]
    h = jnp.dot(h, params["c2_w"].T, precision=hi) + params["c2_b"]
    logits = jnp.dot(h, params["c3_w"].T, precision=hi) + params["c3_b"]
    return jax.nn.log_softmax(logits, axis=1)


# ----------------------------------- main -----------------------------------

if __name__ == "__main__":
    key = jax.random.PRNGKey(0)
    k_params, k_data = jax.random.split(key)

    B, T, D = 2, 8, 128          # batch, seq len, vector_dim == proj_dim
    N_OUT = 2
    params = init_params(k_params, vector_dim=D, proj_dim=D, n_out=N_OUT, DIM=512)
    kparams = prepare_params(params)     # one-time weight re-layout (bf16)
    data = jax.random.normal(k_data, (B, T, D), jnp.float32)

    fwd = jax.jit(lstm_forward, static_argnames=("n_out",))
    out = fwd(kparams, data, n_out=N_OUT)
    out = jax.block_until_ready(out)
    assert out.shape == (B, N_OUT), out.shape

    ref = lstm_forward_ref(params, data)
    np.testing.assert_allclose(np.asarray(out), np.asarray(ref), atol=5e-3, rtol=5e-3)

    print("KERNEL_OK")
</pallas_src>

<mosaic_0001>
module attributes {stable_mosaic.version = 11 : i64} {
  func.func @_fused_bilstm_classifier_kernel(%arg0: i32, %arg1: memref<32x256xbf16, #tpu.memory_space<vmem>>, %arg2: memref<256x512xbf16, #tpu.memory_space<vmem>>, %arg3: memref<4x512xf32, #tpu.memory_space<vmem>>, %arg4: memref<256x512xbf16, #tpu.memory_space<vmem>>, %arg5: memref<1x512xf32, #tpu.memory_space<vmem>>, %arg6: memref<1x512xf32, #tpu.memory_space<vmem>>, %arg7: memref<1x128xf32, #tpu.memory_space<vmem>>, %arg8: memref<256x512xbf16, #tpu.memory_space<any>>, %arg9: memref<512x512xbf16, #tpu.memory_space<any>>, %arg10: memref<512x128xbf16, #tpu.memory_space<any>>, %arg11: memref<2x128xf32, #tpu.memory_space<vmem>>, %arg12: memref<256x512xbf16, #tpu.memory_space<vmem>>, %arg13: memref<512x512xbf16, #tpu.memory_space<vmem>>, %arg14: memref<512x128xbf16, #tpu.memory_space<vmem>>, %arg15: memref<3x!tpu.dma_semaphore, #tpu.memory_space<semaphore_mem>>) attributes {dimension_semantics = [#tpu.dimension_semantics<arbitrary>], iteration_bounds = array<i64: 1>, scalar_prefetch = 0 : i64, scratch_operands = 4 : i64, tpu.core_type = #tpu.core_type<tc>, window_params = [{pipeline_mode = #tpu.pipeline_mode<synchronous>, transform_indices = @transform_0, window_bounds = array<i64: 32, 256>}, {pipeline_mode = #tpu.pipeline_mode<synchronous>, transform_indices = @transform_1, window_bounds = array<i64: 256, 512>}, {pipeline_mode = #tpu.pipeline_mode<synchronous>, transform_indices = @transform_2, window_bounds = array<i64: 4, 512>}, {pipeline_mode = #tpu.pipeline_mode<synchronous>, transform_indices = @transform_3, window_bounds = array<i64: 256, 512>}, {pipeline_mode = #tpu.pipeline_mode<synchronous>, transform_indices = @transform_4, window_bounds = array<i64: 1, 512>}, {pipeline_mode = #tpu.pipeline_mode<synchronous>, transform_indices = @transform_5, window_bounds = array<i64: 1, 512>}, {pipeline_mode = #tpu.pipeline_mode<synchronous>, transform_indices = @transform_6, window_bounds = array<i64: 1, 128>}, {}, {}, {}, {pipeline_mode = #tpu.pipeline_mode<synchronous>, transform_indices = @transform_10, window_bounds = array<i64: 2, 128>}]} {
    %c0_i32 = arith.constant 0 : i32
    %0 = tpu.memref_slice %arg15[%c0_i32] : memref<3x!tpu.dma_semaphore, #tpu.memory_space<semaphore_mem>> -> memref<1x!tpu.dma_semaphore, #tpu.memory_space<semaphore_mem>>
    %1 = tpu.memref_squeeze %0 : memref<1x!tpu.dma_semaphore, #tpu.memory_space<semaphore_mem>> -> memref<!tpu.dma_semaphore, #tpu.memory_space<semaphore_mem>>
    tpu.enqueue_dma source(%arg8 : memref<256x512xbf16, #tpu.memory_space<any>>) target(%arg12 : memref<256x512xbf16, #tpu.memory_space<vmem>>) target_semaphore(%1 : memref<!tpu.dma_semaphore, #tpu.memory_space<semaphore_mem>>)
    %c1_i32 = arith.constant 1 : i32
    %2 = tpu.memref_slice %arg15[%c1_i32] : memref<3x!tpu.dma_semaphore, #tpu.memory_space<semaphore_mem>> -> memref<1x!tpu.dma_semaphore, #tpu.memory_space<semaphore_mem>>
    %3 = tpu.memref_squeeze %2 : memref<1x!tpu.dma_semaphore, #tpu.memory_space<semaphore_mem>> -> memref<!tpu.dma_semaphore, #tpu.memory_space<semaphore_mem>>
    tpu.enqueue_dma source(%arg9 : memref<512x512xbf16, #tpu.memory_space<any>>) target(%arg13 : memref<512x512xbf16, #tpu.memory_space<vmem>>) target_semaphore(%3 : memref<!tpu.dma_semaphore, #tpu.memory_space<semaphore_mem>>)
    %c2_i32 = arith.constant 2 : i32
    %4 = tpu.memref_slice %arg15[%c2_i32] : memref<3x!tpu.dma_semaphore, #tpu.memory_space<semaphore_mem>> -> memref<1x!tpu.dma_semaphore, #tpu.memory_space<semaphore_mem>>
    %5 = tpu.memref_squeeze %4 : memref<1x!tpu.dma_semaphore, #tpu.memory_space<semaphore_mem>> -> memref<!tpu.dma_semaphore, #tpu.memory_space<semaphore_mem>>
    tpu.enqueue_dma source(%arg10 : memref<512x128xbf16, #tpu.memory_space<any>>) target(%arg14 : memref<512x128xbf16, #tpu.memory_space<vmem>>) target_semaphore(%5 : memref<!tpu.dma_semaphore, #tpu.memory_space<semaphore_mem>>)
    %c0 = arith.constant 0 : index
    %c0_0 = arith.constant 0 : index
    %6 = vector.load %arg1[%c0, %c0_0] : memref<32x256xbf16, #tpu.memory_space<vmem>>, vector<32x256xbf16>
    %c0_1 = arith.constant 0 : index
    %c0_2 = arith.constant 0 : index
    %7 = vector.load %arg2[%c0_1, %c0_2] : memref<256x512xbf16, #tpu.memory_space<vmem>>, vector<256x512xbf16>
    %cst = arith.constant dense<0.000000e+00> : vector<32x512xf32>
    %8 = tpu.matmul %6, %7, %cst {dimension_numbers = #tpu.dot_dimension_numbers<[1], [0], [0], [1], [0, 0, 1, 1], [], []>} : vector<32x256xbf16>, vector<256x512xbf16>, vector<32x512xf32> -> vector<32x512xf32>
    %c0_3 = arith.constant 0 : index
    %c0_4 = arith.constant 0 : index
    %9 = vector.load %arg3[%c0_3, %c0_4] : memref<4x512xf32, #tpu.memory_space<vmem>>, vector<4x512xf32>
    %10 = vector.extract_strided_slice %8 {offsets = [0, 0], sizes = [4, 512], strides = [1, 1]} : vector<32x512xf32> to vector<4x512xf32>
    %11 = arith.addf %10, %9 : vector<4x512xf32>
    %12 = vector.extract_strided_slice %8 {offsets = [4, 0], sizes = [4, 512], strides = [1, 1]} : vector<32x512xf32> to vector<4x512xf32>
    %13 = arith.addf %12, %9 : vector<4x512xf32>
    %14 = vector.extract_strided_slice %8 {offsets = [8, 0], sizes = [4, 512], strides = [1, 1]} : vector<32x512xf32> to vector<4x512xf32>
    %15 = arith.addf %14, %9 : vector<4x512xf32>
    %16 = vector.extract_strided_slice %8 {offsets = [12, 0], sizes = [4, 512], strides = [1, 1]} : vector<32x512xf32> to vector<4x512xf32>
    %17 = arith.addf %16, %9 : vector<4x512xf32>
    %18 = vector.extract_strided_slice %8 {offsets = [16, 0], sizes = [4, 512], strides = [1, 1]} : vector<32x512xf32> to vector<4x512xf32>
    %19 = arith.addf %18, %9 : vector<4x512xf32>
    %20 = vector.extract_strided_slice %8 {offsets = [20, 0], sizes = [4, 512], strides = [1, 1]} : vector<32x512xf32> to vector<4x512xf32>
    %21 = arith.addf %20, %9 : vector<4x512xf32>
    %22 = vector.extract_strided_slice %8 {offsets = [24, 0], sizes = [4, 512], strides = [1, 1]} : vector<32x512xf32> to vector<4x512xf32>
    %23 = arith.addf %22, %9 : vector<4x512xf32>
    %24 = vector.extract_strided_slice %8 {offsets = [28, 0], sizes = [4, 512], strides = [1, 1]} : vector<32x512xf32> to vector<4x512xf32>
    %25 = arith.addf %24, %9 : vector<4x512xf32>
    %c0_5 = arith.constant 0 : index
    %c0_6 = arith.constant 0 : index
    %26 = vector.load %arg4[%c0_5, %c0_6] : memref<256x512xbf16, #tpu.memory_space<vmem>>, vector<256x512xbf16>
    %27 = tpu.iota {dimensions = array<i32: 0>} : vector<4x256xi32>
    %28 = tpu.iota {dimensions = array<i32: 1>} : vector<4x256xi32>
    %c2_i32_7 = arith.constant 2 : i32
    %29 = vector.broadcast %c2_i32_7 : i32 to vector<4x256xi32>
    %30 = arith.cmpi slt, %27, %29 : vector<4x256xi32>
    %c128_i32 = arith.constant 128 : i32
    %31 = vector.broadcast %c128_i32 : i32 to vector<4x256xi32>
    %32 = arith.cmpi slt, %28, %31 : vector<4x256xi32>
    %33 = arith.xori %30, %32 : vector<4x256xi1>
    %cst_8 = arith.constant dense<true> : vector<4x256xi1>
    %34 = arith.xori %33, %cst_8 : vector<4x256xi1>
    %35 = arith.extui %34 : vector<4x256xi1> to vector<4x256xi32>
    %36 = arith.sitofp %35 : vector<4x256xi32> to vector<4x256xf32>
    %cst_9 = arith.constant 0.000000e+00 : f32
    %37 = vector.broadcast %cst_9 : f32 to vector<4x256xf32>
    %cst_10 = arith.constant 0.000000e+00 : f32
    %38 = vector.broadcast %cst_10 : f32 to vector<4x128xf32>
    %39 = arith.truncf %37 : vector<4x256xf32> to vector<4x256xbf16>
    %cst_11 = arith.constant dense<0.000000e+00> : vector<4x512xf32>
    %40 = tpu.matmul %39, %26, %cst_11 {dimension_numbers = #tpu.dot_dimension_numbers<[1], [0], [0], [1], [0, 0, 1, 1], [], []>} : vector<4x256xbf16>, vector<256x512xbf16>, vector<4x512xf32> -> vector<4x512xf32>
    %41 = arith.addf %11, %40 : vector<4x512xf32>
    %42 = vector.extract_strided_slice %41 {offsets = [0, 0], sizes = [4, 384], strides = [1, 1]} : vector<4x512xf32> to vector<4x384xf32>
    %43 = arith.negf %42 : vector<4x384xf32>
    %44 = math.exp %43 : vector<4x384xf32>
    %cst_12 = arith.constant 1.000000e+00 : f32
    %45 = vector.broadcast %cst_12 : f32 to vector<4x384xf32>
    %46 = arith.addf %45, %44 : vector<4x384xf32>
    %47 = arith.divf %45, %46 : vector<4x384xf32>
    %48 = vector.extract_strided_slice %47 {offsets = [0, 0], sizes = [4, 128], strides = [1, 1]} : vector<4x384xf32> to vector<4x128xf32>
    %49 = vector.extract_strided_slice %47 {offsets = [0, 128], sizes = [4, 128], strides = [1, 1]} : vector<4x384xf32> to vector<4x128xf32>
    %50 = vector.extract_strided_slice %47 {offsets = [0, 256], sizes = [4, 128], strides = [1, 1]} : vector<4x384xf32> to vector<4x128xf32>
    %51 = vector.extract_strided_slice %41 {offsets = [0, 384], sizes = [4, 128], strides = [1, 1]} : vector<4x512xf32> to vector<4x128xf32>
    %52 = math.tanh %51 : vector<4x128xf32>
    %53 = arith.mulf %49, %38 : vector<4x128xf32>
    %54 = arith.mulf %48, %52 : vector<4x128xf32>
    %55 = arith.addf %53, %54 : vector<4x128xf32>
    %56 = math.tanh %55 : vector<4x128xf32>
    %57 = arith.mulf %50, %56 : vector<4x128xf32>
    %58 = tpu.concatenate %57, %57 in 1 : vector<4x128xf32>, vector<4x128xf32> -> vector<4x256xf32>
    %59 = arith.mulf %58, %36 : vector<4x256xf32>
    %60 = arith.truncf %59 : vector<4x256xf32> to vector<4x256xbf16>
    %cst_13 = arith.constant dense<0.000000e+00> : vector<4x512xf32>
    %61 = tpu.matmul %60, %26, %cst_13 {dimension_numbers = #tpu.dot_dimension_numbers<[1], [0], [0], [1], [0, 0, 1, 1], [], []>} : vector<4x256xbf16>, vector<256x512xbf16>, vector<4x512xf32> -> vector<4x512xf32>
    %62 = arith.addf %13, %61 : vector<4x512xf32>
    %63 = vector.extract_strided_slice %62 {offsets = [0, 0], sizes = [4, 384], strides = [1, 1]} : vector<4x512xf32> to vector<4x384xf32>
    %64 = arith.negf %63 : vector<4x384xf32>
    %65 = math.exp %64 : vector<4x384xf32>
    %cst_14 = arith.constant 1.000000e+00 : f32
    %66 = vector.broadcast %cst_14 : f32 to vector<4x384xf32>
    %67 = arith.addf %66, %65 : vector<4x384xf32>
    %68 = arith.divf %66, %67 : vector<4x384xf32>
    %69 = vector.extract_strided_slice %68 {offsets = [0, 0], sizes = [4, 128], strides = [1, 1]} : vector<4x384xf32> to vector<4x128xf32>
    %70 = vector.extract_strided_slice %68 {offsets = [0, 128], sizes = [4, 128], strides = [1, 1]} : vector<4x384xf32> to vector<4x128xf32>
    %71 = vector.extract_strided_slice %68 {offsets = [0, 256], sizes = [4, 128], strides = [1, 1]} : vector<4x384xf32> to vector<4x128xf32>
    %72 = vector.extract_strided_slice %62 {offsets = [0, 384], sizes = [4, 128], strides = [1, 1]} : vector<4x512xf32> to vector<4x128xf32>
    %73 = math.tanh %72 : vector<4x128xf32>
    %74 = arith.mulf %70, %55 : vector<4x128xf32>
    %75 = arith.mulf %69, %73 : vector<4x128xf32>
    %76 = arith.addf %74, %75 : vector<4x128xf32>
    %77 = math.tanh %76 : vector<4x128xf32>
    %78 = arith.mulf %71, %77 : vector<4x128xf32>
    %79 = tpu.concatenate %78, %78 in 1 : vector<4x128xf32>, vector<4x128xf32> -> vector<4x256xf32>
    %80 = arith.mulf %79, %36 : vector<4x256xf32>
    %81 = arith.truncf %80 : vector<4x256xf32> to vector<4x256xbf16>
    %cst_15 = arith.constant dense<0.000000e+00> : vector<4x512xf32>
    %82 = tpu.matmul %81, %26, %cst_15 {dimension_numbers = #tpu.dot_dimension_numbers<[1], [0], [0], [1], [0, 0, 1, 1], [], []>} : vector<4x256xbf16>, vector<256x512xbf16>, vector<4x512xf32> -> vector<4x512xf32>
    %83 = arith.addf %15, %82 : vector<4x512xf32>
    %84 = vector.extract_strided_slice %83 {offsets = [0, 0], sizes = [4, 384], strides = [1, 1]} : vector<4x512xf32> to vector<4x384xf32>
    %85 = arith.negf %84 : vector<4x384xf32>
    %86 = math.exp %85 : vector<4x384xf32>
    %cst_16 = arith.constant 1.000000e+00 : f32
    %87 = vector.broadcast %cst_16 : f32 to vector<4x384xf32>
    %88 = arith.addf %87, %86 : vector<4x384xf32>
    %89 = arith.divf %87, %88 : vector<4x384xf32>
    %90 = vector.extract_strided_slice %89 {offsets = [0, 0], sizes = [4, 128], strides = [1, 1]} : vector<4x384xf32> to vector<4x128xf32>
    %91 = vector.extract_strided_slice %89 {offsets = [0, 128], sizes = [4, 128], strides = [1, 1]} : vector<4x384xf32> to vector<4x128xf32>
    %92 = vector.extract_strided_slice %89 {offsets = [0, 256], sizes = [4, 128], strides = [1, 1]} : vector<4x384xf32> to vector<4x128xf32>
    %93 = vector.extract_strided_slice %83 {offsets = [0, 384], sizes = [4, 128], strides = [1, 1]} : vector<4x512xf32> to vector<4x128xf32>
    %94 = math.tanh %93 : vector<4x128xf32>
    %95 = arith.mulf %91, %76 : vector<4x128xf32>
    %96 = arith.mulf %90, %94 : vector<4x128xf32>
    %97 = arith.addf %95, %96 : vector<4x128xf32>
    %98 = math.tanh %97 : vector<4x128xf32>
    %99 = arith.mulf %92, %98 : vector<4x128xf32>
    %100 = tpu.concatenate %99, %99 in 1 : vector<4x128xf32>, vector<4x128xf32> -> vector<4x256xf32>
    %101 = arith.mulf %100, %36 : vector<4x256xf32>
    %102 = arith.truncf %101 : vector<4x256xf32> to vector<4x256xbf16>
    %cst_17 = arith.constant dense<0.000000e+00> : vector<4x512xf32>
    %103 = tpu.matmul %102, %26, %cst_17 {dimension_numbers = #tpu.dot_dimension_numbers<[1], [0], [0], [1], [0, 0, 1, 1], [], []>} : vector<4x256xbf16>, vector<256x512xbf16>, vector<4x512xf32> -> vector<4x512xf32>
    %104 = arith.addf %17, %103 : vector<4x512xf32>
    %105 = vector.extract_strided_slice %104 {offsets = [0, 0], sizes = [4, 384], strides = [1, 1]} : vector<4x512xf32> to vector<4x384xf32>
    %106 = arith.negf %105 : vector<4x384xf32>
    %107 = math.exp %106 : vector<4x384xf32>
    %cst_18 = arith.constant 1.000000e+00 : f32
    %108 = vector.broadcast %cst_18 : f32 to vector<4x384xf32>
    %109 = arith.addf %108, %107 : vector<4x384xf32>
    %110 = arith.divf %108, %109 : vector<4x384xf32>
    %111 = vector.extract_strided_slice %110 {offsets = [0, 0], sizes = [4, 128], strides = [1, 1]} : vector<4x384xf32> to vector<4x128xf32>
    %112 = vector.extract_strided_slice %110 {offsets = [0, 128], sizes = [4, 128], strides = [1, 1]} : vector<4x384xf32> to vector<4x128xf32>
    %113 = vector.extract_strided_slice %110 {offsets = [0, 256], sizes = [4, 128], strides = [1, 1]} : vector<4x384xf32> to vector<4x128xf32>
    %114 = vector.extract_strided_slice %104 {offsets = [0, 384], sizes = [4, 128], strides = [1, 1]} : vector<4x512xf32> to vector<4x128xf32>
    %115 = math.tanh %114 : vector<4x128xf32>
    %116 = arith.mulf %112, %97 : vector<4x128xf32>
    %117 = arith.mulf %111, %115 : vector<4x128xf32>
    %118 = arith.addf %116, %117 : vector<4x128xf32>
    %119 = math.tanh %118 : vector<4x128xf32>
    %120 = arith.mulf %113, %119 : vector<4x128xf32>
    %121 = tpu.concatenate %120, %120 in 1 : vector<4x128xf32>, vector<4x128xf32> -> vector<4x256xf32>
    %122 = arith.mulf %121, %36 : vector<4x256xf32>
    %123 = arith.truncf %122 : vector<4x256xf32> to vector<4x256xbf16>
    %cst_19 = arith.constant dense<0.000000e+00> : vector<4x512xf32>
    %124 = tpu.matmul %123, %26, %cst_19 {dimension_numbers = #tpu.dot_dimension_numbers<[1], [0], [0], [1], [0, 0, 1, 1], [], []>} : vector<4x256xbf16>, vector<256x512xbf16>, vector<4x512xf32> -> vector<4x512xf32>
    %125 = arith.addf %19, %124 : vector<4x512xf32>
    %126 = vector.extract_strided_slice %125 {offsets = [0, 0], sizes = [4, 384], strides = [1, 1]} : vector<4x512xf32> to vector<4x384xf32>
    %127 = arith.negf %126 : vector<4x384xf32>
    %128 = math.exp %127 : vector<4x384xf32>
    %cst_20 = arith.constant 1.000000e+00 : f32
    %129 = vector.broadcast %cst_20 : f32 to vector<4x384xf32>
    %130 = arith.addf %129, %128 : vector<4x384xf32>
    %131 = arith.divf %129, %130 : vector<4x384xf32>
    %132 = vector.extract_strided_slice %131 {offsets = [0, 0], sizes = [4, 128], strides = [1, 1]} : vector<4x384xf32> to vector<4x128xf32>
    %133 = vector.extract_strided_slice %131 {offsets = [0, 128], sizes = [4, 128], strides = [1, 1]} : vector<4x384xf32> to vector<4x128xf32>
    %134 = vector.extract_strided_slice %131 {offsets = [0, 256], sizes = [4, 128], strides = [1, 1]} : vector<4x384xf32> to vector<4x128xf32>
    %135 = vector.extract_strided_slice %125 {offsets = [0, 384], sizes = [4, 128], strides = [1, 1]} : vector<4x512xf32> to vector<4x128xf32>
    %136 = math.tanh %135 : vector<4x128xf32>
    %137 = arith.mulf %133, %118 : vector<4x128xf32>
    %138 = arith.mulf %132, %136 : vector<4x128xf32>
    %139 = arith.addf %137, %138 : vector<4x128xf32>
    %140 = math.tanh %139 : vector<4x128xf32>
    %141 = arith.mulf %134, %140 : vector<4x128xf32>
    %142 = tpu.concatenate %141, %141 in 1 : vector<4x128xf32>, vector<4x128xf32> -> vector<4x256xf32>
    %143 = arith.mulf %142, %36 : vector<4x256xf32>
    %144 = arith.truncf %143 : vector<4x256xf32> to vector<4x256xbf16>
    %cst_21 = arith.constant dense<0.000000e+00> : vector<4x512xf32>
    %145 = tpu.matmul %144, %26, %cst_21 {dimension_numbers = #tpu.dot_dimension_numbers<[1], [0], [0], [1], [0, 0, 1, 1], [], []>} : vector<4x256xbf16>, vector<256x512xbf16>, vector<4x512xf32> -> vector<4x512xf32>
    %146 = arith.addf %21, %145 : vector<4x512xf32>
    %147 = vector.extract_strided_slice %146 {offsets = [0, 0], sizes = [4, 384], strides = [1, 1]} : vector<4x512xf32> to vector<4x384xf32>
    %148 = arith.negf %147 : vector<4x384xf32>
    %149 = math.exp %148 : vector<4x384xf32>
    %cst_22 = arith.constant 1.000000e+00 : f32
    %150 = vector.broadcast %cst_22 : f32 to vector<4x384xf32>
    %151 = arith.addf %150, %149 : vector<4x384xf32>
    %152 = arith.divf %150, %151 : vector<4x384xf32>
    %153 = vector.extract_strided_slice %152 {offsets = [0, 0], sizes = [4, 128], strides = [1, 1]} : vector<4x384xf32> to vector<4x128xf32>
    %154 = vector.extract_strided_slice %152 {offsets = [0, 128], sizes = [4, 128], strides = [1, 1]} : vector<4x384xf32> to vector<4x128xf32>
    %155 = vector.extract_strided_slice %152 {offsets = [0, 256], sizes = [4, 128], strides = [1, 1]} : vector<4x384xf32> to vector<4x128xf32>
    %156 = vector.extract_strided_slice %146 {offsets = [0, 384], sizes = [4, 128], strides = [1, 1]} : vector<4x512xf32> to vector<4x128xf32>
    %157 = math.tanh %156 : vector<4x128xf32>
    %158 = arith.mulf %154, %139 : vector<4x128xf32>
    %159 = arith.mulf %153, %157 : vector<4x128xf32>
    %160 = arith.addf %158, %159 : vector<4x128xf32>
    %161 = math.tanh %160 : vector<4x128xf32>
    %162 = arith.mulf %155, %161 : vector<4x128xf32>
    %163 = tpu.concatenate %162, %162 in 1 : vector<4x128xf32>, vector<4x128xf32> -> vector<4x256xf32>
    %164 = arith.mulf %163, %36 : vector<4x256xf32>
    %165 = arith.truncf %164 : vector<4x256xf32> to vector<4x256xbf16>
    %cst_23 = arith.constant dense<0.000000e+00> : vector<4x512xf32>
    %166 = tpu.matmul %165, %26, %cst_23 {dimension_numbers = #tpu.dot_dimension_numbers<[1], [0], [0], [1], [0, 0, 1, 1], [], []>} : vector<4x256xbf16>, vector<256x512xbf16>, vector<4x512xf32> -> vector<4x512xf32>
    %167 = arith.addf %23, %166 : vector<4x512xf32>
    %168 = vector.extract_strided_slice %167 {offsets = [0, 0], sizes = [4, 384], strides = [1, 1]} : vector<4x512xf32> to vector<4x384xf32>
    %169 = arith.negf %168 : vector<4x384xf32>
    %170 = math.exp %169 : vector<4x384xf32>
    %cst_24 = arith.constant 1.000000e+00 : f32
    %171 = vector.broadcast %cst_24 : f32 to vector<4x384xf32>
    %172 = arith.addf %171, %170 : vector<4x384xf32>
    %173 = arith.divf %171, %172 : vector<4x384xf32>
    %174 = vector.extract_strided_slice %173 {offsets = [0, 0], sizes = [4, 128], strides = [1, 1]} : vector<4x384xf32> to vector<4x128xf32>
    %175 = vector.extract_strided_slice %173 {offsets = [0, 128], sizes = [4, 128], strides = [1, 1]} : vector<4x384xf32> to vector<4x128xf32>
    %176 = vector.extract_strided_slice %173 {offsets = [0, 256], sizes = [4, 128], strides = [1, 1]} : vector<4x384xf32> to vector<4x128xf32>
    %177 = vector.extract_strided_slice %167 {offsets = [0, 384], sizes = [4, 128], strides = [1, 1]} : vector<4x512xf32> to vector<4x128xf32>
    %178 = math.tanh %177 : vector<4x128xf32>
    %179 = arith.mulf %175, %160 : vector<4x128xf32>
    %180 = arith.mulf %174, %178 : vector<4x128xf32>
    %181 = arith.addf %179, %180 : vector<4x128xf32>
    %182 = math.tanh %181 : vector<4x128xf32>
    %183 = arith.mulf %176, %182 : vector<4x128xf32>
    %184 = tpu.concatenate %183, %183 in 1 : vector<4x128xf32>, vector<4x128xf32> -> vector<4x256xf32>
    %185 = arith.mulf %184, %36 : vector<4x256xf32>
    %186 = arith.truncf %185 : vector<4x256xf32> to vector<4x256xbf16>
    %cst_25 = arith.constant dense<0.000000e+00> : vector<4x512xf32>
    %187 = tpu.matmul %186, %26, %cst_25 {dimension_numbers = #tpu.dot_dimension_numbers<[1], [0], [0], [1], [0, 0, 1, 1], [], []>} : vector<4x256xbf16>, vector<256x512xbf16>, vector<4x512xf32> -> vector<4x512xf32>
    %188 = arith.addf %25, %187 : vector<4x512xf32>
    %189 = vector.extract_strided_slice %188 {offsets = [0, 0], sizes = [4, 384], strides = [1, 1]} : vector<4x512xf32> to vector<4x384xf32>
    %190 = arith.negf %189 : vector<4x384xf32>
    %191 = math.exp %190 : vector<4x384xf32>
    %cst_26 = arith.constant 1.000000e+00 : f32
    %192 = vector.broadcast %cst_26 : f32 to vector<4x384xf32>
    %193 = arith.addf %192, %191 : vector<4x384xf32>
    %194 = arith.divf %192, %193 : vector<4x384xf32>
    %195 = vector.extract_strided_slice %194 {offsets = [0, 0], sizes = [4, 128], strides = [1, 1]} : vector<4x384xf32> to vector<4x128xf32>
    %196 = vector.extract_strided_slice %194 {offsets = [0, 128], sizes = [4, 128], strides = [1, 1]} : vector<4x384xf32> to vector<4x128xf32>
    %197 = vector.extract_strided_slice %194 {offsets = [0, 256], sizes = [4, 128], strides = [1, 1]} : vector<4x384xf32> to vector<4x128xf32>
    %198 = vector.extract_strided_slice %188 {offsets = [0, 384], sizes = [4, 128], strides = [1, 1]} : vector<4x512xf32> to vector<4x128xf32>
    %199 = math.tanh %198 : vector<4x128xf32>
    %200 = arith.mulf %196, %181 : vector<4x128xf32>
    %201 = arith.mulf %195, %199 : vector<4x128xf32>
    %202 = arith.addf %200, %201 : vector<4x128xf32>
    %203 = math.tanh %202 : vector<4x128xf32>
    %204 = arith.mulf %197, %203 : vector<4x128xf32>
    %205 = tpu.concatenate %204, %204 in 1 : vector<4x128xf32>, vector<4x128xf32> -> vector<4x256xf32>
    %206 = arith.mulf %205, %36 : vector<4x256xf32>
    %207 = vector.extract_strided_slice %206 {offsets = [0, 0], sizes = [2, 256], strides = [1, 1]} : vector<4x256xf32> to vector<2x256xf32>
    %208 = vector.extract_strided_slice %206 {offsets = [2, 0], sizes = [2, 256], strides = [1, 1]} : vector<4x256xf32> to vector<2x256xf32>
    %209 = arith.addf %207, %208 : vector<2x256xf32>
    %c0_i32_27 = arith.constant 0 : i32
    %210 = tpu.memref_slice %arg15[%c0_i32_27] : memref<3x!tpu.dma_semaphore, #tpu.memory_space<semaphore_mem>> -> memref<1x!tpu.dma_semaphore, #tpu.memory_space<semaphore_mem>>
    %211 = tpu.memref_squeeze %210 : memref<1x!tpu.dma_semaphore, #tpu.memory_space<semaphore_mem>> -> memref<!tpu.dma_semaphore, #tpu.memory_space<semaphore_mem>>
    tpu.wait_dma2 semaphore(%211 : memref<!tpu.dma_semaphore, #tpu.memory_space<semaphore_mem>>) src(%arg8 : memref<256x512xbf16, #tpu.memory_space<any>>) dst(%arg12 : memref<256x512xbf16, #tpu.memory_space<vmem>>)
    %c1_i32_28 = arith.constant 1 : i32
    %212 = tpu.memref_slice %arg15[%c1_i32_28] : memref<3x!tpu.dma_semaphore, #tpu.memory_space<semaphore_mem>> -> memref<1x!tpu.dma_semaphore, #tpu.memory_space<semaphore_mem>>
    %213 = tpu.memref_squeeze %212 : memref<1x!tpu.dma_semaphore, #tpu.memory_space<semaphore_mem>> -> memref<!tpu.dma_semaphore, #tpu.memory_space<semaphore_mem>>
    tpu.wait_dma2 semaphore(%213 : memref<!tpu.dma_semaphore, #tpu.memory_space<semaphore_mem>>) src(%arg9 : memref<512x512xbf16, #tpu.memory_space<any>>) dst(%arg13 : memref<512x512xbf16, #tpu.memory_space<vmem>>)
    %c2_i32_29 = arith.constant 2 : i32
    %214 = tpu.memref_slice %arg15[%c2_i32_29] : memref<3x!tpu.dma_semaphore, #tpu.memory_space<semaphore_mem>> -> memref<1x!tpu.dma_semaphore, #tpu.memory_space<semaphore_mem>>
    %215 = tpu.memref_squeeze %214 : memref<1x!tpu.dma_semaphore, #tpu.memory_space<semaphore_mem>> -> memref<!tpu.dma_semaphore, #tpu.memory_space<semaphore_mem>>
    tpu.wait_dma2 semaphore(%215 : memref<!tpu.dma_semaphore, #tpu.memory_space<semaphore_mem>>) src(%arg10 : memref<512x128xbf16, #tpu.memory_space<any>>) dst(%arg14 : memref<512x128xbf16, #tpu.memory_space<vmem>>)
    %216 = arith.truncf %209 : vector<2x256xf32> to vector<2x256xbf16>
    %c0_30 = arith.constant 0 : index
    %c0_31 = arith.constant 0 : index
    %217 = vector.load %arg12[%c0_30, %c0_31] : memref<256x512xbf16, #tpu.memory_space<vmem>>, vector<256x512xbf16>
    %cst_32 = arith.constant dense<0.000000e+00> : vector<2x512xf32>
    %218 = tpu.matmul %216, %217, %cst_32 {dimension_numbers = #tpu.dot_dimension_numbers<[1], [0], [0], [1], [0, 0, 1, 1], [], []>} : vector<2x256xbf16>, vector<256x512xbf16>, vector<2x512xf32> -> vector<2x512xf32>
    %c0_33 = arith.constant 0 : index
    %c0_34 = arith.constant 0 : index
    %219 = vector.load %arg5[%c0_33, %c0_34] : memref<1x512xf32, #tpu.memory_space<vmem>>, vector<1x512xf32>
    %220 = vector.broadcast %219 : vector<1x512xf32> to vector<2x512xf32>
    %221 = arith.addf %218, %220 : vector<2x512xf32>
    %222 = arith.truncf %221 : vector<2x512xf32> to vector<2x512xbf16>
    %c0_35 = arith.constant 0 : index
    %c0_36 = arith.constant 0 : index
    %223 = vector.load %arg13[%c0_35, %c0_36] : memref<512x512xbf16, #tpu.memory_space<vmem>>, vector<512x512xbf16>
    %cst_37 = arith.constant dense<0.000000e+00> : vector<2x512xf32>
    %224 = tpu.matmul %222, %223, %cst_37 {dimension_numbers = #tpu.dot_dimension_numbers<[1], [0], [0], [1], [0, 0, 1, 1], [], []>} : vector<2x512xbf16>, vector<512x512xbf16>, vector<2x512xf32> -> vector<2x512xf32>
    %c0_38 = arith.constant 0 : index
    %c0_39 = arith.constant 0 : index
    %225 = vector.load %arg6[%c0_38, %c0_39] : memref<1x512xf32, #tpu.memory_space<vmem>>, vector<1x512xf32>
    %226 = vector.broadcast %225 : vector<1x512xf32> to vector<2x512xf32>
    %227 = arith.addf %224, %226 : vector<2x512xf32>
    %228 = arith.truncf %227 : vector<2x512xf32> to vector<2x512xbf16>
    %c0_40 = arith.constant 0 : index
    %c0_41 = arith.constant 0 : index
    %229 = vector.load %arg14[%c0_40, %c0_41] : memref<512x128xbf16, #tpu.memory_space<vmem>>, vector<512x128xbf16>
    %cst_42 = arith.constant dense<0.000000e+00> : vector<2x128xf32>
    %230 = tpu.matmul %228, %229, %cst_42 {dimension_numbers = #tpu.dot_dimension_numbers<[1], [0], [0], [1], [0, 0, 1, 1], [], []>} : vector<2x512xbf16>, vector<512x128xbf16>, vector<2x128xf32> -> vector<2x128xf32>
    %c0_43 = arith.constant 0 : index
    %c0_44 = arith.constant 0 : index
    %231 = vector.load %arg7[%c0_43, %c0_44] : memref<1x128xf32, #tpu.memory_space<vmem>>, vector<1x128xf32>
    %232 = vector.broadcast %231 : vector<1x128xf32> to vector<2x128xf32>
    %233 = arith.addf %230, %232 : vector<2x128xf32>
    %cst_45 = arith.constant dense<0xFF800000> : vector<2xf32>
    %234 = vector.multi_reduction <maximumf>, %233, %cst_45 [1] : vector<2x128xf32> to vector<2xf32>
    %235 = vector.shape_cast %234 : vector<2xf32> to vector<2x1xf32>
    %236 = vector.broadcast %235 : vector<2x1xf32> to vector<2x128xf32>
    %237 = arith.subf %233, %236 : vector<2x128xf32>
    %238 = math.exp %237 : vector<2x128xf32>
    %cst_46 = arith.constant dense<0.000000e+00> : vector<2xf32>
    %239 = vector.multi_reduction <add>, %238, %cst_46 [1] : vector<2x128xf32> to vector<2xf32>
    %240 = vector.shape_cast %239 : vector<2xf32> to vector<2x1xf32>
    %241 = math.log %240 : vector<2x1xf32>
    %242 = vector.broadcast %241 : vector<2x1xf32> to vector<2x128xf32>
    %243 = arith.subf %237, %242 : vector<2x128xf32>
    %c0_47 = arith.constant 0 : index
    %c0_48 = arith.constant 0 : index
    %244 = vector.load %arg11[%c0_47, %c0_48] : memref<2x128xf32, #tpu.memory_space<vmem>>, vector<2x128xf32>
    tpu.vector_store %arg11[%c0_47, %c0_48], %243 {strides = array<i32>} : memref<2x128xf32, #tpu.memory_space<vmem>>, vector<2x128xf32>,
    return
  }
  func.func @transform_0(%arg0: i32) -> (i32, i32) {
    %c0_i32 = arith.constant 0 : i32
    %c0_i32_0 = arith.constant 0 : i32
    %c0_i32_1 = arith.constant 0 : i32
    return %c0_i32, %c0_i32_0 : i32, i32
  }
  func.func @transform_1(%arg0: i32) -> (i32, i32) {
    %c0_i32 = arith.constant 0 : i32
    %c0_i32_0 = arith.constant 0 : i32
    %c0_i32_1 = arith.constant 0 : i32
    return %c0_i32, %c0_i32_0 : i32, i32
  }
  func.func @transform_2(%arg0: i32) -> (i32, i32) {
    %c0_i32 = arith.constant 0 : i32
    %c0_i32_0 = arith.constant 0 : i32
    %c0_i32_1 = arith.constant 0 : i32
    return %c0_i32, %c0_i32_0 : i32, i32
  }
  func.func @transform_3(%arg0: i32) -> (i32, i32) {
    %c0_i32 = arith.constant 0 : i32
    %c0_i32_0 = arith.constant 0 : i32
    %c0_i32_1 = arith.constant 0 : i32
    return %c0_i32, %c0_i32_0 : i32, i32
  }
  func.func @transform_4(%arg0: i32) -> (i32, i32) {
    %c0_i32 = arith.constant 0 : i32
    %c0_i32_0 = arith.constant 0 : i32
    %c0_i32_1 = arith.constant 0 : i32
    return %c0_i32, %c0_i32_0 : i32, i32
  }
  func.func @transform_5(%arg0: i32) -> (i32, i32) {
    %c0_i32 = arith.constant 0 : i32
    %c0_i32_0 = arith.constant 0 : i32
    %c0_i32_1 = arith.constant 0 : i32
    return %c0_i32, %c0_i32_0 : i32, i32
  }
  func.func @transform_6(%arg0: i32) -> (i32, i32) {
    %c0_i32 = arith.constant 0 : i32
    %c0_i32_0 = arith.constant 0 : i32
    %c0_i32_1 = arith.constant 0 : i32
    return %c0_i32, %c0_i32_0 : i32, i32
  }
  func.func @transform_10(%arg0: i32) -> (i32, i32) {
    %c0_i32 = arith.constant 0 : i32
    %c0_i32_0 = arith.constant 0 : i32
    %c0_i32_1 = arith.constant 0 : i32
    return %c0_i32, %c0_i32_0 : i32, i32
  }
}

</mosaic_0001>

<llo_original>
// kernel: lstm_forward.1
$region0: #{lstm_forward.1}
  #allocation0 [shape = 'u32[]', space=smem, size = 0x4, offset = 0x4, fixed_abs, tag = 'smem constant byte address 0x4 - core index']
  #allocation1 [shape = 'u32[144,128]{1,0:T(1,128)}', space=vmem, size = 0x12000, scoped, tag = 'internal scratch']
  #allocation2 [shape = 'bf16[256,512]{1,0:T(8,128)(2,1)}', space=vmem, size = 0x40000, scoped, tag = 'scratch operand']
  #allocation3 [shape = 'bf16[512,512]{1,0:T(8,128)(2,1)}', space=vmem, size = 0x80000, scoped, tag = 'scratch operand']
  #allocation4 [shape = 'bf16[512,128]{1,0:T(8,128)(2,1)}', space=vmem, size = 0x20000, scoped, tag = 'scratch operand']
  #allocation5 [shape = 's32[3]{0}', space=sflag, size = 0xc, scoped, tag = 'scratch operand']
  #allocation12 [shape = 's32[]', space=sflag, size = 0x4, offset = 0, fixed_abs, tag = 'sflag constant byte address 0x0 - dummy sync flag']
  #allocation13 [shape = 's32[]', space=sflag, size = 0x4, offset = 0, fixed_abs, tag = 'sflag constant byte address 0x0 - dummy sync flag']
  #allocation14 [shape = 'u32[]', space=smem, size = 0x4, offset = 0x44, fixed_abs, tag = 'smem constant byte address 0x44 - assertion arg 0']
  #allocation15 [shape = 'u32[]', space=smem, size = 0x4, offset = 0x48, fixed_abs, tag = 'smem constant byte address 0x48 - assertion arg 1']
  #allocation16 [shape = 's32[]', space=sflag, size = 0x4, offset = 0, fixed_abs, tag = 'sflag constant byte address 0x0 - dummy sync flag']
  #allocation17 [shape = 's32[]', space=sflag, size = 0x4, offset = 0, fixed_abs, tag = 'sflag constant byte address 0x0 - dummy sync flag']
  #allocation18 [shape = 's32[]', space=sflag, size = 0x4, offset = 0, fixed_abs, tag = 'sflag constant byte address 0x0 - dummy sync flag']
  %s0 = inlined_call_operand.vmem [shape: bf16[32,256], index: 0, kind: input, shape index: {}]
  %s1 = inlined_call_operand.hbm [shape: bf16[256,512], index: 1, kind: input, shape index: {}]
  %s2 = inlined_call_operand.vmem [shape: f32[4,512], index: 2, kind: input, shape index: {}]
  %s3 = inlined_call_operand.hbm [shape: bf16[256,512], index: 3, kind: input, shape index: {}]
  %s4 = inlined_call_operand.vmem [shape: f32[1,512], index: 4, kind: input, shape index: {}]
  %s5 = inlined_call_operand.vmem [shape: f32[1,512], index: 5, kind: input, shape index: {}]
  %s6 = inlined_call_operand.vmem [shape: f32[1,128], index: 6, kind: input, shape index: {}]
  %s7 = inlined_call_operand.hbm [shape: bf16[256,512], index: 7, kind: input, shape index: {}]
  %s8 = inlined_call_operand.hbm [shape: bf16[512,512], index: 8, kind: input, shape index: {}]
  %s9 = inlined_call_operand.vmem [shape: bf16[512,128], index: 9, kind: input, shape index: {}]
  %s10 = inlined_call_operand.hbm [shape: f32[2,128], index: 10, kind: output, shape index: {}]
  %s11 = sld [smem:[#allocation0]]
  $region88: #{lstm_forward.1} parent=0
    _
  %s13 = ssub.s32 1, %s11
  %s14 = scalar_select 0, %s13, %s11
  $region1: #{lstm_forward.1} parent=0
    #allocation6 [shape = 'u8[262144]{0}', space=vmem, size = 0x40000, scoped, tag = 'input window, operand 1, single buffered']
    #allocation7 [shape = 's32[1]{0}', space=sflag, size = 0x4, scoped, tag = 'scoped memory for lstm_forward.1']
    #allocation8 [shape = 's32[1]{0}', space=sflag, size = 0x4, scoped, tag = 'scoped memory for lstm_forward.1']
    #allocation9 [shape = 'u8[262144]{0}', space=vmem, size = 0x40000, scoped, tag = 'input window, operand 3, single buffered']
    #allocation10 [shape = 's32[1]{0}', space=sflag, size = 0x4, scoped, tag = 'scoped memory for lstm_forward.1']
    #allocation11 [shape = 'u8[1024]{0}', space=vmem, size = 0x400, scoped, tag = 'output window, operand 0, single buffered']
    %15 = vsyncpa [#allocation7], 0
    %16 = vsyncpa [#allocation10], 0
    %17 = vsyncpa [#allocation8], 0
    // Predicated region
    $region2: #{lstm_forward.1} parent=1 // pred_check
      _
    $region3: #{lstm_forward.1} parent=1 // pred_check_branch
      %19 = sbr.rel (0) target = $region5
    $region4: #{lstm_forward.1} parent=1 // pred_region
      _
    $region5: #{lstm_forward.1} parent=1 // pred_fallthru
      _
    // Predicated region
    $region6: #{lstm_forward.1} parent=1 // pred_check
      _
    $region7: #{lstm_forward.1} parent=1 // pred_check_branch
      %21 = sbr.rel (0) target = $region9
    $region8: #{lstm_forward.1} parent=1 // pred_region
      %s23 = ssub.s32 8192, 8192
      %24 = vsyncadd [#allocation7], %s23
      %s25 = sshll.u32 [#allocation6], 4
      %s26 = int_to_ptr.vmem [resolvable:$true] %s25
      %31 = dma.hbm_to_vmem [thread:$0]  %s1, 8192, %s26, [#allocation7], 256, 256, 16
    $region9: #{lstm_forward.1} parent=1 // pred_fallthru
      _
    // Predicated region
    $region10: #{lstm_forward.1} parent=1 // pred_check
      _
    $region11: #{lstm_forward.1} parent=1 // pred_check_branch
      %33 = sbr.rel (0) target = $region13
    $region12: #{lstm_forward.1} parent=1 // pred_region
      _
    $region13: #{lstm_forward.1} parent=1 // pred_fallthru
      _
    // Predicated region
    $region14: #{lstm_forward.1} parent=1 // pred_check
      _
    $region15: #{lstm_forward.1} parent=1 // pred_check_branch
      %35 = sbr.rel (0) target = $region17
    $region16: #{lstm_forward.1} parent=1 // pred_region
      %s37 = ssub.s32 8192, 8192
      %38 = vsyncadd [#allocation10], %s37
      %s39 = sshll.u32 [#allocation9], 4
      %s40 = int_to_ptr.vmem [resolvable:$true] %s39
      %45 = dma.hbm_to_vmem [thread:$0]  %s3, 8192, %s40, [#allocation10], 256, 256, 16
    $region17: #{lstm_forward.1} parent=1 // pred_fallthru
      _
    // Predicated region
    $region18: #{lstm_forward.1} parent=1 // pred_check
      _
    $region19: #{lstm_forward.1} parent=1 // pred_check_branch
      %47 = sbr.rel (0) target = $region21
    $region20: #{lstm_forward.1} parent=1 // pred_region
      _
    $region21: #{lstm_forward.1} parent=1 // pred_fallthru
      _
    // Predicated region
    $region22: #{lstm_forward.1} parent=1 // pred_check
      _
    $region23: #{lstm_forward.1} parent=1 // pred_check_branch
      %49 = sbr.rel (0) target = $region25
    $region24: #{lstm_forward.1} parent=1 // pred_region
      _
    $region25: #{lstm_forward.1} parent=1 // pred_fallthru
      _
    // Predicated region
    $region26: #{lstm_forward.1} parent=1 // pred_check
      _
    $region27: #{lstm_forward.1} parent=1 // pred_check_branch
      %51 = sbr.rel (0) target = $region29
    $region28: #{lstm_forward.1} parent=1 // pred_region
      _
    $region29: #{lstm_forward.1} parent=1 // pred_fallthru
      _
    // Predicated region
    $region30: #{lstm_forward.1} parent=1 // pred_check
      _
    $region31: #{lstm_forward.1} parent=1 // pred_check_branch
      %53 = sbr.rel (0) target = $region33
    $region32: #{lstm_forward.1} parent=1 // pred_region
      %54 = dma.done [#allocation7], 8192
    $region33: #{lstm_forward.1} parent=1 // pred_fallthru
      _
    // Predicated region
    $region34: #{lstm_forward.1} parent=1 // pred_check
      _
    $region35: #{lstm_forward.1} parent=1 // pred_check_branch
      %56 = sbr.rel (0) target = $region37
    $region36: #{lstm_forward.1} parent=1 // pred_region
      %57 = dma.done [#allocation10], 8192
    $region37: #{lstm_forward.1} parent=1 // pred_fallthru
      _
    // Predicated region
    $region38: #{lstm_forward.1} parent=1 // pred_check
      _
    $region39: #{lstm_forward.1} parent=1 // pred_check_branch
      %60 = sbr.rel target = $region41
    $region40: #{lstm_forward.1} parent=1 // pred_region
      %61 = sst [smem:[#allocation14]] [#allocation13]
      %62 = sst [smem:[#allocation15]] [#allocation12]
    $region41: #{lstm_forward.1} parent=1 // pred_fallthru
      _
    %64 = shalt.err (0)
    %s66 = sshll.u32 [#allocation2], 4
    %s67 = int_to_ptr.vmem [resolvable:$true] %s66
    %69 = dma.hbm_to_vmem [thread:$0]  %s7, 8192, %s67, [#allocation5]
    %s70 = scalar_lea.sflag [#allocation5], 1
    // Predicated region
    $region42: #{lstm_forward.1} parent=1 // pred_check
      _
    $region43: #{lstm_forward.1} parent=1 // pred_check_branch
      %72 = sbr.rel target = $region45
    $region44: #{lstm_forward.1} parent=1 // pred_region
      %73 = sst [smem:[#allocation14]] [#allocation17]
      %74 = sst [smem:[#allocation15]] [#allocation16]
    $region45: #{lstm_forward.1} parent=1 // pred_fallthru
      _
    %76 = shalt.err (0)
    %s78 = sshll.u32 [#allocation3], 4
    %s79 = int_to_ptr.vmem [resolvable:$true] %s78
    %81 = dma.hbm_to_vmem [thread:$0]  %s8, 16384, %s79, %s70
    %s82 = scalar_lea.sflag [#allocation5], 2
    %p84 = scmp.lt.u32.totalorder 256, 8
    %p85 = pneg %p84
    // Predicated region
    $region46: #{lstm_forward.1} parent=1 // pred_check
      _
    $region47: #{lstm_forward.1} parent=1 // pred_check_branch
      %87 = sbr.rel (%p84) target = $region49
    $region48: #{lstm_forward.1} parent=1 // pred_region
      %s103 = sand.u32 256, 7
      %p104 = scmp.eq.s32.totalorder %s103, 0
      // Predicated region
      $region61: #{lstm_forward.1} parent=48 // pred_check
        %p105 = pneg %p104
      $region62: #{lstm_forward.1} parent=48 // pred_check_branch
        %107 = sbr.rel (%p105) target = $region64
      $region63: #{lstm_forward.1} parent=48 // pred_region
        loop: start=0, step=1, limit=1
        $region65: #{lstm_forward.1} parent=63 // loop_pre_header
          _
        $region66: #{lstm_forward.1} parent=63 // loop_header
          %s109 = sphi 0, %s113
          %p110 = scmp.ge.s32.totalorder %s109, 1
          %s114 = sphi %s9, %s9
          %s115 = sphi [#allocation4], [#allocation4]
        $region67: #{lstm_forward.1} parent=63 // loop_header_branch
          %112 = sbr.rel (%p110) target = $region71
        $region68: #{lstm_forward.1} parent=63 // loop_body
          %v116 = vld [vmem:[%s114] sm:$0xff]
          %117 = vst [vmem:[%s115] sm:$0xff] %v116
          %v118 = vld [vmem:[%s114 + $0x8] sm:$0xff]
          %119 = vst [vmem:[%s115 + $0x8] sm:$0xff] %v118
          %v120 = vld [vmem:[%s114 + $0x10] sm:$0xff]
          %121 = vst [vmem:[%s115 + $0x10] sm:$0xff] %v120
          %v122 = vld [vmem:[%s114 + $0x18] sm:$0xff]
          %123 = vst [vmem:[%s115 + $0x18] sm:$0xff] %v122
          %v124 = vld [vmem:[%s114 + $0x20] sm:$0xff]
          %125 = vst [vmem:[%s115 + $0x20] sm:$0xff] %v124
          %v126 = vld [vmem:[%s114 + $0x28] sm:$0xff]
          %127 = vst [vmem:[%s115 + $0x28] sm:$0xff] %v126
          %v128 = vld [vmem:[%s114 + $0x30] sm:$0xff]
          %129 = vst [vmem:[%s115 + $0x30] sm:$0xff] %v128
          %v130 = vld [vmem:[%s114 + $0x38] sm:$0xff]
          %131 = vst [vmem:[%s115 + $0x38] sm:$0xff] %v130
          %v132 = vld [vmem:[%s114 + $0x40] sm:$0xff]
          %133 = vst [vmem:[%s115 + $0x40] sm:$0xff] %v132
          %v134 = vld [vmem:[%s114 + $0x48] sm:$0xff]
          %135 = vst [vmem:[%s115 + $0x48] sm:$0xff] %v134
          %v136 = vld [vmem:[%s114 + $0x50] sm:$0xff]
          %137 = vst [vmem:[%s115 + $0x50] sm:$0xff] %v136
          %v138 = vld [vmem:[%s114 + $0x58] sm:$0xff]
          %139 = vst [vmem:[%s115 + $0x58] sm:$0xff] %v138
          %v140 = vld [vmem:[%s114 + $0x60] sm:$0xff]
          %141 = vst [vmem:[%s115 + $0x60] sm:$0xff] %v140
          %v142 = vld [vmem:[%s114 + $0x68] sm:$0xff]
          %143 = vst [vmem:[%s115 + $0x68] sm:$0xff] %v142
          %v144 = vld [vmem:[%s114 + $0x70] sm:$0xff]
          %145 = vst [vmem:[%s115 + $0x70] sm:$0xff] %v144
          %v146 = vld [vmem:[%s114 + $0x78] sm:$0xff]
          %147 = vst [vmem:[%s115 + $0x78] sm:$0xff] %v146
          %v148 = vld [vmem:[%s114 + $0x80] sm:$0xff]
          %149 = vst [vmem:[%s115 + $0x80] sm:$0xff] %v148
          %v150 = vld [vmem:[%s114 + $0x88] sm:$0xff]
          %151 = vst [vmem:[%s115 + $0x88] sm:$0xff] %v150
          %v152 = vld [vmem:[%s114 + $0x90] sm:$0xff]
          %153 = vst [vmem:[%s115 + $0x90] sm:$0xff] %v152
          %v154 = vld [vmem:[%s114 + $0x98] sm:$0xff]
          %155 = vst [vmem:[%s115 + $0x98] sm:$0xff] %v154
          %v156 = vld [vmem:[%s114 + $0xa0] sm:$0xff]
          %157 = vst [vmem:[%s115 + $0xa0] sm:$0xff] %v156
          %v158 = vld [vmem:[%s114 + $0xa8] sm:$0xff]
          %159 = vst [vmem:[%s115 + $0xa8] sm:$0xff] %v158
          %v160 = vld [vmem:[%s114 + $0xb0] sm:$0xff]
          %161 = vst [vmem:[%s115 + $0xb0] sm:$0xff] %v160
          %v162 = vld [vmem:[%s114 + $0xb8] sm:$0xff]
          %163 = vst [vmem:[%s115 + $0xb8] sm:$0xff] %v162
          %v164 = vld [vmem:[%s114 + $0xc0] sm:$0xff]
          %165 = vst [vmem:[%s115 + $0xc0] sm:$0xff] %v164
          %v166 = vld [vmem:[%s114 + $0xc8] sm:$0xff]
          %167 = vst [vmem:[%s115 + $0xc8] sm:$0xff] %v166
          %v168 = vld [vmem:[%s114 + $0xd0] sm:$0xff]
          %169 = vst [vmem:[%s115 + $0xd0] sm:$0xff] %v168
          %v170 = vld [vmem:[%s114 + $0xd8] sm:$0xff]
          %171 = vst [vmem:[%s115 + $0xd8] sm:$0xff] %v170
          %v172 = vld [vmem:[%s114 + $0xe0] sm:$0xff]
          %173 = vst [vmem:[%s115 + $0xe0] sm:$0xff] %v172
          %v174 = vld [vmem:[%s114 + $0xe8] sm:$0xff]
          %175 = vst [vmem:[%s115 + $0xe8] sm:$0xff] %v174
          %v176 = vld [vmem:[%s114 + $0xf0] sm:$0xff]
          %177 = vst [vmem:[%s115 + $0xf0] sm:$0xff] %v176
          %v178 = vld [vmem:[%s114 + $0xf8] sm:$0xff]
          %179 = vst [vmem:[%s115 + $0xf8] sm:$0xff] %v178
        $region69: #{lstm_forward.1} parent=63 // loop_footer
          %s113 = sadd.s32 1, %s109
        $region70: #{lstm_forward.1} parent=63 // loop_footer_branch
          %108 = sbr.rel target = $region66
        $region71: #{lstm_forward.1} parent=63 // loop_exit
          _
      $region64: #{lstm_forward.1} parent=48 // pred_fallthru
        _
      %p180 = pneg %p104
      // Predicated region
      $region72: #{lstm_forward.1} parent=48 // pred_check
        _
      $region73: #{lstm_forward.1} parent=48 // pred_check_branch
        %182 = sbr.rel (%p104) target = $region75
      $region74: #{lstm_forward.1} parent=48 // pred_region
        %s183 = sand.u32 256, 7
      $region75: #{lstm_forward.1} parent=48 // pred_fallthru
        _
    $region49: #{lstm_forward.1} parent=1 // pred_fallthru
      _
    // Predicated region
    $region50: #{lstm_forward.1} parent=1 // pred_check
      %p88 = pneg %p84
    $region51: #{lstm_forward.1} parent=1 // pred_check_branch
      %90 = sbr.rel (%p88) target = $region53
    $region52: #{lstm_forward.1} parent=1 // pred_region
      %s91 = sshll.u32 1, 256
      %s92 = ssub.s32 %s91, 1
      loop: start=0, step=1, limit=1
      $region54: #{lstm_forward.1} parent=52 // loop_pre_header
        _
      $region55: #{lstm_forward.1} parent=52 // loop_header
        %s94 = sphi 0, %s98
        %p95 = scmp.ge.s32.totalorder %s94, 1
        %s99 = sphi %s9, %s9
        %s100 = sphi [#allocation4], [#allocation4]
      $region56: #{lstm_forward.1} parent=52 // loop_header_branch
        %97 = sbr.rel (%p95) target = $region60
      $region57: #{lstm_forward.1} parent=52 // loop_body
        %v101 = vld [vmem:[%s99] sm:%s92]
        %102 = vst [vmem:[%s100] sm:%s92] %v101
      $region58: #{lstm_forward.1} parent=52 // loop_footer
        %s98 = sadd.s32 1, %s94
      $region59: #{lstm_forward.1} parent=52 // loop_footer_branch
        %93 = sbr.rel target = $region55
      $region60: #{lstm_forward.1} parent=52 // loop_exit
        _
    $region53: #{lstm_forward.1} parent=1 // pred_fallthru
      _
    // Predicated region
    $region76: #{lstm_forward.1} parent=1 // pred_check
      _
    $region77: #{lstm_forward.1} parent=1 // pred_check_branch
      %186 = sbr.rel (0) target = $region79
    $region78: #{lstm_forward.1} parent=1 // pred_region
      %187 = vsyncadd %s82, 4096
    $region79: #{lstm_forward.1} parent=1 // pred_fallthru
      _
    %v188 = vld [vmem:[%s0] sm:$0xff]
    %v189 = vld [vmem:[%s0 + $0x8] sm:$0xff]
    %v190 = vld [vmem:[%s0 + $0x10] sm:$0xff]
    %v191 = vld [vmem:[%s0 + $0x18] sm:$0xff]
    %v192 = vld [vmem:[#allocation6] sm:$0xff]
    %v193 = vld [vmem:[#allocation6 + $0x8] sm:$0xff]
    %v194 = vld [vmem:[#allocation6 + $0x10] sm:$0xff]
    %v195 = vld [vmem:[#allocation6 + $0x18] sm:$0xff]
    %v196 = vld [vmem:[#allocation6 + $0x20] sm:$0xff]
    %v197 = vld [vmem:[#allocation6 + $0x28] sm:$0xff]
    %v198 = vld [vmem:[#allocation6 + $0x30] sm:$0xff]
    %v199 = vld [vmem:[#allocation6 + $0x38] sm:$0xff]
    %v200 = vld [vmem:[#allocation6 + $0x40] sm:$0xff]
    %v201 = vld [vmem:[#allocation6 + $0x48] sm:$0xff]
    %v202 = vld [vmem:[#allocation6 + $0x50] sm:$0xff]
    %v203 = vld [vmem:[#allocation6 + $0x58] sm:$0xff]
    %v204 = vld [vmem:[#allocation6 + $0x60] sm:$0xff]
    %v205 = vld [vmem:[#allocation6 + $0x68] sm:$0xff]
    %v206 = vld [vmem:[#allocation6 + $0x70] sm:$0xff]
    %v207 = vld [vmem:[#allocation6 + $0x78] sm:$0xff]
    %v208 = vld [vmem:[#allocation6 + $0x80] sm:$0xff]
    %v209 = vld [vmem:[#allocation6 + $0x88] sm:$0xff]
    %v210 = vld [vmem:[#allocation6 + $0x90] sm:$0xff]
    %v211 = vld [vmem:[#allocation6 + $0x98] sm:$0xff]
    %v212 = vld [vmem:[#allocation6 + $0xa0] sm:$0xff]
    %v213 = vld [vmem:[#allocation6 + $0xa8] sm:$0xff]
    %v214 = vld [vmem:[#allocation6 + $0xb0] sm:$0xff]
    %v215 = vld [vmem:[#allocation6 + $0xb8] sm:$0xff]
    %v216 = vld [vmem:[#allocation6 + $0xc0] sm:$0xff]
    %v217 = vld [vmem:[#allocation6 + $0xc8] sm:$0xff]
    %v218 = vld [vmem:[#allocation6 + $0xd0] sm:$0xff]
    %v219 = vld [vmem:[#allocation6 + $0xd8] sm:$0xff]
    %v220 = vld [vmem:[#allocation6 + $0xe0] sm:$0xff]
    %v221 = vld [vmem:[#allocation6 + $0xe8] sm:$0xff]
    %v222 = vld [vmem:[#allocation6 + $0xf0] sm:$0xff]
    %v223 = vld [vmem:[#allocation6 + $0xf8] sm:$0xff]
    %v224 = vld [vmem:[#allocation6 + $0x100] sm:$0xff]
    %v225 = vld [vmem:[#allocation6 + $0x108] sm:$0xff]
    %v226 = vld [vmem:[#allocation6 + $0x110] sm:$0xff]
    %v227 = vld [vmem:[#allocation6 + $0x118] sm:$0xff]
    %v228 = vld [vmem:[#allocation6 + $0x120] sm:$0xff]
    %v229 = vld [vmem:[#allocation6 + $0x128] sm:$0xff]
    %v230 = vld [vmem:[#allocation6 + $0x130] sm:$0xff]
    %v231 = vld [vmem:[#allocation6 + $0x138] sm:$0xff]
    %v232 = vld [vmem:[#allocation6 + $0x140] sm:$0xff]
    %v233 = vld [vmem:[#allocation6 + $0x148] sm:$0xff]
    %v234 = vld [vmem:[#allocation6 + $0x150] sm:$0xff]
    %v235 = vld [vmem:[#allocation6 + $0x158] sm:$0xff]
    %v236 = vld [vmem:[#allocation6 + $0x160] sm:$0xff]
    %v237 = vld [vmem:[#allocation6 + $0x168] sm:$0xff]
    %v238 = vld [vmem:[#allocation6 + $0x170] sm:$0xff]
    %v239 = vld [vmem:[#allocation6 + $0x178] sm:$0xff]
    %v240 = vld [vmem:[#allocation6 + $0x180] sm:$0xff]
    %v241 = vld [vmem:[#allocation6 + $0x188] sm:$0xff]
    %v242 = vld [vmem:[#allocation6 + $0x190] sm:$0xff]
    %v243 = vld [vmem:[#allocation6 + $0x198] sm:$0xff]
    %v244 = vld [vmem:[#allocation6 + $0x1a0] sm:$0xff]
    %v245 = vld [vmem:[#allocation6 + $0x1a8] sm:$0xff]
    %v246 = vld [vmem:[#allocation6 + $0x1b0] sm:$0xff]
    %v247 = vld [vmem:[#allocation6 + $0x1b8] sm:$0xff]
    %v248 = vld [vmem:[#allocation6 + $0x1c0] sm:$0xff]
    %v249 = vld [vmem:[#allocation6 + $0x1c8] sm:$0xff]
    %v250 = vld [vmem:[#allocation6 + $0x1d0] sm:$0xff]
    %v251 = vld [vmem:[#allocation6 + $0x1d8] sm:$0xff]
    %v252 = vld [vmem:[#allocation6 + $0x1e0] sm:$0xff]
    %v253 = vld [vmem:[#allocation6 + $0x1e8] sm:$0xff]
    %v254 = vld [vmem:[#allocation6 + $0x1f0] sm:$0xff]
    %v255 = vld [vmem:[#allocation6 + $0x1f8] sm:$0xff]
    %v260 = vunpack.c.l.b16 %v188
    %v261 = vunpack.c.h.b16 %v188
    %v262 = vunpack.c.l.b16 %v189
    %v263 = vunpack.c.h.b16 %v189
    %v264 = vunpack.c.l.b16 %v190
    %v265 = vunpack.c.h.b16 %v190
    %v266 = vunpack.c.l.b16 %v191
    %v267 = vunpack.c.h.b16 %v191
    %v268 = vpack.c.b16 %v262, %v260
    %v269 = vpack.c.b16 %v263, %v261
    %v270 = vpack.c.b16 %v266, %v264
    %v271 = vpack.c.b16 %v267, %v265
    %v340 = vunpack.c.l.b16 %v192
    %v341 = vunpack.c.h.b16 %v192
    %v342 = vunpack.c.l.b16 %v193
    %v343 = vunpack.c.h.b16 %v193
    %v344 = vunpack.c.l.b16 %v194
    %v345 = vunpack.c.h.b16 %v194
    %v346 = vunpack.c.l.b16 %v195
    %v347 = vunpack.c.h.b16 %v195
    %v348 = vunpack.c.l.b16 %v196
    %v349 = vunpack.c.h.b16 %v196
    %v350 = vunpack.c.l.b16 %v197
    %v351 = vunpack.c.h.b16 %v197
    %v352 = vunpack.c.l.b16 %v198
    %v353 = vunpack.c.h.b16 %v198
    %v354 = vunpack.c.l.b16 %v199
    %v355 = vunpack.c.h.b16 %v199
    %v356 = vunpack.c.l.b16 %v200
    %v357 = vunpack.c.h.b16 %v200
    %v358 = vunpack.c.l.b16 %v201
    %v359 = vunpack.c.h.b16 %v201
    %v360 = vunpack.c.l.b16 %v202
    %v361 = vunpack.c.h.b16 %v202
    %v362 = vunpack.c.l.b16 %v203
    %v363 = vunpack.c.h.b16 %v203
    %v364 = vunpack.c.l.b16 %v204
    %v365 = vunpack.c.h.b16 %v204
    %v366 = vunpack.c.l.b16 %v205
    %v367 = vunpack.c.h.b16 %v205
    %v368 = vunpack.c.l.b16 %v206
    %v369 = vunpack.c.h.b16 %v206
    %v370 = vunpack.c.l.b16 %v207
    %v371 = vunpack.c.h.b16 %v207
    %v372 = vunpack.c.l.b16 %v208
    %v373 = vunpack.c.h.b16 %v208
    %v374 = vunpack.c.l.b16 %v209
    %v375 = vunpack.c.h.b16 %v209
    %v376 = vunpack.c.l.b16 %v210
    %v377 = vunpack.c.h.b16 %v210
    %v378 = vunpack.c.l.b16 %v211
    %v379 = vunpack.c.h.b16 %v211
    %v380 = vunpack.c.l.b16 %v212
    %v381 = vunpack.c.h.b16 %v212
    %v382 = vunpack.c.l.b16 %v213
    %v383 = vunpack.c.h.b16 %v213
    %v384 = vunpack.c.l.b16 %v214
    %v385 = vunpack.c.h.b16 %v214
    %v386 = vunpack.c.l.b16 %v215
    %v387 = vunpack.c.h.b16 %v215
    %v388 = vunpack.c.l.b16 %v216
    %v389 = vunpack.c.h.b16 %v216
    %v390 = vunpack.c.l.b16 %v217
    %v391 = vunpack.c.h.b16 %v217
    %v392 = vunpack.c.l.b16 %v218
    %v393 = vunpack.c.h.b16 %v218
    %v394 = vunpack.c.l.b16 %v219
    %v395 = vunpack.c.h.b16 %v219
    %v396 = vunpack.c.l.b16 %v220
    %v397 = vunpack.c.h.b16 %v220
    %v398 = vunpack.c.l.b16 %v221
    %v399 = vunpack.c.h.b16 %v221
    %v400 = vunpack.c.l.b16 %v222
    %v401 = vunpack.c.h.b16 %v222
    %v402 = vunpack.c.l.b16 %v223
    %v403 = vunpack.c.h.b16 %v223
    %v404 = vunpack.c.l.b16 %v224
    %v405 = vunpack.c.h.b16 %v224
    %v406 = vunpack.c.l.b16 %v225
    %v407 = vunpack.c.h.b16 %v225
    %v408 = vunpack.c.l.b16 %v226
    %v409 = vunpack.c.h.b16 %v226
    %v410 = vunpack.c.l.b16 %v227
    %v411 = vunpack.c.h.b16 %v227
    %v412 = vunpack.c.l.b16 %v228
    %v413 = vunpack.c.h.b16 %v228
    %v414 = vunpack.c.l.b16 %v229
    %v415 = vunpack.c.h.b16 %v229
    %v416 = vunpack.c.l.b16 %v230
    %v417 = vunpack.c.h.b16 %v230
    %v418 = vunpack.c.l.b16 %v231
    %v419 = vunpack.c.h.b16 %v231
    %v420 = vunpack.c.l.b16 %v232
    %v421 = vunpack.c.h.b16 %v232
    %v422 = vunpack.c.l.b16 %v233
    %v423 = vunpack.c.h.b16 %v233
    %v424 = vunpack.c.l.b16 %v234
    %v425 = vunpack.c.h.b16 %v234
    %v426 = vunpack.c.l.b16 %v235
    %v427 = vunpack.c.h.b16 %v235
    %v428 = vunpack.c.l.b16 %v236
    %v429 = vunpack.c.h.b16 %v236
    %v430 = vunpack.c.l.b16 %v237
    %v431 = vunpack.c.h.b16 %v237
    %v432 = vunpack.c.l.b16 %v238
    %v433 = vunpack.c.h.b16 %v238
    %v434 = vunpack.c.l.b16 %v239
    %v435 = vunpack.c.h.b16 %v239
    %v436 = vunpack.c.l.b16 %v240
    %v437 = vunpack.c.h.b16 %v240
    %v438 = vunpack.c.l.b16 %v241
    %v439 = vunpack.c.h.b16 %v241
    %v440 = vunpack.c.l.b16 %v242
    %v441 = vunpack.c.h.b16 %v242
    %v442 = vunpack.c.l.b16 %v243
    %v443 = vunpack.c.h.b16 %v243
    %v444 = vunpack.c.l.b16 %v244
    %v445 = vunpack.c.h.b16 %v244
    %v446 = vunpack.c.l.b16 %v245
    %v447 = vunpack.c.h.b16 %v245
    %v448 = vunpack.c.l.b16 %v246
    %v449 = vunpack.c.h.b16 %v246
    %v450 = vunpack.c.l.b16 %v247
    %v451 = vunpack.c.h.b16 %v247
    %v452 = vunpack.c.l.b16 %v248
    %v453 = vunpack.c.h.b16 %v248
    %v454 = vunpack.c.l.b16 %v249
    %v455 = vunpack.c.h.b16 %v249
    %v456 = vunpack.c.l.b16 %v250
    %v457 = vunpack.c.h.b16 %v250
    %v458 = vunpack.c.l.b16 %v251
    %v459 = vunpack.c.h.b16 %v251
    %v460 = vunpack.c.l.b16 %v252
    %v461 = vunpack.c.h.b16 %v252
    %v462 = vunpack.c.l.b16 %v253
    %v463 = vunpack.c.h.b16 %v253
    %v464 = vunpack.c.l.b16 %v254
    %v465 = vunpack.c.h.b16 %v254
    %v466 = vunpack.c.l.b16 %v255
    %v467 = vunpack.c.h.b16 %v255
    %v468 = vpack.c.b16 %v344, %v340
    %v469 = vpack.c.b16 %v345, %v341
    %v470 = vpack.c.b16 %v346, %v342
    %v471 = vpack.c.b16 %v347, %v343
    %v472 = vpack.c.b16 %v352, %v348
    %v473 = vpack.c.b16 %v353, %v349
    %v474 = vpack.c.b16 %v354, %v350
    %v475 = vpack.c.b16 %v355, %v351
    %v476 = vpack.c.b16 %v360, %v356
    %v477 = vpack.c.b16 %v361, %v357
    %v478 = vpack.c.b16 %v362, %v358
    %v479 = vpack.c.b16 %v363, %v359
    %v480 = vpack.c.b16 %v368, %v364
    %v481 = vpack.c.b16 %v369, %v365
    %v482 = vpack.c.b16 %v370, %v366
    %v483 = vpack.c.b16 %v371, %v367
    %v484 = vpack.c.b16 %v376, %v372
    %v485 = vpack.c.b16 %v377, %v373
    %v486 = vpack.c.b16 %v378, %v374
    %v487 = vpack.c.b16 %v379, %v375
    %v488 = vpack.c.b16 %v384, %v380
    %v489 = vpack.c.b16 %v385, %v381
    %v490 = vpack.c.b16 %v386, %v382
    %v491 = vpack.c.b16 %v387, %v383
    %v492 = vpack.c.b16 %v392, %v388
    %v493 = vpack.c.b16 %v393, %v389
    %v494 = vpack.c.b16 %v394, %v390
    %v495 = vpack.c.b16 %v395, %v391
    %v496 = vpack.c.b16 %v400, %v396
    %v497 = vpack.c.b16 %v401, %v397
    %v498 = vpack.c.b16 %v402, %v398
    %v499 = vpack.c.b16 %v403, %v399
    %v500 = vpack.c.b16 %v408, %v404
    %v501 = vpack.c.b16 %v409, %v405
    %v502 = vpack.c.b16 %v410, %v406
    %v503 = vpack.c.b16 %v411, %v407
    %v504 = vpack.c.b16 %v416, %v412
    %v505 = vpack.c.b16 %v417, %v413
    %v506 = vpack.c.b16 %v418, %v414
    %v507 = vpack.c.b16 %v419, %v415
    %v508 = vpack.c.b16 %v424, %v420
    %v509 = vpack.c.b16 %v425, %v421
    %v510 = vpack.c.b16 %v426, %v422
    %v511 = vpack.c.b16 %v427, %v423
    %v512 = vpack.c.b16 %v432, %v428
    %v513 = vpack.c.b16 %v433, %v429
    %v514 = vpack.c.b16 %v434, %v430
    %v515 = vpack.c.b16 %v435, %v431
    %v516 = vpack.c.b16 %v440, %v436
    %v517 = vpack.c.b16 %v441, %v437
    %v518 = vpack.c.b16 %v442, %v438
    %v519 = vpack.c.b16 %v443, %v439
    %v520 = vpack.c.b16 %v448, %v444
    %v521 = vpack.c.b16 %v449, %v445
    %v522 = vpack.c.b16 %v450, %v446
    %v523 = vpack.c.b16 %v451, %v447
    %v524 = vpack.c.b16 %v456, %v452
    %v525 = vpack.c.b16 %v457, %v453
    %v526 = vpack.c.b16 %v458, %v454
    %v527 = vpack.c.b16 %v459, %v455
    %v528 = vpack.c.b16 %v464, %v460
    %v529 = vpack.c.b16 %v465, %v461
    %v530 = vpack.c.b16 %v466, %v462
    %v531 = vpack.c.b16 %v467, %v463
    %596 = vmatprep.subr.bf16.mxu0 %v497
    %597 = vmatpush1.bf16.msra.mxu0 %v496
    %598 = vmatprep.subr.bf16.mxu0 %v493
    %599 = vmatpush1.bf16.msra.mxu0 %v492
    %600 = vmatprep.subr.bf16.mxu0 %v489
    %601 = vmatpush1.bf16.msra.mxu0 %v488
    %602 = vmatprep.subr.bf16.mxu0 %v485
    %603 = vmatpush1.bf16.msra.mxu0 %v484
    %604 = vmatprep.subr.bf16.mxu0 %v481
    %605 = vmatpush1.bf16.msra.mxu0 %v480
    %606 = vmatprep.subr.bf16.mxu0 %v477
    %607 = vmatpush1.bf16.msra.mxu0 %v476
    %608 = vmatprep.subr.bf16.mxu0 %v473
    %609 = vmatpush1.bf16.msra.mxu0 %v472
    %610 = vmatprep.subr.bf16.mxu0 %v469
    %611 = vmatpush1.bf16.msra.mxu0 %v468
    %612 = vmatprep.subr.bf16.mxu0 %v529
    %613 = vmatpush2.bf16.msra.mxu0 %v528
    %614 = vmatprep.subr.bf16.mxu0 %v525
    %615 = vmatpush2.bf16.msra.mxu0 %v524
    %616 = vmatprep.subr.bf16.mxu0 %v521
    %617 = vmatpush2.bf16.msra.mxu0 %v520
    %618 = vmatprep.subr.bf16.mxu0 %v517
    %619 = vmatpush2.bf16.msra.mxu0 %v516
    %620 = vmatprep.subr.bf16.mxu0 %v513
    %621 = vmatpush2.bf16.msra.mxu0 %v512
    %622 = vmatprep.subr.bf16.mxu0 %v509
    %623 = vmatpush2.bf16.msra.mxu0 %v508
    %624 = vmatprep.subr.bf16.mxu0 %v505
    %625 = vmatpush2.bf16.msra.mxu0 %v504
    %626 = vmatprep.subr.bf16.mxu0 %v501
    %627 = vmatpush2.bf16.msra.mxu0 %v500
    %628 = vmatprep.mubr.bf16.mxu0 %v269
    %629 = vmatmul.mubr.bf16.gmra.mxu0 %v268
    %v630 = vpop.f32.mrf.mxu0
    %v631 = vadd.f32 0.0, %v630
    %v632 = vpop.f32.mrf.mxu0
    %v633 = vadd.f32 0.0, %v632
    %v634 = vpop.f32.mrf.mxu0
    %v635 = vadd.f32 0.0, %v634
    %v636 = vpop.f32.mrf.mxu0
    %v637 = vadd.f32 0.0, %v636
    %638 = vmatprep.mubr.bf16.mxu0 %v271
    %639 = vmatmul.mubr.bf16.gmra.mxu0 %v270
    %v640 = vpop.f32.mrf.mxu0
    %v641 = vadd.f32 0.0, %v640
    %v642 = vpop.f32.mrf.mxu0
    %v643 = vadd.f32 0.0, %v642
    %v644 = vpop.f32.mrf.mxu0
    %v645 = vadd.f32 0.0, %v644
    %v646 = vpop.f32.mrf.mxu0
    %v647 = vadd.f32 0.0, %v646
    %648 = vdwg.mxu0
    %649 = vmatprep.subr.bf16.mxu0 %v499
    %650 = vmatpush1.bf16.msra.mxu0 %v498
    %651 = vmatprep.subr.bf16.mxu0 %v495
    %652 = vmatpush1.bf16.msra.mxu0 %v494
    %653 = vmatprep.subr.bf16.mxu0 %v491
    %654 = vmatpush1.bf16.msra.mxu0 %v490
    %655 = vmatprep.subr.bf16.mxu0 %v487
    %656 = vmatpush1.bf16.msra.mxu0 %v486
    %657 = vmatprep.subr.bf16.mxu0 %v483
    %658 = vmatpush1.bf16.msra.mxu0 %v482
    %659 = vmatprep.subr.bf16.mxu0 %v479
    %660 = vmatpush1.bf16.msra.mxu0 %v478
    %661 = vmatprep.subr.bf16.mxu0 %v475
    %662 = vmatpush1.bf16.msra.mxu0 %v474
    %663 = vmatprep.subr.bf16.mxu0 %v471
    %664 = vmatpush1.bf16.msra.mxu0 %v470
    %665 = vmatprep.subr.bf16.mxu0 %v531
    %666 = vmatpush2.bf16.msra.mxu0 %v530
    %667 = vmatprep.subr.bf16.mxu0 %v527
    %668 = vmatpush2.bf16.msra.mxu0 %v526
    %669 = vmatprep.subr.bf16.mxu0 %v523
    %670 = vmatpush2.bf16.msra.mxu0 %v522
    %671 = vmatprep.subr.bf16.mxu0 %v519
    %672 = vmatpush2.bf16.msra.mxu0 %v518
    %673 = vmatprep.subr.bf16.mxu0 %v515
    %674 = vmatpush2.bf16.msra.mxu0 %v514
    %675 = vmatprep.subr.bf16.mxu0 %v511
    %676 = vmatpush2.bf16.msra.mxu0 %v510
    %677 = vmatprep.subr.bf16.mxu0 %v507
    %678 = vmatpush2.bf16.msra.mxu0 %v506
    %679 = vmatprep.subr.bf16.mxu0 %v503
    %680 = vmatpush2.bf16.msra.mxu0 %v502
    %681 = vmatprep.mubr.bf16.mxu0 %v269
    %682 = vmatmul.mubr.bf16.gmra.mxu0 %v268
    %v683 = vpop.f32.mrf.mxu0
    %v684 = vadd.f32 0.0, %v683
    %v685 = vpop.f32.mrf.mxu0
    %v686 = vadd.f32 0.0, %v685
    %v687 = vpop.f32.mrf.mxu0
    %v688 = vadd.f32 0.0, %v687
    %v689 = vpop.f32.mrf.mxu0
    %v690 = vadd.f32 0.0, %v689
    %691 = vmatprep.mubr.bf16.mxu0 %v271
    %692 = vmatmul.mubr.bf16.gmra.mxu0 %v270
    %v693 = vpop.f32.mrf.mxu0
    %v694 = vadd.f32 0.0, %v693
    %v695 = vpop.f32.mrf.mxu0
    %v696 = vadd.f32 0.0, %v695
    %v697 = vpop.f32.mrf.mxu0
    %v698 = vadd.f32 0.0, %v697
    %v699 = vpop.f32.mrf.mxu0
    %v700 = vadd.f32 0.0, %v699
    %701 = vdwg.mxu0
    %v702 = vld [vmem:[%s2] sm:$0xff]
    %v703 = vld [vmem:[%s2 + $0x8] sm:$0xff]
    %v706 = vcombine.high %v702, %v702
    %v707 = vcombine.high %v703, %v703
    %v710 = vadd.f32 %v631, %v702
    %v711 = vadd.f32 %v633, %v706
    %v712 = vadd.f32 %v684, %v703
    %v713 = vadd.f32 %v686, %v707
    %v714 = vcombine.low %v702, %v702
    %v715 = vcombine.low %v703, %v703
    %v718 = vadd.f32 %v631, %v714
    %v719 = vadd.f32 %v633, %v702
    %v720 = vadd.f32 %v684, %v715
    %v721 = vadd.f32 %v686, %v703
    %v722 = vadd.f32 %v635, %v702
    %v723 = vadd.f32 %v637, %v706
    %v724 = vadd.f32 %v688, %v703
    %v725 = vadd.f32 %v690, %v707
    %v726 = vadd.f32 %v635, %v714
    %v727 = vadd.f32 %v637, %v702
    %v728 = vadd.f32 %v688, %v715
    %v729 = vadd.f32 %v690, %v703
    %v730 = vadd.f32 %v641, %v702
    %v731 = vadd.f32 %v643, %v706
    %v732 = vadd.f32 %v694, %v703
    %v733 = vadd.f32 %v696, %v707
    %v734 = vadd.f32 %v641, %v714
    %v735 = vadd.f32 %v643, %v702
    %v736 = vadd.f32 %v694, %v715
    %v737 = vadd.f32 %v696, %v703
    %v738 = vadd.f32 %v645, %v702
    %v739 = vadd.f32 %v647, %v706
    %v740 = vadd.f32 %v698, %v703
    %v741 = vadd.f32 %v700, %v707
    %v742 = vadd.f32 %v645, %v714
    %v743 = vadd.f32 %v647, %v702
    %v744 = vadd.f32 %v698, %v715
    %v745 = vadd.f32 %v700, %v703
    %v746 = vld [vmem:[#allocation9] sm:$0xff]
    %v747 = vld [vmem:[#allocation9 + $0x8] sm:$0xff]
    %v748 = vld [vmem:[#allocation9 + $0x10] sm:$0xff]
    %v749 = vld [vmem:[#allocation9 + $0x18] sm:$0xff]
    %v750 = vld [vmem:[#allocation9 + $0x20] sm:$0xff]
    %v751 = vld [vmem:[#allocation9 + $0x28] sm:$0xff]
    %v752 = vld [vmem:[#allocation9 + $0x30] sm:$0xff]
    %v753 = vld [vmem:[#allocation9 + $0x38] sm:$0xff]
    %v754 = vld [vmem:[#allocation9 + $0x40] sm:$0xff]
    %v755 = vld [vmem:[#allocation9 + $0x48] sm:$0xff]
    %v756 = vld [vmem:[#allocation9 + $0x50] sm:$0xff]
    %v757 = vld [vmem:[#allocation9 + $0x58] sm:$0xff]
    %v758 = vld [vmem:[#allocation9 + $0x60] sm:$0xff]
    %v759 = vld [vmem:[#allocation9 + $0x68] sm:$0xff]
    %v760 = vld [vmem:[#allocation9 + $0x70] sm:$0xff]
    %v761 = vld [vmem:[#allocation9 + $0x78] sm:$0xff]
    %v762 = vld [vmem:[#allocation9 + $0x80] sm:$0xff]
    %v763 = vld [vmem:[#allocation9 + $0x88] sm:$0xff]
    %v764 = vld [vmem:[#allocation9 + $0x90] sm:$0xff]
    %v765 = vld [vmem:[#allocation9 + $0x98] sm:$0xff]
    %v766 = vld [vmem:[#allocation9 + $0xa0] sm:$0xff]
    %v767 = vld [vmem:[#allocation9 + $0xa8] sm:$0xff]
    %v768 = vld [vmem:[#allocation9 + $0xb0] sm:$0xff]
    %v769 = vld [vmem:[#allocation9 + $0xb8] sm:$0xff]
    %v770 = vld [vmem:[#allocation9 + $0xc0] sm:$0xff]
    %v771 = vld [vmem:[#allocation9 + $0xc8] sm:$0xff]
    %v772 = vld [vmem:[#allocation9 + $0xd0] sm:$0xff]
    %v773 = vld [vmem:[#allocation9 + $0xd8] sm:$0xff]
    %v774 = vld [vmem:[#allocation9 + $0xe0] sm:$0xff]
    %v775 = vld [vmem:[#allocation9 + $0xe8] sm:$0xff]
    %v776 = vld [vmem:[#allocation9 + $0xf0] sm:$0xff]
    %v777 = vld [vmem:[#allocation9 + $0xf8] sm:$0xff]
    %v778 = vld [vmem:[#allocation9 + $0x100] sm:$0xff]
    %v779 = vld [vmem:[#allocation9 + $0x108] sm:$0xff]
    %v780 = vld [vmem:[#allocation9 + $0x110] sm:$0xff]
    %v781 = vld [vmem:[#allocation9 + $0x118] sm:$0xff]
    %v782 = vld [vmem:[#allocation9 + $0x120] sm:$0xff]
    %v783 = vld [vmem:[#allocation9 + $0x128] sm:$0xff]
    %v784 = vld [vmem:[#allocation9 + $0x130] sm:$0xff]
    %v785 = vld [vmem:[#allocation9 + $0x138] sm:$0xff]
    %v786 = vld [vmem:[#allocation9 + $0x140] sm:$0xff]
    %v787 = vld [vmem:[#allocation9 + $0x148] sm:$0xff]
    %v788 = vld [vmem:[#allocation9 + $0x150] sm:$0xff]
    %v789 = vld [vmem:[#allocation9 + $0x158] sm:$0xff]
    %v790 = vld [vmem:[#allocation9 + $0x160] sm:$0xff]
    %v791 = vld [vmem:[#allocation9 + $0x168] sm:$0xff]
    %v792 = vld [vmem:[#allocation9 + $0x170] sm:$0xff]
    %v793 = vld [vmem:[#allocation9 + $0x178] sm:$0xff]
    %v794 = vld [vmem:[#allocation9 + $0x180] sm:$0xff]
    %v795 = vld [vmem:[#allocation9 + $0x188] sm:$0xff]
    %v796 = vld [vmem:[#allocation9 + $0x190] sm:$0xff]
    %v797 = vld [vmem:[#allocation9 + $0x198] sm:$0xff]
    %v798 = vld [vmem:[#allocation9 + $0x1a0] sm:$0xff]
    %v799 = vld [vmem:[#allocation9 + $0x1a8] sm:$0xff]
    %v800 = vld [vmem:[#allocation9 + $0x1b0] sm:$0xff]
    %v801 = vld [vmem:[#allocation9 + $0x1b8] sm:$0xff]
    %v802 = vld [vmem:[#allocation9 + $0x1c0] sm:$0xff]
    %v803 = vld [vmem:[#allocation9 + $0x1c8] sm:$0xff]
    %v804 = vld [vmem:[#allocation9 + $0x1d0] sm:$0xff]
    %v805 = vld [vmem:[#allocation9 + $0x1d8] sm:$0xff]
    %v806 = vld [vmem:[#allocation9 + $0x1e0] sm:$0xff]
    %v807 = vld [vmem:[#allocation9 + $0x1e8] sm:$0xff]
    %v808 = vld [vmem:[#allocation9 + $0x1f0] sm:$0xff]
    %v809 = vld [vmem:[#allocation9 + $0x1f8] sm:$0xff]
    %v810 = vlaneseq
    %v811 = vshrl.u32 %v810, 7
    %v812 = vlaneseq
    %v813 = vand.u32 %v812, 127
    %v814 = vadd.s32 %v813, 128
    %vm815 = vcmp.lt.s32.totalorder %v811, 2
    %vm816 = vcmp.lt.s32.totalorder %v813, 128
    %vm817 = vcmp.lt.s32.totalorder %v814, 128
    %vm818 = vmxor %vm815, %vm816
    %vm819 = vmxor %vm815, %vm817
    %vm820 = vmxor %vm818, 1
    %vm821 = vmxor %vm819, 1
    %v822 = vsel %vm820, 1, 0
    %v823 = vsel %vm821, 1, 0
    %v824 = vcvt.s32.f32 %v822
    %v825 = vcvt.s32.f32 %v823
    %v890 = vunpack.c.l.b16 %v746
    %v891 = vunpack.c.h.b16 %v746
    %v892 = vunpack.c.l.b16 %v747
    %v893 = vunpack.c.h.b16 %v747
    %v894 = vunpack.c.l.b16 %v748
    %v895 = vunpack.c.h.b16 %v748
    %v896 = vunpack.c.l.b16 %v749
    %v897 = vunpack.c.h.b16 %v749
    %v898 = vunpack.c.l.b16 %v750
    %v899 = vunpack.c.h.b16 %v750
    %v900 = vunpack.c.l.b16 %v751
    %v901 = vunpack.c.h.b16 %v751
    %v902 = vunpack.c.l.b16 %v752
    %v903 = vunpack.c.h.b16 %v752
    %v904 = vunpack.c.l.b16 %v753
    %v905 = vunpack.c.h.b16 %v753
    %v906 = vunpack.c.l.b16 %v754
    %v907 = vunpack.c.h.b16 %v754
    %v908 = vunpack.c.l.b16 %v755
    %v909 = vunpack.c.h.b16 %v755
    %v910 = vunpack.c.l.b16 %v756
    %v911 = vunpack.c.h.b16 %v756
    %v912 = vunpack.c.l.b16 %v757
    %v913 = vunpack.c.h.b16 %v757
    %v914 = vunpack.c.l.b16 %v758
    %v915 = vunpack.c.h.b16 %v758
    %v916 = vunpack.c.l.b16 %v759
    %v917 = vunpack.c.h.b16 %v759
    %v918 = vunpack.c.l.b16 %v760
    %v919 = vunpack.c.h.b16 %v760
    %v920 = vunpack.c.l.b16 %v761
    %v921 = vunpack.c.h.b16 %v761
    %v922 = vunpack.c.l.b16 %v762
    %v923 = vunpack.c.h.b16 %v762
    %v924 = vunpack.c.l.b16 %v763
    %v925 = vunpack.c.h.b16 %v763
    %v926 = vunpack.c.l.b16 %v764
    %v927 = vunpack.c.h.b16 %v764
    %v928 = vunpack.c.l.b16 %v765
    %v929 = vunpack.c.h.b16 %v765
    %v930 = vunpack.c.l.b16 %v766
    %v931 = vunpack.c.h.b16 %v766
    %v932 = vunpack.c.l.b16 %v767
    %v933 = vunpack.c.h.b16 %v767
    %v934 = vunpack.c.l.b16 %v768
    %v935 = vunpack.c.h.b16 %v768
    %v936 = vunpack.c.l.b16 %v769
    %v937 = vunpack.c.h.b16 %v769
    %v938 = vunpack.c.l.b16 %v770
    %v939 = vunpack.c.h.b16 %v770
    %v940 = vunpack.c.l.b16 %v771
    %v941 = vunpack.c.h.b16 %v771
    %v942 = vunpack.c.l.b16 %v772
    %v943 = vunpack.c.h.b16 %v772
    %v944 = vunpack.c.l.b16 %v773
    %v945 = vunpack.c.h.b16 %v773
    %v946 = vunpack.c.l.b16 %v774
    %v947 = vunpack.c.h.b16 %v774
    %v948 = vunpack.c.l.b16 %v775
    %v949 = vunpack.c.h.b16 %v775
    %v950 = vunpack.c.l.b16 %v776
    %v951 = vunpack.c.h.b16 %v776
    %v952 = vunpack.c.l.b16 %v777
    %v953 = vunpack.c.h.b16 %v777
    %v954 = vunpack.c.l.b16 %v778
    %v955 = vunpack.c.h.b16 %v778
    %v956 = vunpack.c.l.b16 %v779
    %v957 = vunpack.c.h.b16 %v779
    %v958 = vunpack.c.l.b16 %v780
    %v959 = vunpack.c.h.b16 %v780
    %v960 = vunpack.c.l.b16 %v781
    %v961 = vunpack.c.h.b16 %v781
    %v962 = vunpack.c.l.b16 %v782
    %v963 = vunpack.c.h.b16 %v782
    %v964 = vunpack.c.l.b16 %v783
    %v965 = vunpack.c.h.b16 %v783
    %v966 = vunpack.c.l.b16 %v784
    %v967 = vunpack.c.h.b16 %v784
    %v968 = vunpack.c.l.b16 %v785
    %v969 = vunpack.c.h.b16 %v785
    %v970 = vunpack.c.l.b16 %v786
    %v971 = vunpack.c.h.b16 %v786
    %v972 = vunpack.c.l.b16 %v787
    %v973 = vunpack.c.h.b16 %v787
    %v974 = vunpack.c.l.b16 %v788
    %v975 = vunpack.c.h.b16 %v788
    %v976 = vunpack.c.l.b16 %v789
    %v977 = vunpack.c.h.b16 %v789
    %v978 = vunpack.c.l.b16 %v790
    %v979 = vunpack.c.h.b16 %v790
    %v980 = vunpack.c.l.b16 %v791
    %v981 = vunpack.c.h.b16 %v791
    %v982 = vunpack.c.l.b16 %v792
    %v983 = vunpack.c.h.b16 %v792
    %v984 = vunpack.c.l.b16 %v793
    %v985 = vunpack.c.h.b16 %v793
    %v986 = vunpack.c.l.b16 %v794
    %v987 = vunpack.c.h.b16 %v794
    %v988 = vunpack.c.l.b16 %v795
    %v989 = vunpack.c.h.b16 %v795
    %v990 = vunpack.c.l.b16 %v796
    %v991 = vunpack.c.h.b16 %v796
    %v992 = vunpack.c.l.b16 %v797
    %v993 = vunpack.c.h.b16 %v797
    %v994 = vunpack.c.l.b16 %v798
    %v995 = vunpack.c.h.b16 %v798
    %v996 = vunpack.c.l.b16 %v799
    %v997 = vunpack.c.h.b16 %v799
    %v998 = vunpack.c.l.b16 %v800
    %v999 = vunpack.c.h.b16 %v800
    %v1000 = vunpack.c.l.b16 %v801
    %v1001 = vunpack.c.h.b16 %v801
    %v1002 = vunpack.c.l.b16 %v802
    %v1003 = vunpack.c.h.b16 %v802
    %v1004 = vunpack.c.l.b16 %v803
    %v1005 = vunpack.c.h.b16 %v803
    %v1006 = vunpack.c.l.b16 %v804
    %v1007 = vunpack.c.h.b16 %v804
    %v1008 = vunpack.c.l.b16 %v805
    %v1009 = vunpack.c.h.b16 %v805
    %v1010 = vunpack.c.l.b16 %v806
    %v1011 = vunpack.c.h.b16 %v806
    %v1012 = vunpack.c.l.b16 %v807
    %v1013 = vunpack.c.h.b16 %v807
    %v1014 = vunpack.c.l.b16 %v808
    %v1015 = vunpack.c.h.b16 %v808
    %v1016 = vunpack.c.l.b16 %v809
    %v1017 = vunpack.c.h.b16 %v809
    %v1018 = vpack.c.b16 %v894, %v890
    %v1019 = vpack.c.b16 %v895, %v891
    %v1020 = vpack.c.b16 %v896, %v892
    %v1021 = vpack.c.b16 %v897, %v893
    %v1022 = vpack.c.b16 %v902, %v898
    %v1023 = vpack.c.b16 %v903, %v899
    %v1024 = vpack.c.b16 %v904, %v900
    %v1025 = vpack.c.b16 %v905, %v901
    %v1026 = vpack.c.b16 %v910, %v906
    %v1027 = vpack.c.b16 %v911, %v907
    %v1028 = vpack.c.b16 %v912, %v908
    %v1029 = vpack.c.b16 %v913, %v909
    %v1030 = vpack.c.b16 %v918, %v914
    %v1031 = vpack.c.b16 %v919, %v915
    %v1032 = vpack.c.b16 %v920, %v916
    %v1033 = vpack.c.b16 %v921, %v917
    %v1034 = vpack.c.b16 %v926, %v922
    %v1035 = vpack.c.b16 %v927, %v923
    %v1036 = vpack.c.b16 %v928, %v924
    %v1037 = vpack.c.b16 %v929, %v925
    %v1038 = vpack.c.b16 %v934, %v930
    %v1039 = vpack.c.b16 %v935, %v931
    %v1040 = vpack.c.b16 %v936, %v932
    %v1041 = vpack.c.b16 %v937, %v933
    %v1042 = vpack.c.b16 %v942, %v938
    %v1043 = vpack.c.b16 %v943, %v939
    %v1044 = vpack.c.b16 %v944, %v940
    %v1045 = vpack.c.b16 %v945, %v941
    %v1046 = vpack.c.b16 %v950, %v946
    %v1047 = vpack.c.b16 %v951, %v947
    %v1048 = vpack.c.b16 %v952, %v948
    %v1049 = vpack.c.b16 %v953, %v949
    %v1050 = vpack.c.b16 %v958, %v954
    %v1051 = vpack.c.b16 %v959, %v955
    %v1052 = vpack.c.b16 %v960, %v956
    %v1053 = vpack.c.b16 %v961, %v957
    %v1054 = vpack.c.b16 %v966, %v962
    %v1055 = vpack.c.b16 %v967, %v963
    %v1056 = vpack.c.b16 %v968, %v964
    %v1057 = vpack.c.b16 %v969, %v965
    %v1058 = vpack.c.b16 %v974, %v970
    %v1059 = vpack.c.b16 %v975, %v971
    %v1060 = vpack.c.b16 %v976, %v972
    %v1061 = vpack.c.b16 %v977, %v973
    %v1062 = vpack.c.b16 %v982, %v978
    %v1063 = vpack.c.b16 %v983, %v979
    %v1064 = vpack.c.b16 %v984, %v980
    %v1065 = vpack.c.b16 %v985, %v981
    %v1066 = vpack.c.b16 %v990, %v986
    %v1067 = vpack.c.b16 %v991, %v987
    %v1068 = vpack.c.b16 %v992, %v988
    %v1069 = vpack.c.b16 %v993, %v989
    %v1070 = vpack.c.b16 %v998, %v994
    %v1071 = vpack.c.b16 %v999, %v995
    %v1072 = vpack.c.b16 %v1000, %v996
    %v1073 = vpack.c.b16 %v1001, %v997
    %v1074 = vpack.c.b16 %v1006, %v1002
    %v1075 = vpack.c.b16 %v1007, %v1003
    %v1076 = vpack.c.b16 %v1008, %v1004
    %v1077 = vpack.c.b16 %v1009, %v1005
    %v1078 = vpack.c.b16 %v1014, %v1010
    %v1079 = vpack.c.b16 %v1015, %v1011
    %v1080 = vpack.c.b16 %v1016, %v1012
    %v1081 = vpack.c.b16 %v1017, %v1013
    %1146 = vmatprep.subr.bf16.mxu0 %v1047
    %1147 = vmatpush1.bf16.msra.mxu0 %v1046
    %1148 = vmatprep.subr.bf16.mxu0 %v1043
    %1149 = vmatpush1.bf16.msra.mxu0 %v1042
    %1150 = vmatprep.subr.bf16.mxu0 %v1039
    %1151 = vmatpush1.bf16.msra.mxu0 %v1038
    %1152 = vmatprep.subr.bf16.mxu0 %v1035
    %1153 = vmatpush1.bf16.msra.mxu0 %v1034
    %1154 = vmatprep.subr.bf16.mxu0 %v1031
    %1155 = vmatpush1.bf16.msra.mxu0 %v1030
    %1156 = vmatprep.subr.bf16.mxu0 %v1027
    %1157 = vmatpush1.bf16.msra.mxu0 %v1026
    %1158 = vmatprep.subr.bf16.mxu0 %v1023
    %1159 = vmatpush1.bf16.msra.mxu0 %v1022
    %1160 = vmatprep.subr.bf16.mxu0 %v1019
    %1161 = vmatpush1.bf16.msra.mxu0 %v1018
    %1162 = vmatprep.subr.bf16.mxu0 %v1079
    %1163 = vmatpush2.bf16.msra.mxu0 %v1078
    %1164 = vmatprep.subr.bf16.mxu0 %v1075
    %1165 = vmatpush2.bf16.msra.mxu0 %v1074
    %1166 = vmatprep.subr.bf16.mxu0 %v1071
    %1167 = vmatpush2.bf16.msra.mxu0 %v1070
    %1168 = vmatprep.subr.bf16.mxu0 %v1067
    %1169 = vmatpush2.bf16.msra.mxu0 %v1066
    %1170 = vmatprep.subr.bf16.mxu0 %v1063
    %1171 = vmatpush2.bf16.msra.mxu0 %v1062
    %1172 = vmatprep.subr.bf16.mxu0 %v1059
    %1173 = vmatpush2.bf16.msra.mxu0 %v1058
    %1174 = vmatprep.subr.bf16.mxu0 %v1055
    %1175 = vmatpush2.bf16.msra.mxu0 %v1054
    %1176 = vmatprep.subr.bf16.mxu0 %v1051
    %1177 = vmatpush2.bf16.msra.mxu0 %v1050
    %1178 = vmatprep.mubr.bf16.mxu0 0
    %1179 = vmatmul.mubr.bf16.gmra.mxu0 0
    %v1180 = vpop.f32.mrf.mxu0
    %v1181 = vadd.f32 0.0, %v1180
    %v1182 = vpop.f32.mrf.mxu0
    %v1183 = vadd.f32 0.0, %v1182
    %v1184 = vpop.f32.mrf.mxu0
    %v1185 = vpop.f32.mrf.mxu0
    %1186 = vdwg.mxu0
    %1187 = vmatprep.subr.bf16.mxu0 %v1049
    %1188 = vmatpush1.bf16.msra.mxu0 %v1048
    %1189 = vmatprep.subr.bf16.mxu0 %v1045
    %1190 = vmatpush1.bf16.msra.mxu0 %v1044
    %1191 = vmatprep.subr.bf16.mxu0 %v1041
    %1192 = vmatpush1.bf16.msra.mxu0 %v1040
    %1193 = vmatprep.subr.bf16.mxu0 %v1037
    %1194 = vmatpush1.bf16.msra.mxu0 %v1036
    %1195 = vmatprep.subr.bf16.mxu0 %v1033
    %1196 = vmatpush1.bf16.msra.mxu0 %v1032
    %1197 = vmatprep.subr.bf16.mxu0 %v1029
    %1198 = vmatpush1.bf16.msra.mxu0 %v1028
    %1199 = vmatprep.subr.bf16.mxu0 %v1025
    %1200 = vmatpush1.bf16.msra.mxu0 %v1024
    %1201 = vmatprep.subr.bf16.mxu0 %v1021
    %1202 = vmatpush1.bf16.msra.mxu0 %v1020
    %1203 = vmatprep.subr.bf16.mxu0 %v1081
    %1204 = vmatpush2.bf16.msra.mxu0 %v1080
    %1205 = vmatprep.subr.bf16.mxu0 %v1077
    %1206 = vmatpush2.bf16.msra.mxu0 %v1076
    %1207 = vmatprep.subr.bf16.mxu0 %v1073
    %1208 = vmatpush2.bf16.msra.mxu0 %v1072
    %1209 = vmatprep.subr.bf16.mxu0 %v1069
    %1210 = vmatpush2.bf16.msra.mxu0 %v1068
    %1211 = vmatprep.subr.bf16.mxu0 %v1065
    %1212 = vmatpush2.bf16.msra.mxu0 %v1064
    %1213 = vmatprep.subr.bf16.mxu0 %v1061
    %1214 = vmatpush2.bf16.msra.mxu0 %v1060
    %1215 = vmatprep.subr.bf16.mxu0 %v1057
    %1216 = vmatpush2.bf16.msra.mxu0 %v1056
    %1217 = vmatprep.subr.bf16.mxu0 %v1053
    %1218 = vmatpush2.bf16.msra.mxu0 %v1052
    %1219 = vmatprep.mubr.bf16.mxu0 0
    %1220 = vmatmul.mubr.bf16.gmra.mxu0 0
    %v1221 = vpop.f32.mrf.mxu0
    %v1222 = vadd.f32 0.0, %v1221
    %v1223 = vpop.f32.mrf.mxu0
    %v1224 = vadd.f32 0.0, %v1223
    %v1225 = vpop.f32.mrf.mxu0
    %v1226 = vpop.f32.mrf.mxu0
    %1227 = vdwg.mxu0
    %v1228 = vadd.f32 %v710, %v1181
    %v1229 = vadd.f32 %v711, %v1183
    %v1230 = vadd.f32 %v712, %v1222
    %v1231 = vadd.f32 %v713, %v1224
    %v1232 = vxor.u32 %v1228, 2147483648
    %v1233 = vxor.u32 %v1229, 2147483648
    %v1234 = vxor.u32 %v1230, 2147483648
    %v1235 = vmul.f32 %v1232, 1.442695
    %v1236 = vpow.pop %v1235
    %v1237 = vmul.f32 %v1233, 1.442695
    %v1238 = vpow.pop %v1237
    %v1239 = vmul.f32 %v1234, 1.442695
    %v1240 = vpow.pop %v1239
    %v1241 = vadd.f32 %v1236, 1.0
    %v1242 = vadd.f32 %v1238, 1.0
    %v1243 = vadd.f32 %v1240, 1.0
    %v1244 = vrcp.pop %v1241
    %v1245 = vmul.f32 1.0, %v1244
    %v1246 = vrcp.pop %v1242
    %v1247 = vmul.f32 1.0, %v1246
    %v1248 = vrcp.pop %v1243
    %v1249 = vmul.f32 1.0, %v1248
    %v1250 = vtanh.pop %v1231
    %v1251 = vmul.f32 %v1247, 0.0
    %v1252 = vmul.f32 %v1245, %v1250
    %v1253 = vadd.f32 %v1251, %v1252
    %v1254 = vtanh.pop %v1253
    %v1255 = vmul.f32 %v1249, %v1254
    %v1256 = vmul.f32 %v1255, %v824
    %v1257 = vmul.f32 %v1255, %v825
    %v1258 = vpack.c.bf16 %v1256, %v1256
    %v1259 = vpack.c.bf16 %v1257, %v1257
    %1260 = vmatprep.subr.bf16.mxu0 %v1047
    %1261 = vmatpush1.bf16.msra.mxu0 %v1046
    %1262 = vmatprep.subr.bf16.mxu0 %v1043
    %1263 = vmatpush1.bf16.msra.mxu0 %v1042
    %1264 = vmatprep.subr.bf16.mxu0 %v1039
    %1265 = vmatpush1.bf16.msra.mxu0 %v1038
    %1266 = vmatprep.subr.bf16.mxu0 %v1035
    %1267 = vmatpush1.bf16.msra.mxu0 %v1034
    %1268 = vmatprep.subr.bf16.mxu0 %v1031
    %1269 = vmatpush1.bf16.msra.mxu0 %v1030
    %1270 = vmatprep.subr.bf16.mxu0 %v1027
    %1271 = vmatpush1.bf16.msra.mxu0 %v1026
    %1272 = vmatprep.subr.bf16.mxu0 %v1023
    %1273 = vmatpush1.bf16.msra.mxu0 %v1022
    %1274 = vmatprep.subr.bf16.mxu0 %v1019
    %1275 = vmatpush1.bf16.msra.mxu0 %v1018
    %1276 = vmatprep.subr.bf16.mxu0 %v1079
    %1277 = vmatpush2.bf16.msra.mxu0 %v1078
    %1278 = vmatprep.subr.bf16.mxu0 %v1075
    %1279 = vmatpush2.bf16.msra.mxu0 %v1074
    %1280 = vmatprep.subr.bf16.mxu0 %v1071
    %1281 = vmatpush2.bf16.msra.mxu0 %v1070
    %1282 = vmatprep.subr.bf16.mxu0 %v1067
    %1283 = vmatpush2.bf16.msra.mxu0 %v1066
    %1284 = vmatprep.subr.bf16.mxu0 %v1063
    %1285 = vmatpush2.bf16.msra.mxu0 %v1062
    %1286 = vmatprep.subr.bf16.mxu0 %v1059
    %1287 = vmatpush2.bf16.msra.mxu0 %v1058
    %1288 = vmatprep.subr.bf16.mxu0 %v1055
    %1289 = vmatpush2.bf16.msra.mxu0 %v1054
    %1290 = vmatprep.subr.bf16.mxu0 %v1051
    %1291 = vmatpush2.bf16.msra.mxu0 %v1050
    %1292 = vmatprep.mubr.bf16.mxu0 %v1259
    %1293 = vmatmul.mubr.bf16.gmra.mxu0 %v1258
    %v1294 = vpop.f32.mrf.mxu0
    %v1295 = vadd.f32 0.0, %v1294
    %v1296 = vpop.f32.mrf.mxu0
    %v1297 = vadd.f32 0.0, %v1296
    %v1298 = vpop.f32.mrf.mxu0
    %v1299 = vpop.f32.mrf.mxu0
    %1300 = vdwg.mxu0
    %1301 = vmatprep.subr.bf16.mxu0 %v1049
    %1302 = vmatpush1.bf16.msra.mxu0 %v1048
    %1303 = vmatprep.subr.bf16.mxu0 %v1045
    %1304 = vmatpush1.bf16.msra.mxu0 %v1044
    %1305 = vmatprep.subr.bf16.mxu0 %v1041
    %1306 = vmatpush1.bf16.msra.mxu0 %v1040
    %1307 = vmatprep.subr.bf16.mxu0 %v1037
    %1308 = vmatpush1.bf16.msra.mxu0 %v1036
    %1309 = vmatprep.subr.bf16.mxu0 %v1033
    %1310 = vmatpush1.bf16.msra.mxu0 %v1032
    %1311 = vmatprep.subr.bf16.mxu0 %v1029
    %1312 = vmatpush1.bf16.msra.mxu0 %v1028
    %1313 = vmatprep.subr.bf16.mxu0 %v1025
    %1314 = vmatpush1.bf16.msra.mxu0 %v1024
    %1315 = vmatprep.subr.bf16.mxu0 %v1021
    %1316 = vmatpush1.bf16.msra.mxu0 %v1020
    %1317 = vmatprep.subr.bf16.mxu0 %v1081
    %1318 = vmatpush2.bf16.msra.mxu0 %v1080
    %1319 = vmatprep.subr.bf16.mxu0 %v1077
    %1320 = vmatpush2.bf16.msra.mxu0 %v1076
    %1321 = vmatprep.subr.bf16.mxu0 %v1073
    %1322 = vmatpush2.bf16.msra.mxu0 %v1072
    %1323 = vmatprep.subr.bf16.mxu0 %v1069
    %1324 = vmatpush2.bf16.msra.mxu0 %v1068
    %1325 = vmatprep.subr.bf16.mxu0 %v1065
    %1326 = vmatpush2.bf16.msra.mxu0 %v1064
    %1327 = vmatprep.subr.bf16.mxu0 %v1061
    %1328 = vmatpush2.bf16.msra.mxu0 %v1060
    %1329 = vmatprep.subr.bf16.mxu0 %v1057
    %1330 = vmatpush2.bf16.msra.mxu0 %v1056
    %1331 = vmatprep.subr.bf16.mxu0 %v1053
    %1332 = vmatpush2.bf16.msra.mxu0 %v1052
    %1333 = vmatprep.mubr.bf16.mxu0 %v1259
    %1334 = vmatmul.mubr.bf16.gmra.mxu0 %v1258
    %v1335 = vpop.f32.mrf.mxu0
    %v1336 = vadd.f32 0.0, %v1335
    %v1337 = vpop.f32.mrf.mxu0
    %v1338 = vadd.f32 0.0, %v1337
    %v1339 = vpop.f32.mrf.mxu0
    %v1340 = vpop.f32.mrf.mxu0
    %1341 = vdwg.mxu0
    %v1346 = vrot.slane %v1295, 4
    %v1347 = vrot.slane %v1297, 4
    %v1348 = vrot.slane %v1336, 4
    %v1349 = vrot.slane %v1338, 4
    %v1354 = vadd.f32 %v718, %v1346
    %v1355 = vadd.f32 %v719, %v1347
    %v1356 = vadd.f32 %v720, %v1348
    %v1357 = vadd.f32 %v721, %v1349
    %v1358 = vxor.u32 %v1354, 2147483648
    %v1359 = vxor.u32 %v1355, 2147483648
    %v1360 = vxor.u32 %v1356, 2147483648
    %v1361 = vmul.f32 %v1358, 1.442695
    %v1362 = vpow.pop %v1361
    %v1363 = vmul.f32 %v1359, 1.442695
    %v1364 = vpow.pop %v1363
    %v1365 = vmul.f32 %v1360, 1.442695
    %v1366 = vpow.pop %v1365
    %v1367 = vadd.f32 %v1362, 1.0
    %v1368 = vadd.f32 %v1364, 1.0
    %v1369 = vadd.f32 %v1366, 1.0
    %v1370 = vrcp.pop %v1367
    %v1371 = vmul.f32 1.0, %v1370
    %v1372 = vrcp.pop %v1368
    %v1373 = vmul.f32 1.0, %v1372
    %v1374 = vrcp.pop %v1369
    %v1375 = vmul.f32 1.0, %v1374
    %v1376 = vtanh.pop %v1357
    %v1378 = vrot.slane %v1253, 4
    %v1380 = vmul.f32 %v1373, %v1378
    %v1381 = vmul.f32 %v1371, %v1376
    %v1382 = vadd.f32 %v1380, %v1381
    %v1383 = vtanh.pop %v1382
    %v1384 = vmul.f32 %v1375, %v1383
    %v1387 = vrot.slane %v824, 4
    %v1388 = vrot.slane %v825, 4
    %v1391 = vmul.f32 %v1384, %v1387
    %v1392 = vmul.f32 %v1384, %v1388
    %v1393 = vpack.c.bf16 %v1391, %v1391
    %v1394 = vpack.c.bf16 %v1392, %v1392
    %v1397 = vrot.slane %v1393, 2
    %v1398 = vrot.slane %v1394, 2
    %1401 = vmatprep.subr.bf16.mxu0 %v1047
    %1402 = vmatpush1.bf16.msra.mxu0 %v1046
    %1403 = vmatprep.subr.bf16.mxu0 %v1043
    %1404 = vmatpush1.bf16.msra.mxu0 %v1042
    %1405 = vmatprep.subr.bf16.mxu0 %v1039
    %1406 = vmatpush1.bf16.msra.mxu0 %v1038
    %1407 = vmatprep.subr.bf16.mxu0 %v1035
    %1408 = vmatpush1.bf16.msra.mxu0 %v1034
    %1409 = vmatprep.subr.bf16.mxu0 %v1031
    %1410 = vmatpush1.bf16.msra.mxu0 %v1030
    %1411 = vmatprep.subr.bf16.mxu0 %v1027
    %1412 = vmatpush1.bf16.msra.mxu0 %v1026
    %1413 = vmatprep.subr.bf16.mxu0 %v1023
    %1414 = vmatpush1.bf16.msra.mxu0 %v1022
    %1415 = vmatprep.subr.bf16.mxu0 %v1019
    %1416 = vmatpush1.bf16.msra.mxu0 %v1018
    %1417 = vmatprep.subr.bf16.mxu0 %v1079
    %1418 = vmatpush2.bf16.msra.mxu0 %v1078
    %1419 = vmatprep.subr.bf16.mxu0 %v1075
    %1420 = vmatpush2.bf16.msra.mxu0 %v1074
    %1421 = vmatprep.subr.bf16.mxu0 %v1071
    %1422 = vmatpush2.bf16.msra.mxu0 %v1070
    %1423 = vmatprep.subr.bf16.mxu0 %v1067
    %1424 = vmatpush2.bf16.msra.mxu0 %v1066
    %1425 = vmatprep.subr.bf16.mxu0 %v1063
    %1426 = vmatpush2.bf16.msra.mxu0 %v1062
    %1427 = vmatprep.subr.bf16.mxu0 %v1059
    %1428 = vmatpush2.bf16.msra.mxu0 %v1058
    %1429 = vmatprep.subr.bf16.mxu0 %v1055
    %1430 = vmatpush2.bf16.msra.mxu0 %v1054
    %1431 = vmatprep.subr.bf16.mxu0 %v1051
    %1432 = vmatpush2.bf16.msra.mxu0 %v1050
    %1433 = vmatprep.mubr.bf16.mxu0 %v1398
    %1434 = vmatmul.mubr.bf16.gmra.mxu0 %v1397
    %v1435 = vpop.f32.mrf.mxu0
    %v1436 = vadd.f32 0.0, %v1435
    %v1437 = vpop.f32.mrf.mxu0
    %v1438 = vadd.f32 0.0, %v1437
    %v1439 = vpop.f32.mrf.mxu0
    %v1440 = vpop.f32.mrf.mxu0
    %1441 = vdwg.mxu0
    %1442 = vmatprep.subr.bf16.mxu0 %v1049
    %1443 = vmatpush1.bf16.msra.mxu0 %v1048
    %1444 = vmatprep.subr.bf16.mxu0 %v1045
    %1445 = vmatpush1.bf16.msra.mxu0 %v1044
    %1446 = vmatprep.subr.bf16.mxu0 %v1041
    %1447 = vmatpush1.bf16.msra.mxu0 %v1040
    %1448 = vmatprep.subr.bf16.mxu0 %v1037
    %1449 = vmatpush1.bf16.msra.mxu0 %v1036
    %1450 = vmatprep.subr.bf16.mxu0 %v1033
    %1451 = vmatpush1.bf16.msra.mxu0 %v1032
    %1452 = vmatprep.subr.bf16.mxu0 %v1029
    %1453 = vmatpush1.bf16.msra.mxu0 %v1028
    %1454 = vmatprep.subr.bf16.mxu0 %v1025
    %1455 = vmatpush1.bf16.msra.mxu0 %v1024
    %1456 = vmatprep.subr.bf16.mxu0 %v1021
    %1457 = vmatpush1.bf16.msra.mxu0 %v1020
    %1458 = vmatprep.subr.bf16.mxu0 %v1081
    %1459 = vmatpush2.bf16.msra.mxu0 %v1080
    %1460 = vmatprep.subr.bf16.mxu0 %v1077
    %1461 = vmatpush2.bf16.msra.mxu0 %v1076
    %1462 = vmatprep.subr.bf16.mxu0 %v1073
    %1463 = vmatpush2.bf16.msra.mxu0 %v1072
    %1464 = vmatprep.subr.bf16.mxu0 %v1069
    %1465 = vmatpush2.bf16.msra.mxu0 %v1068
    %1466 = vmatprep.subr.bf16.mxu0 %v1065
    %1467 = vmatpush2.bf16.msra.mxu0 %v1064
    %1468 = vmatprep.subr.bf16.mxu0 %v1061
    %1469 = vmatpush2.bf16.msra.mxu0 %v1060
    %1470 = vmatprep.subr.bf16.mxu0 %v1057
    %1471 = vmatpush2.bf16.msra.mxu0 %v1056
    %1472 = vmatprep.subr.bf16.mxu0 %v1053
    %1473 = vmatpush2.bf16.msra.mxu0 %v1052
    %1474 = vmatprep.mubr.bf16.mxu0 %v1398
    %1475 = vmatmul.mubr.bf16.gmra.mxu0 %v1397
    %v1476 = vpop.f32.mrf.mxu0
    %v1477 = vadd.f32 0.0, %v1476
    %v1478 = vpop.f32.mrf.mxu0
    %v1479 = vadd.f32 0.0, %v1478
    %v1480 = vpop.f32.mrf.mxu0
    %v1481 = vpop.f32.mrf.mxu0
    %1482 = vdwg.mxu0
    %v1483 = vadd.f32 %v722, %v1436
    %v1484 = vadd.f32 %v723, %v1438
    %v1485 = vadd.f32 %v724, %v1477
    %v1486 = vadd.f32 %v725, %v1479
    %v1487 = vxor.u32 %v1483, 2147483648
    %v1488 = vxor.u32 %v1484, 2147483648
    %v1489 = vxor.u32 %v1485, 2147483648
    %v1490 = vmul.f32 %v1487, 1.442695
    %v1491 = vpow.pop %v1490
    %v1492 = vmul.f32 %v1488, 1.442695
    %v1493 = vpow.pop %v1492
    %v1494 = vmul.f32 %v1489, 1.442695
    %v1495 = vpow.pop %v1494
    %v1496 = vadd.f32 %v1491, 1.0
    %v1497 = vadd.f32 %v1493, 1.0
    %v1498 = vadd.f32 %v1495, 1.0
    %v1499 = vrcp.pop %v1496
    %v1500 = vmul.f32 1.0, %v1499
    %v1501 = vrcp.pop %v1497
    %v1502 = vmul.f32 1.0, %v1501
    %v1503 = vrcp.pop %v1498
    %v1504 = vmul.f32 1.0, %v1503
    %v1505 = vtanh.pop %v1486
    %v1507 = vrot.slane %v1382, 4
    %v1509 = vmul.f32 %v1502, %v1507
    %v1510 = vmul.f32 %v1500, %v1505
    %v1511 = vadd.f32 %v1509, %v1510
    %v1512 = vtanh.pop %v1511
    %v1513 = vmul.f32 %v1504, %v1512
    %v1514 = vmul.f32 %v1513, %v824
    %v1515 = vmul.f32 %v1513, %v825
    %v1516 = vpack.c.bf16 %v1514, %v1514
    %v1517 = vpack.c.bf16 %v1515, %v1515
    %1518 = vmatprep.subr.bf16.mxu0 %v1047
    %1519 = vmatpush1.bf16.msra.mxu0 %v1046
    %1520 = vmatprep.subr.bf16.mxu0 %v1043
    %1521 = vmatpush1.bf16.msra.mxu0 %v1042
    %1522 = vmatprep.subr.bf16.mxu0 %v1039
    %1523 = vmatpush1.bf16.msra.mxu0 %v1038
    %1524 = vmatprep.subr.bf16.mxu0 %v1035
    %1525 = vmatpush1.bf16.msra.mxu0 %v1034
    %1526 = vmatprep.subr.bf16.mxu0 %v1031
    %1527 = vmatpush1.bf16.msra.mxu0 %v1030
    %1528 = vmatprep.subr.bf16.mxu0 %v1027
    %1529 = vmatpush1.bf16.msra.mxu0 %v1026
    %1530 = vmatprep.subr.bf16.mxu0 %v1023
    %1531 = vmatpush1.bf16.msra.mxu0 %v1022
    %1532 = vmatprep.subr.bf16.mxu0 %v1019
    %1533 = vmatpush1.bf16.msra.mxu0 %v1018
    %1534 = vmatprep.subr.bf16.mxu0 %v1079
    %1535 = vmatpush2.bf16.msra.mxu0 %v1078
    %1536 = vmatprep.subr.bf16.mxu0 %v1075
    %1537 = vmatpush2.bf16.msra.mxu0 %v1074
    %1538 = vmatprep.subr.bf16.mxu0 %v1071
    %1539 = vmatpush2.bf16.msra.mxu0 %v1070
    %1540 = vmatprep.subr.bf16.mxu0 %v1067
    %1541 = vmatpush2.bf16.msra.mxu0 %v1066
    %1542 = vmatprep.subr.bf16.mxu0 %v1063
    %1543 = vmatpush2.bf16.msra.mxu0 %v1062
    %1544 = vmatprep.subr.bf16.mxu0 %v1059
    %1545 = vmatpush2.bf16.msra.mxu0 %v1058
    %1546 = vmatprep.subr.bf16.mxu0 %v1055
    %1547 = vmatpush2.bf16.msra.mxu0 %v1054
    %1548 = vmatprep.subr.bf16.mxu0 %v1051
    %1549 = vmatpush2.bf16.msra.mxu0 %v1050
    %1550 = vmatprep.mubr.bf16.mxu0 %v1517
    %1551 = vmatmul.mubr.bf16.gmra.mxu0 %v1516
    %v1552 = vpop.f32.mrf.mxu0
    %v1553 = vadd.f32 0.0, %v1552
    %v1554 = vpop.f32.mrf.mxu0
    %v1555 = vadd.f32 0.0, %v1554
    %v1556 = vpop.f32.mrf.mxu0
    %v1557 = vpop.f32.mrf.mxu0
    %1558 = vdwg.mxu0
    %1559 = vmatprep.subr.bf16.mxu0 %v1049
    %1560 = vmatpush1.bf16.msra.mxu0 %v1048
    %1561 = vmatprep.subr.bf16.mxu0 %v1045
    %1562 = vmatpush1.bf16.msra.mxu0 %v1044
    %1563 = vmatprep.subr.bf16.mxu0 %v1041
    %1564 = vmatpush1.bf16.msra.mxu0 %v1040
    %1565 = vmatprep.subr.bf16.mxu0 %v1037
    %1566 = vmatpush1.bf16.msra.mxu0 %v1036
    %1567 = vmatprep.subr.bf16.mxu0 %v1033
    %1568 = vmatpush1.bf16.msra.mxu0 %v1032
    %1569 = vmatprep.subr.bf16.mxu0 %v1029
    %1570 = vmatpush1.bf16.msra.mxu0 %v1028
    %1571 = vmatprep.subr.bf16.mxu0 %v1025
    %1572 = vmatpush1.bf16.msra.mxu0 %v1024
    %1573 = vmatprep.subr.bf16.mxu0 %v1021
    %1574 = vmatpush1.bf16.msra.mxu0 %v1020
    %1575 = vmatprep.subr.bf16.mxu0 %v1081
    %1576 = vmatpush2.bf16.msra.mxu0 %v1080
    %1577 = vmatprep.subr.bf16.mxu0 %v1077
    %1578 = vmatpush2.bf16.msra.mxu0 %v1076
    %1579 = vmatprep.subr.bf16.mxu0 %v1073
    %1580 = vmatpush2.bf16.msra.mxu0 %v1072
    %1581 = vmatprep.subr.bf16.mxu0 %v1069
    %1582 = vmatpush2.bf16.msra.mxu0 %v1068
    %1583 = vmatprep.subr.bf16.mxu0 %v1065
    %1584 = vmatpush2.bf16.msra.mxu0 %v1064
    %1585 = vmatprep.subr.bf16.mxu0 %v1061
    %1586 = vmatpush2.bf16.msra.mxu0 %v1060
    %1587 = vmatprep.subr.bf16.mxu0 %v1057
    %1588 = vmatpush2.bf16.msra.mxu0 %v1056
    %1589 = vmatprep.subr.bf16.mxu0 %v1053
    %1590 = vmatpush2.bf16.msra.mxu0 %v1052
    %1591 = vmatprep.mubr.bf16.mxu0 %v1517
    %1592 = vmatmul.mubr.bf16.gmra.mxu0 %v1516
    %v1593 = vpop.f32.mrf.mxu0
    %v1594 = vadd.f32 0.0, %v1593
    %v1595 = vpop.f32.mrf.mxu0
    %v1596 = vadd.f32 0.0, %v1595
    %v1597 = vpop.f32.mrf.mxu0
    %v1598 = vpop.f32.mrf.mxu0
    %1599 = vdwg.mxu0
    %v1604 = vrot.slane %v1553, 4
    %v1605 = vrot.slane %v1555, 4
    %v1606 = vrot.slane %v1594, 4
    %v1607 = vrot.slane %v1596, 4
    %v1612 = vadd.f32 %v726, %v1604
    %v1613 = vadd.f32 %v727, %v1605
    %v1614 = vadd.f32 %v728, %v1606
    %v1615 = vadd.f32 %v729, %v1607
    %v1616 = vxor.u32 %v1612, 2147483648
    %v1617 = vxor.u32 %v1613, 2147483648
    %v1618 = vxor.u32 %v1614, 2147483648
    %v1619 = vmul.f32 %v1616, 1.442695
    %v1620 = vpow.pop %v1619
    %v1621 = vmul.f32 %v1617, 1.442695
    %v1622 = vpow.pop %v1621
    %v1623 = vmul.f32 %v1618, 1.442695
    %v1624 = vpow.pop %v1623
    %v1625 = vadd.f32 %v1620, 1.0
    %v1626 = vadd.f32 %v1622, 1.0
    %v1627 = vadd.f32 %v1624, 1.0
    %v1628 = vrcp.pop %v1625
    %v1629 = vmul.f32 1.0, %v1628
    %v1630 = vrcp.pop %v1626
    %v1631 = vmul.f32 1.0, %v1630
    %v1632 = vrcp.pop %v1627
    %v1633 = vmul.f32 1.0, %v1632
    %v1634 = vtanh.pop %v1615
    %v1636 = vrot.slane %v1511, 4
    %v1638 = vmul.f32 %v1631, %v1636
    %v1639 = vmul.f32 %v1629, %v1634
    %v1640 = vadd.f32 %v1638, %v1639
    %v1641 = vtanh.pop %v1640
    %v1642 = vmul.f32 %v1633, %v1641
    %v1643 = vmul.f32 %v1642, %v1387
    %v1644 = vmul.f32 %v1642, %v1388
    %v1645 = vpack.c.bf16 %v1643, %v1643
    %v1646 = vpack.c.bf16 %v1644, %v1644
    %v1649 = vrot.slane %v1645, 2
    %v1650 = vrot.slane %v1646, 2
    %1653 = vmatprep.subr.bf16.mxu0 %v1047
    %1654 = vmatpush1.bf16.msra.mxu0 %v1046
    %1655 = vmatprep.subr.bf16.mxu0 %v1043
    %1656 = vmatpush1.bf16.msra.mxu0 %v1042
    %1657 = vmatprep.subr.bf16.mxu0 %v1039
    %1658 = vmatpush1.bf16.msra.mxu0 %v1038
    %1659 = vmatprep.subr.bf16.mxu0 %v1035
    %1660 = vmatpush1.bf16.msra.mxu0 %v1034
    %1661 = vmatprep.subr.bf16.mxu0 %v1031
    %1662 = vmatpush1.bf16.msra.mxu0 %v1030
    %1663 = vmatprep.subr.bf16.mxu0 %v1027
    %1664 = vmatpush1.bf16.msra.mxu0 %v1026
    %1665 = vmatprep.subr.bf16.mxu0 %v1023
    %1666 = vmatpush1.bf16.msra.mxu0 %v1022
    %1667 = vmatprep.subr.bf16.mxu0 %v1019
    %1668 = vmatpush1.bf16.msra.mxu0 %v1018
    %1669 = vmatprep.subr.bf16.mxu0 %v1079
    %1670 = vmatpush2.bf16.msra.mxu0 %v1078
    %1671 = vmatprep.subr.bf16.mxu0 %v1075
    %1672 = vmatpush2.bf16.msra.mxu0 %v1074
    %1673 = vmatprep.subr.bf16.mxu0 %v1071
    %1674 = vmatpush2.bf16.msra.mxu0 %v1070
    %1675 = vmatprep.subr.bf16.mxu0 %v1067
    %1676 = vmatpush2.bf16.msra.mxu0 %v1066
    %1677 = vmatprep.subr.bf16.mxu0 %v1063
    %1678 = vmatpush2.bf16.msra.mxu0 %v1062
    %1679 = vmatprep.subr.bf16.mxu0 %v1059
    %1680 = vmatpush2.bf16.msra.mxu0 %v1058
    %1681 = vmatprep.subr.bf16.mxu0 %v1055
    %1682 = vmatpush2.bf16.msra.mxu0 %v1054
    %1683 = vmatprep.subr.bf16.mxu0 %v1051
    %1684 = vmatpush2.bf16.msra.mxu0 %v1050
    %1685 = vmatprep.mubr.bf16.mxu0 %v1650
    %1686 = vmatmul.mubr.bf16.gmra.mxu0 %v1649
    %v1687 = vpop.f32.mrf.mxu0
    %v1688 = vadd.f32 0.0, %v1687
    %v1689 = vpop.f32.mrf.mxu0
    %v1690 = vadd.f32 0.0, %v1689
    %v1691 = vpop.f32.mrf.mxu0
    %v1692 = vpop.f32.mrf.mxu0
    %1693 = vdwg.mxu0
    %1694 = vmatprep.subr.bf16.mxu0 %v1049
    %1695 = vmatpush1.bf16.msra.mxu0 %v1048
    %1696 = vmatprep.subr.bf16.mxu0 %v1045
    %1697 = vmatpush1.bf16.msra.mxu0 %v1044
    %1698 = vmatprep.subr.bf16.mxu0 %v1041
    %1699 = vmatpush1.bf16.msra.mxu0 %v1040
    %1700 = vmatprep.subr.bf16.mxu0 %v1037
    %1701 = vmatpush1.bf16.msra.mxu0 %v1036
    %1702 = vmatprep.subr.bf16.mxu0 %v1033
    %1703 = vmatpush1.bf16.msra.mxu0 %v1032
    %1704 = vmatprep.subr.bf16.mxu0 %v1029
    %1705 = vmatpush1.bf16.msra.mxu0 %v1028
    %1706 = vmatprep.subr.bf16.mxu0 %v1025
    %1707 = vmatpush1.bf16.msra.mxu0 %v1024
    %1708 = vmatprep.subr.bf16.mxu0 %v1021
    %1709 = vmatpush1.bf16.msra.mxu0 %v1020
    %1710 = vmatprep.subr.bf16.mxu0 %v1081
    %1711 = vmatpush2.bf16.msra.mxu0 %v1080
    %1712 = vmatprep.subr.bf16.mxu0 %v1077
    %1713 = vmatpush2.bf16.msra.mxu0 %v1076
    %1714 = vmatprep.subr.bf16.mxu0 %v1073
    %1715 = vmatpush2.bf16.msra.mxu0 %v1072
    %1716 = vmatprep.subr.bf16.mxu0 %v1069
    %1717 = vmatpush2.bf16.msra.mxu0 %v1068
    %1718 = vmatprep.subr.bf16.mxu0 %v1065
    %1719 = vmatpush2.bf16.msra.mxu0 %v1064
    %1720 = vmatprep.subr.bf16.mxu0 %v1061
    %1721 = vmatpush2.bf16.msra.mxu0 %v1060
    %1722 = vmatprep.subr.bf16.mxu0 %v1057
    %1723 = vmatpush2.bf16.msra.mxu0 %v1056
    %1724 = vmatprep.subr.bf16.mxu0 %v1053
    %1725 = vmatpush2.bf16.msra.mxu0 %v1052
    %1726 = vmatprep.mubr.bf16.mxu0 %v1650
    %1727 = vmatmul.mubr.bf16.gmra.mxu0 %v1649
    %v1728 = vpop.f32.mrf.mxu0
    %v1729 = vadd.f32 0.0, %v1728
    %v1730 = vpop.f32.mrf.mxu0
    %v1731 = vadd.f32 0.0, %v1730
    %v1732 = vpop.f32.mrf.mxu0
    %v1733 = vpop.f32.mrf.mxu0
    %1734 = vdwg.mxu0
    %v1735 = vadd.f32 %v730, %v1688
    %v1736 = vadd.f32 %v731, %v1690
    %v1737 = vadd.f32 %v732, %v1729
    %v1738 = vadd.f32 %v733, %v1731
    %v1739 = vxor.u32 %v1735, 2147483648
    %v1740 = vxor.u32 %v1736, 2147483648
    %v1741 = vxor.u32 %v1737, 2147483648
    %v1742 = vmul.f32 %v1739, 1.442695
    %v1743 = vpow.pop %v1742
    %v1744 = vmul.f32 %v1740, 1.442695
    %v1745 = vpow.pop %v1744
    %v1746 = vmul.f32 %v1741, 1.442695
    %v1747 = vpow.pop %v1746
    %v1748 = vadd.f32 %v1743, 1.0
    %v1749 = vadd.f32 %v1745, 1.0
    %v1750 = vadd.f32 %v1747, 1.0
    %v1751 = vrcp.pop %v1748
    %v1752 = vmul.f32 1.0, %v1751
    %v1753 = vrcp.pop %v1749
    %v1754 = vmul.f32 1.0, %v1753
    %v1755 = vrcp.pop %v1750
    %v1756 = vmul.f32 1.0, %v1755
    %v1757 = vtanh.pop %v1738
    %v1759 = vrot.slane %v1640, 4
    %v1761 = vmul.f32 %v1754, %v1759
    %v1762 = vmul.f32 %v1752, %v1757
    %v1763 = vadd.f32 %v1761, %v1762
    %v1764 = vtanh.pop %v1763
    %v1765 = vmul.f32 %v1756, %v1764
    %v1766 = vmul.f32 %v1765, %v824
    %v1767 = vmul.f32 %v1765, %v825
    %v1768 = vpack.c.bf16 %v1766, %v1766
    %v1769 = vpack.c.bf16 %v1767, %v1767
    %1770 = vmatprep.subr.bf16.mxu0 %v1047
    %1771 = vmatpush1.bf16.msra.mxu0 %v1046
    %1772 = vmatprep.subr.bf16.mxu0 %v1043
    %1773 = vmatpush1.bf16.msra.mxu0 %v1042
    %1774 = vmatprep.subr.bf16.mxu0 %v1039
    %1775 = vmatpush1.bf16.msra.mxu0 %v1038
    %1776 = vmatprep.subr.bf16.mxu0 %v1035
    %1777 = vmatpush1.bf16.msra.mxu0 %v1034
    %1778 = vmatprep.subr.bf16.mxu0 %v1031
    %1779 = vmatpush1.bf16.msra.mxu0 %v1030
    %1780 = vmatprep.subr.bf16.mxu0 %v1027
    %1781 = vmatpush1.bf16.msra.mxu0 %v1026
    %1782 = vmatprep.subr.bf16.mxu0 %v1023
    %1783 = vmatpush1.bf16.msra.mxu0 %v1022
    %1784 = vmatprep.subr.bf16.mxu0 %v1019
    %1785 = vmatpush1.bf16.msra.mxu0 %v1018
    %1786 = vmatprep.subr.bf16.mxu0 %v1079
    %1787 = vmatpush2.bf16.msra.mxu0 %v1078
    %1788 = vmatprep.subr.bf16.mxu0 %v1075
    %1789 = vmatpush2.bf16.msra.mxu0 %v1074
    %1790 = vmatprep.subr.bf16.mxu0 %v1071
    %1791 = vmatpush2.bf16.msra.mxu0 %v1070
    %1792 = vmatprep.subr.bf16.mxu0 %v1067
    %1793 = vmatpush2.bf16.msra.mxu0 %v1066
    %1794 = vmatprep.subr.bf16.mxu0 %v1063
    %1795 = vmatpush2.bf16.msra.mxu0 %v1062
    %1796 = vmatprep.subr.bf16.mxu0 %v1059
    %1797 = vmatpush2.bf16.msra.mxu0 %v1058
    %1798 = vmatprep.subr.bf16.mxu0 %v1055
    %1799 = vmatpush2.bf16.msra.mxu0 %v1054
    %1800 = vmatprep.subr.bf16.mxu0 %v1051
    %1801 = vmatpush2.bf16.msra.mxu0 %v1050
    %1802 = vmatprep.mubr.bf16.mxu0 %v1769
    %1803 = vmatmul.mubr.bf16.gmra.mxu0 %v1768
    %v1804 = vpop.f32.mrf.mxu0
    %v1805 = vadd.f32 0.0, %v1804
    %v1806 = vpop.f32.mrf.mxu0
    %v1807 = vadd.f32 0.0, %v1806
    %v1808 = vpop.f32.mrf.mxu0
    %v1809 = vpop.f32.mrf.mxu0
    %1810 = vdwg.mxu0
    %1811 = vmatprep.subr.bf16.mxu0 %v1049
    %1812 = vmatpush1.bf16.msra.mxu0 %v1048
    %1813 = vmatprep.subr.bf16.mxu0 %v1045
    %1814 = vmatpush1.bf16.msra.mxu0 %v1044
    %1815 = vmatprep.subr.bf16.mxu0 %v1041
    %1816 = vmatpush1.bf16.msra.mxu0 %v1040
    %1817 = vmatprep.subr.bf16.mxu0 %v1037
    %1818 = vmatpush1.bf16.msra.mxu0 %v1036
    %1819 = vmatprep.subr.bf16.mxu0 %v1033
    %1820 = vmatpush1.bf16.msra.mxu0 %v1032
    %1821 = vmatprep.subr.bf16.mxu0 %v1029
    %1822 = vmatpush1.bf16.msra.mxu0 %v1028
    %1823 = vmatprep.subr.bf16.mxu0 %v1025
    %1824 = vmatpush1.bf16.msra.mxu0 %v1024
    %1825 = vmatprep.subr.bf16.mxu0 %v1021
    %1826 = vmatpush1.bf16.msra.mxu0 %v1020
    %1827 = vmatprep.subr.bf16.mxu0 %v1081
    %1828 = vmatpush2.bf16.msra.mxu0 %v1080
    %1829 = vmatprep.subr.bf16.mxu0 %v1077
    %1830 = vmatpush2.bf16.msra.mxu0 %v1076
    %1831 = vmatprep.subr.bf16.mxu0 %v1073
    %1832 = vmatpush2.bf16.msra.mxu0 %v1072
    %1833 = vmatprep.subr.bf16.mxu0 %v1069
    %1834 = vmatpush2.bf16.msra.mxu0 %v1068
    %1835 = vmatprep.subr.bf16.mxu0 %v1065
    %1836 = vmatpush2.bf16.msra.mxu0 %v1064
    %1837 = vmatprep.subr.bf16.mxu0 %v1061
    %1838 = vmatpush2.bf16.msra.mxu0 %v1060
    %1839 = vmatprep.subr.bf16.mxu0 %v1057
    %1840 = vmatpush2.bf16.msra.mxu0 %v1056
    %1841 = vmatprep.subr.bf16.mxu0 %v1053
    %1842 = vmatpush2.bf16.msra.mxu0 %v1052
    %1843 = vmatprep.mubr.bf16.mxu0 %v1769
    %1844 = vmatmul.mubr.bf16.gmra.mxu0 %v1768
    %v1845 = vpop.f32.mrf.mxu0
    %v1846 = vadd.f32 0.0, %v1845
    %v1847 = vpop.f32.mrf.mxu0
    %v1848 = vadd.f32 0.0, %v1847
    %v1849 = vpop.f32.mrf.mxu0
    %v1850 = vpop.f32.mrf.mxu0
    %1851 = vdwg.mxu0
    %v1856 = vrot.slane %v1805, 4
    %v1857 = vrot.slane %v1807, 4
    %v1858 = vrot.slane %v1846, 4
    %v1859 = vrot.slane %v1848, 4
    %v1864 = vadd.f32 %v734, %v1856
    %v1865 = vadd.f32 %v735, %v1857
    %v1866 = vadd.f32 %v736, %v1858
    %v1867 = vadd.f32 %v737, %v1859
    %v1868 = vxor.u32 %v1864, 2147483648
    %v1869 = vxor.u32 %v1865, 2147483648
    %v1870 = vxor.u32 %v1866, 2147483648
    %v1871 = vmul.f32 %v1868, 1.442695
    %v1872 = vpow.pop %v1871
    %v1873 = vmul.f32 %v1869, 1.442695
    %v1874 = vpow.pop %v1873
    %v1875 = vmul.f32 %v1870, 1.442695
    %v1876 = vpow.pop %v1875
    %v1877 = vadd.f32 %v1872, 1.0
    %v1878 = vadd.f32 %v1874, 1.0
    %v1879 = vadd.f32 %v1876, 1.0
    %v1880 = vrcp.pop %v1877
    %v1881 = vmul.f32 1.0, %v1880
    %v1882 = vrcp.pop %v1878
    %v1883 = vmul.f32 1.0, %v1882
    %v1884 = vrcp.pop %v1879
    %v1885 = vmul.f32 1.0, %v1884
    %v1886 = vtanh.pop %v1867
    %v1888 = vrot.slane %v1763, 4
    %v1890 = vmul.f32 %v1883, %v1888
    %v1891 = vmul.f32 %v1881, %v1886
    %v1892 = vadd.f32 %v1890, %v1891
    %v1893 = vtanh.pop %v1892
    %v1894 = vmul.f32 %v1885, %v1893
    %v1895 = vmul.f32 %v1894, %v1387
    %v1896 = vmul.f32 %v1894, %v1388
    %v1897 = vpack.c.bf16 %v1895, %v1895
    %v1898 = vpack.c.bf16 %v1896, %v1896
    %v1901 = vrot.slane %v1897, 2
    %v1902 = vrot.slane %v1898, 2
    %1905 = vmatprep.subr.bf16.mxu0 %v1047
    %1906 = vmatpush1.bf16.msra.mxu0 %v1046
    %1907 = vmatprep.subr.bf16.mxu0 %v1043
    %1908 = vmatpush1.bf16.msra.mxu0 %v1042
    %1909 = vmatprep.subr.bf16.mxu0 %v1039
    %1910 = vmatpush1.bf16.msra.mxu0 %v1038
    %1911 = vmatprep.subr.bf16.mxu0 %v1035
    %1912 = vmatpush1.bf16.msra.mxu0 %v1034
    %1913 = vmatprep.subr.bf16.mxu0 %v1031
    %1914 = vmatpush1.bf16.msra.mxu0 %v1030
    %1915 = vmatprep.subr.bf16.mxu0 %v1027
    %1916 = vmatpush1.bf16.msra.mxu0 %v1026
    %1917 = vmatprep.subr.bf16.mxu0 %v1023
    %1918 = vmatpush1.bf16.msra.mxu0 %v1022
    %1919 = vmatprep.subr.bf16.mxu0 %v1019
    %1920 = vmatpush1.bf16.msra.mxu0 %v1018
    %1921 = vmatprep.subr.bf16.mxu0 %v1079
    %1922 = vmatpush2.bf16.msra.mxu0 %v1078
    %1923 = vmatprep.subr.bf16.mxu0 %v1075
    %1924 = vmatpush2.bf16.msra.mxu0 %v1074
    %1925 = vmatprep.subr.bf16.mxu0 %v1071
    %1926 = vmatpush2.bf16.msra.mxu0 %v1070
    %1927 = vmatprep.subr.bf16.mxu0 %v1067
    %1928 = vmatpush2.bf16.msra.mxu0 %v1066
    %1929 = vmatprep.subr.bf16.mxu0 %v1063
    %1930 = vmatpush2.bf16.msra.mxu0 %v1062
    %1931 = vmatprep.subr.bf16.mxu0 %v1059
    %1932 = vmatpush2.bf16.msra.mxu0 %v1058
    %1933 = vmatprep.subr.bf16.mxu0 %v1055
    %1934 = vmatpush2.bf16.msra.mxu0 %v1054
    %1935 = vmatprep.subr.bf16.mxu0 %v1051
    %1936 = vmatpush2.bf16.msra.mxu0 %v1050
    %1937 = vmatprep.mubr.bf16.mxu0 %v1902
    %1938 = vmatmul.mubr.bf16.gmra.mxu0 %v1901
    %v1939 = vpop.f32.mrf.mxu0
    %v1940 = vadd.f32 0.0, %v1939
    %v1941 = vpop.f32.mrf.mxu0
    %v1942 = vadd.f32 0.0, %v1941
    %v1943 = vpop.f32.mrf.mxu0
    %v1944 = vpop.f32.mrf.mxu0
    %1945 = vdwg.mxu0
    %1946 = vmatprep.subr.bf16.mxu0 %v1049
    %1947 = vmatpush1.bf16.msra.mxu0 %v1048
    %1948 = vmatprep.subr.bf16.mxu0 %v1045
    %1949 = vmatpush1.bf16.msra.mxu0 %v1044
    %1950 = vmatprep.subr.bf16.mxu0 %v1041
    %1951 = vmatpush1.bf16.msra.mxu0 %v1040
    %1952 = vmatprep.subr.bf16.mxu0 %v1037
    %1953 = vmatpush1.bf16.msra.mxu0 %v1036
    %1954 = vmatprep.subr.bf16.mxu0 %v1033
    %1955 = vmatpush1.bf16.msra.mxu0 %v1032
    %1956 = vmatprep.subr.bf16.mxu0 %v1029
    %1957 = vmatpush1.bf16.msra.mxu0 %v1028
    %1958 = vmatprep.subr.bf16.mxu0 %v1025
    %1959 = vmatpush1.bf16.msra.mxu0 %v1024
    %1960 = vmatprep.subr.bf16.mxu0 %v1021
    %1961 = vmatpush1.bf16.msra.mxu0 %v1020
    %1962 = vmatprep.subr.bf16.mxu0 %v1081
    %1963 = vmatpush2.bf16.msra.mxu0 %v1080
    %1964 = vmatprep.subr.bf16.mxu0 %v1077
    %1965 = vmatpush2.bf16.msra.mxu0 %v1076
    %1966 = vmatprep.subr.bf16.mxu0 %v1073
    %1967 = vmatpush2.bf16.msra.mxu0 %v1072
    %1968 = vmatprep.subr.bf16.mxu0 %v1069
    %1969 = vmatpush2.bf16.msra.mxu0 %v1068
    %1970 = vmatprep.subr.bf16.mxu0 %v1065
    %1971 = vmatpush2.bf16.msra.mxu0 %v1064
    %1972 = vmatprep.subr.bf16.mxu0 %v1061
    %1973 = vmatpush2.bf16.msra.mxu0 %v1060
    %1974 = vmatprep.subr.bf16.mxu0 %v1057
    %1975 = vmatpush2.bf16.msra.mxu0 %v1056
    %1976 = vmatprep.subr.bf16.mxu0 %v1053
    %1977 = vmatpush2.bf16.msra.mxu0 %v1052
    %1978 = vmatprep.mubr.bf16.mxu0 %v1902
    %1979 = vmatmul.mubr.bf16.gmra.mxu0 %v1901
    %v1980 = vpop.f32.mrf.mxu0
    %v1981 = vadd.f32 0.0, %v1980
    %v1982 = vpop.f32.mrf.mxu0
    %v1983 = vadd.f32 0.0, %v1982
    %v1984 = vpop.f32.mrf.mxu0
    %v1985 = vpop.f32.mrf.mxu0
    %1986 = vdwg.mxu0
    %v1987 = vadd.f32 %v738, %v1940
    %v1988 = vadd.f32 %v739, %v1942
    %v1989 = vadd.f32 %v740, %v1981
    %v1990 = vadd.f32 %v741, %v1983
    %v1991 = vxor.u32 %v1987, 2147483648
    %v1992 = vxor.u32 %v1988, 2147483648
    %v1993 = vxor.u32 %v1989, 2147483648
    %v1994 = vmul.f32 %v1991, 1.442695
    %v1995 = vpow.pop %v1994
    %v1996 = vmul.f32 %v1992, 1.442695
    %v1997 = vpow.pop %v1996
    %v1998 = vmul.f32 %v1993, 1.442695
    %v1999 = vpow.pop %v1998
    %v2000 = vadd.f32 %v1995, 1.0
    %v2001 = vadd.f32 %v1997, 1.0
    %v2002 = vadd.f32 %v1999, 1.0
    %v2003 = vrcp.pop %v2000
    %v2004 = vmul.f32 1.0, %v2003
    %v2005 = vrcp.pop %v2001
    %v2006 = vmul.f32 1.0, %v2005
    %v2007 = vrcp.pop %v2002
    %v2008 = vmul.f32 1.0, %v2007
    %v2009 = vtanh.pop %v1990
    %v2011 = vrot.slane %v1892, 4
    %v2013 = vmul.f32 %v2006, %v2011
    %v2014 = vmul.f32 %v2004, %v2009
    %v2015 = vadd.f32 %v2013, %v2014
    %v2016 = vtanh.pop %v2015
    %v2017 = vmul.f32 %v2008, %v2016
    %v2018 = vmul.f32 %v2017, %v824
    %v2019 = vmul.f32 %v2017, %v825
    %v2020 = vpack.c.bf16 %v2018, %v2018
    %v2021 = vpack.c.bf16 %v2019, %v2019
    %2022 = vmatprep.subr.bf16.mxu0 %v1047
    %2023 = vmatpush1.bf16.msra.mxu0 %v1046
    %2024 = vmatprep.subr.bf16.mxu0 %v1043
    %2025 = vmatpush1.bf16.msra.mxu0 %v1042
    %2026 = vmatprep.subr.bf16.mxu0 %v1039
    %2027 = vmatpush1.bf16.msra.mxu0 %v1038
    %2028 = vmatprep.subr.bf16.mxu0 %v1035
    %2029 = vmatpush1.bf16.msra.mxu0 %v1034
    %2030 = vmatprep.subr.bf16.mxu0 %v1031
    %2031 = vmatpush1.bf16.msra.mxu0 %v1030
    %2032 = vmatprep.subr.bf16.mxu0 %v1027
    %2033 = vmatpush1.bf16.msra.mxu0 %v1026
    %2034 = vmatprep.subr.bf16.mxu0 %v1023
    %2035 = vmatpush1.bf16.msra.mxu0 %v1022
    %2036 = vmatprep.subr.bf16.mxu0 %v1019
    %2037 = vmatpush1.bf16.msra.mxu0 %v1018
    %2038 = vmatprep.subr.bf16.mxu0 %v1079
    %2039 = vmatpush2.bf16.msra.mxu0 %v1078
    %2040 = vmatprep.subr.bf16.mxu0 %v1075
    %2041 = vmatpush2.bf16.msra.mxu0 %v1074
    %2042 = vmatprep.subr.bf16.mxu0 %v1071
    %2043 = vmatpush2.bf16.msra.mxu0 %v1070
    %2044 = vmatprep.subr.bf16.mxu0 %v1067
    %2045 = vmatpush2.bf16.msra.mxu0 %v1066
    %2046 = vmatprep.subr.bf16.mxu0 %v1063
    %2047 = vmatpush2.bf16.msra.mxu0 %v1062
    %2048 = vmatprep.subr.bf16.mxu0 %v1059
    %2049 = vmatpush2.bf16.msra.mxu0 %v1058
    %2050 = vmatprep.subr.bf16.mxu0 %v1055
    %2051 = vmatpush2.bf16.msra.mxu0 %v1054
    %2052 = vmatprep.subr.bf16.mxu0 %v1051
    %2053 = vmatpush2.bf16.msra.mxu0 %v1050
    %2054 = vmatprep.mubr.bf16.mxu0 %v2021
    %2055 = vmatmul.mubr.bf16.gmra.mxu0 %v2020
    %v2056 = vpop.f32.mrf.mxu0
    %v2057 = vadd.f32 0.0, %v2056
    %v2058 = vpop.f32.mrf.mxu0
    %v2059 = vadd.f32 0.0, %v2058
    %v2060 = vpop.f32.mrf.mxu0
    %v2061 = vpop.f32.mrf.mxu0
    %2062 = vdwg.mxu0
    %2063 = vmatprep.subr.bf16.mxu0 %v1049
    %2064 = vmatpush1.bf16.msra.mxu0 %v1048
    %2065 = vmatprep.subr.bf16.mxu0 %v1045
    %2066 = vmatpush1.bf16.msra.mxu0 %v1044
    %2067 = vmatprep.subr.bf16.mxu0 %v1041
    %2068 = vmatpush1.bf16.msra.mxu0 %v1040
    %2069 = vmatprep.subr.bf16.mxu0 %v1037
    %2070 = vmatpush1.bf16.msra.mxu0 %v1036
    %2071 = vmatprep.subr.bf16.mxu0 %v1033
    %2072 = vmatpush1.bf16.msra.mxu0 %v1032
    %2073 = vmatprep.subr.bf16.mxu0 %v1029
    %2074 = vmatpush1.bf16.msra.mxu0 %v1028
    %2075 = vmatprep.subr.bf16.mxu0 %v1025
    %2076 = vmatpush1.bf16.msra.mxu0 %v1024
    %2077 = vmatprep.subr.bf16.mxu0 %v1021
    %2078 = vmatpush1.bf16.msra.mxu0 %v1020
    %2079 = vmatprep.subr.bf16.mxu0 %v1081
    %2080 = vmatpush2.bf16.msra.mxu0 %v1080
    %2081 = vmatprep.subr.bf16.mxu0 %v1077
    %2082 = vmatpush2.bf16.msra.mxu0 %v1076
    %2083 = vmatprep.subr.bf16.mxu0 %v1073
    %2084 = vmatpush2.bf16.msra.mxu0 %v1072
    %2085 = vmatprep.subr.bf16.mxu0 %v1069
    %2086 = vmatpush2.bf16.msra.mxu0 %v1068
    %2087 = vmatprep.subr.bf16.mxu0 %v1065
    %2088 = vmatpush2.bf16.msra.mxu0 %v1064
    %2089 = vmatprep.subr.bf16.mxu0 %v1061
    %2090 = vmatpush2.bf16.msra.mxu0 %v1060
    %2091 = vmatprep.subr.bf16.mxu0 %v1057
    %2092 = vmatpush2.bf16.msra.mxu0 %v1056
    %2093 = vmatprep.subr.bf16.mxu0 %v1053
    %2094 = vmatpush2.bf16.msra.mxu0 %v1052
    %2095 = vmatprep.mubr.bf16.mxu0 %v2021
    %2096 = vmatmul.mubr.bf16.gmra.mxu0 %v2020
    %v2097 = vpop.f32.mrf.mxu0
    %v2098 = vadd.f32 0.0, %v2097
    %v2099 = vpop.f32.mrf.mxu0
    %v2100 = vadd.f32 0.0, %v2099
    %v2101 = vpop.f32.mrf.mxu0
    %v2102 = vpop.f32.mrf.mxu0
    %2103 = vdwg.mxu0
    %v2108 = vrot.slane %v2057, 4
    %v2109 = vrot.slane %v2059, 4
    %v2110 = vrot.slane %v2098, 4
    %v2111 = vrot.slane %v2100, 4
    %v2116 = vadd.f32 %v742, %v2108
    %v2117 = vadd.f32 %v743, %v2109
    %v2118 = vadd.f32 %v744, %v2110
    %v2119 = vadd.f32 %v745, %v2111
    %v2120 = vxor.u32 %v2116, 2147483648
    %v2121 = vxor.u32 %v2117, 2147483648
    %v2122 = vxor.u32 %v2118, 2147483648
    %v2123 = vmul.f32 %v2120, 1.442695
    %v2124 = vpow.pop %v2123
    %v2125 = vmul.f32 %v2121, 1.442695
    %v2126 = vpow.pop %v2125
    %v2127 = vmul.f32 %v2122, 1.442695
    %v2128 = vpow.pop %v2127
    %v2129 = vadd.f32 %v2124, 1.0
    %v2130 = vadd.f32 %v2126, 1.0
    %v2131 = vadd.f32 %v2128, 1.0
    %v2132 = vrcp.pop %v2129
    %v2133 = vmul.f32 1.0, %v2132
    %v2134 = vrcp.pop %v2130
    %v2135 = vmul.f32 1.0, %v2134
    %v2136 = vrcp.pop %v2131
    %v2137 = vmul.f32 1.0, %v2136
    %v2138 = vtanh.pop %v2119
    %v2140 = vrot.slane %v2015, 4
    %v2142 = vmul.f32 %v2135, %v2140
    %v2143 = vmul.f32 %v2133, %v2138
    %v2144 = vadd.f32 %v2142, %v2143
    %v2145 = vtanh.pop %v2144
    %v2146 = vmul.f32 %v2137, %v2145
    %v2147 = vmul.f32 %v2146, %v1387
    %v2148 = vmul.f32 %v2146, %v1388
    %v2151 = vrot.slane %v2147, 2
    %v2152 = vrot.slane %v2148, 2
    %v2155 = vadd.f32 %v2147, %v2151
    %v2156 = vadd.f32 %v2148, %v2152
    %s2157 = smul.u32 4, 32
    %s2158 = smul.u32 %s2157, 4
    %s2159 = sshll.u32 %s2158, 4
    %2160 = dma.done [#allocation5], %s2159
    %s2161 = smul.u32 4, 64
    %s2162 = smul.u32 %s2161, 4
    %s2163 = sshll.u32 %s2162, 4
    %2164 = dma.done %s70, %s2163
    %s2165 = smul.u32 %s2161, 1
    %s2166 = sshll.u32 %s2165, 4
    %2167 = dma.done %s82, %s2166
    %v2168 = vpack.c.bf16 %v2155, %v2155
    %v2169 = vpack.c.bf16 %v2156, %v2156
    %v2170 = vld [vmem:[#allocation2] sm:$0xff]
    %v2171 = vld [vmem:[#allocation2 + $0x8] sm:$0xff]
    %v2172 = vld [vmem:[#allocation2 + $0x10] sm:$0xff]
    %v2173 = vld [vmem:[#allocation2 + $0x18] sm:$0xff]
    %v2174 = vld [vmem:[#allocation2 + $0x20] sm:$0xff]
    %v2175 = vld [vmem:[#allocation2 + $0x28] sm:$0xff]
    %v2176 = vld [vmem:[#allocation2 + $0x30] sm:$0xff]
    %v2177 = vld [vmem:[#allocation2 + $0x38] sm:$0xff]
    %v2178 = vld [vmem:[#allocation2 + $0x40] sm:$0xff]
    %v2179 = vld [vmem:[#allocation2 + $0x48] sm:$0xff]
    %v2180 = vld [vmem:[#allocation2 + $0x50] sm:$0xff]
    %v2181 = vld [vmem:[#allocation2 + $0x58] sm:$0xff]
    %v2182 = vld [vmem:[#allocation2 + $0x60] sm:$0xff]
    %v2183 = vld [vmem:[#allocation2 + $0x68] sm:$0xff]
    %v2184 = vld [vmem:[#allocation2 + $0x70] sm:$0xff]
    %v2185 = vld [vmem:[#allocation2 + $0x78] sm:$0xff]
    %v2186 = vld [vmem:[#allocation2 + $0x80] sm:$0xff]
    %v2187 = vld [vmem:[#allocation2 + $0x88] sm:$0xff]
    %v2188 = vld [vmem:[#allocation2 + $0x90] sm:$0xff]
    %v2189 = vld [vmem:[#allocation2 + $0x98] sm:$0xff]
    %v2190 = vld [vmem:[#allocation2 + $0xa0] sm:$0xff]
    %v2191 = vld [vmem:[#allocation2 + $0xa8] sm:$0xff]
    %v2192 = vld [vmem:[#allocation2 + $0xb0] sm:$0xff]
    %v2193 = vld [vmem:[#allocation2 + $0xb8] sm:$0xff]
    %v2194 = vld [vmem:[#allocation2 + $0xc0] sm:$0xff]
    %v2195 = vld [vmem:[#allocation2 + $0xc8] sm:$0xff]
    %v2196 = vld [vmem:[#allocation2 + $0xd0] sm:$0xff]
    %v2197 = vld [vmem:[#allocation2 + $0xd8] sm:$0xff]
    %v2198 = vld [vmem:[#allocation2 + $0xe0] sm:$0xff]
    %v2199 = vld [vmem:[#allocation2 + $0xe8] sm:$0xff]
    %v2200 = vld [vmem:[#allocation2 + $0xf0] sm:$0xff]
    %v2201 = vld [vmem:[#allocation2 + $0xf8] sm:$0xff]
    %v2202 = vld [vmem:[#allocation2 + $0x100] sm:$0xff]
    %v2203 = vld [vmem:[#allocation2 + $0x108] sm:$0xff]
    %v2204 = vld [vmem:[#allocation2 + $0x110] sm:$0xff]
    %v2205 = vld [vmem:[#allocation2 + $0x118] sm:$0xff]
    %v2206 = vld [vmem:[#allocation2 + $0x120] sm:$0xff]
    %v2207 = vld [vmem:[#allocation2 + $0x128] sm:$0xff]
    %v2208 = vld [vmem:[#allocation2 + $0x130] sm:$0xff]
    %v2209 = vld [vmem:[#allocation2 + $0x138] sm:$0xff]
    %v2210 = vld [vmem:[#allocation2 + $0x140] sm:$0xff]
    %v2211 = vld [vmem:[#allocation2 + $0x148] sm:$0xff]
    %v2212 = vld [vmem:[#allocation2 + $0x150] sm:$0xff]
    %v2213 = vld [vmem:[#allocation2 + $0x158] sm:$0xff]
    %v2214 = vld [vmem:[#allocation2 + $0x160] sm:$0xff]
    %v2215 = vld [vmem:[#allocation2 + $0x168] sm:$0xff]
    %v2216 = vld [vmem:[#allocation2 + $0x170] sm:$0xff]
    %v2217 = vld [vmem:[#allocation2 + $0x178] sm:$0xff]
    %v2218 = vld [vmem:[#allocation2 + $0x180] sm:$0xff]
    %v2219 = vld [vmem:[#allocation2 + $0x188] sm:$0xff]
    %v2220 = vld [vmem:[#allocation2 + $0x190] sm:$0xff]
    %v2221 = vld [vmem:[#allocation2 + $0x198] sm:$0xff]
    %v2222 = vld [vmem:[#allocation2 + $0x1a0] sm:$0xff]
    %v2223 = vld [vmem:[#allocation2 + $0x1a8] sm:$0xff]
    %v2224 = vld [vmem:[#allocation2 + $0x1b0] sm:$0xff]
    %v2225 = vld [vmem:[#allocation2 + $0x1b8] sm:$0xff]
    %v2226 = vld [vmem:[#allocation2 + $0x1c0] sm:$0xff]
    %v2227 = vld [vmem:[#allocation2 + $0x1c8] sm:$0xff]
    %v2228 = vld [vmem:[#allocation2 + $0x1d0] sm:$0xff]
    %v2229 = vld [vmem:[#allocation2 + $0x1d8] sm:$0xff]
    %v2230 = vld [vmem:[#allocation2 + $0x1e0] sm:$0xff]
    %v2231 = vld [vmem:[#allocation2 + $0x1e8] sm:$0xff]
    %v2232 = vld [vmem:[#allocation2 + $0x1f0] sm:$0xff]
    %v2233 = vld [vmem:[#allocation2 + $0x1f8] sm:$0xff]
    %v2234 = vld [vmem:[%s4] sm:$0xf]
    %v2236 = vlaneseq
    %v2237 = vshrl.u32 %v2236, 7
    %v2238 = vsub.s32 0, %v2237
    %v2239 = vrot.slane %v2234, %v2238
    %v2240 = vlaneseq
    %v2241 = vshrl.u32 %v2240, 7
    %v2242 = vsub.s32 1, %v2241
    %v2243 = vrot.slane %v2234, %v2242
    %v2244 = vlaneseq
    %v2245 = vshrl.u32 %v2244, 7
    %v2246 = vsub.s32 2, %v2245
    %v2247 = vrot.slane %v2234, %v2246
    %v2248 = vlaneseq
    %v2249 = vshrl.u32 %v2248, 7
    %v2250 = vsub.s32 3, %v2249
    %v2251 = vrot.slane %v2234, %v2250
    %v2258 = vrot.slane %v2168, 2
    %v2259 = vrot.slane %v2169, 2
    %v2326 = vunpack.c.l.b16 %v2170
    %v2327 = vunpack.c.h.b16 %v2170
    %v2328 = vunpack.c.l.b16 %v2171
    %v2329 = vunpack.c.h.b16 %v2171
    %v2330 = vunpack.c.l.b16 %v2172
    %v2331 = vunpack.c.h.b16 %v2172
    %v2332 = vunpack.c.l.b16 %v2173
    %v2333 = vunpack.c.h.b16 %v2173
    %v2334 = vunpack.c.l.b16 %v2174
    %v2335 = vunpack.c.h.b16 %v2174
    %v2336 = vunpack.c.l.b16 %v2175
    %v2337 = vunpack.c.h.b16 %v2175
    %v2338 = vunpack.c.l.b16 %v2176
    %v2339 = vunpack.c.h.b16 %v2176
    %v2340 = vunpack.c.l.b16 %v2177
    %v2341 = vunpack.c.h.b16 %v2177
    %v2342 = vunpack.c.l.b16 %v2178
    %v2343 = vunpack.c.h.b16 %v2178
    %v2344 = vunpack.c.l.b16 %v2179
    %v2345 = vunpack.c.h.b16 %v2179
    %v2346 = vunpack.c.l.b16 %v2180
    %v2347 = vunpack.c.h.b16 %v2180
    %v2348 = vunpack.c.l.b16 %v2181
    %v2349 = vunpack.c.h.b16 %v2181
    %v2350 = vunpack.c.l.b16 %v2182
    %v2351 = vunpack.c.h.b16 %v2182
    %v2352 = vunpack.c.l.b16 %v2183
    %v2353 = vunpack.c.h.b16 %v2183
    %v2354 = vunpack.c.l.b16 %v2184
    %v2355 = vunpack.c.h.b16 %v2184
    %v2356 = vunpack.c.l.b16 %v2185
    %v2357 = vunpack.c.h.b16 %v2185
    %v2358 = vunpack.c.l.b16 %v2186
    %v2359 = vunpack.c.h.b16 %v2186
    %v2360 = vunpack.c.l.b16 %v2187
    %v2361 = vunpack.c.h.b16 %v2187
    %v2362 = vunpack.c.l.b16 %v2188
    %v2363 = vunpack.c.h.b16 %v2188
    %v2364 = vunpack.c.l.b16 %v2189
    %v2365 = vunpack.c.h.b16 %v2189
    %v2366 = vunpack.c.l.b16 %v2190
    %v2367 = vunpack.c.h.b16 %v2190
    %v2368 = vunpack.c.l.b16 %v2191
    %v2369 = vunpack.c.h.b16 %v2191
    %v2370 = vunpack.c.l.b16 %v2192
    %v2371 = vunpack.c.h.b16 %v2192
    %v2372 = vunpack.c.l.b16 %v2193
    %v2373 = vunpack.c.h.b16 %v2193
    %v2374 = vunpack.c.l.b16 %v2194
    %v2375 = vunpack.c.h.b16 %v2194
    %v2376 = vunpack.c.l.b16 %v2195
    %v2377 = vunpack.c.h.b16 %v2195
    %v2378 = vunpack.c.l.b16 %v2196
    %v2379 = vunpack.c.h.b16 %v2196
    %v2380 = vunpack.c.l.b16 %v2197
    %v2381 = vunpack.c.h.b16 %v2197
    %v2382 = vunpack.c.l.b16 %v2198
    %v2383 = vunpack.c.h.b16 %v2198
    %v2384 = vunpack.c.l.b16 %v2199
    %v2385 = vunpack.c.h.b16 %v2199
    %v2386 = vunpack.c.l.b16 %v2200
    %v2387 = vunpack.c.h.b16 %v2200
    %v2388 = vunpack.c.l.b16 %v2201
    %v2389 = vunpack.c.h.b16 %v2201
    %v2390 = vunpack.c.l.b16 %v2202
    %v2391 = vunpack.c.h.b16 %v2202
    %v2392 = vunpack.c.l.b16 %v2203
    %v2393 = vunpack.c.h.b16 %v2203
    %v2394 = vunpack.c.l.b16 %v2204
    %v2395 = vunpack.c.h.b16 %v2204
    %v2396 = vunpack.c.l.b16 %v2205
    %v2397 = vunpack.c.h.b16 %v2205
    %v2398 = vunpack.c.l.b16 %v2206
    %v2399 = vunpack.c.h.b16 %v2206
    %v2400 = vunpack.c.l.b16 %v2207
    %v2401 = vunpack.c.h.b16 %v2207
    %v2402 = vunpack.c.l.b16 %v2208
    %v2403 = vunpack.c.h.b16 %v2208
    %v2404 = vunpack.c.l.b16 %v2209
    %v2405 = vunpack.c.h.b16 %v2209
    %v2406 = vunpack.c.l.b16 %v2210
    %v2407 = vunpack.c.h.b16 %v2210
    %v2408 = vunpack.c.l.b16 %v2211
    %v2409 = vunpack.c.h.b16 %v2211
    %v2410 = vunpack.c.l.b16 %v2212
    %v2411 = vunpack.c.h.b16 %v2212
    %v2412 = vunpack.c.l.b16 %v2213
    %v2413 = vunpack.c.h.b16 %v2213
    %v2414 = vunpack.c.l.b16 %v2214
    %v2415 = vunpack.c.h.b16 %v2214
    %v2416 = vunpack.c.l.b16 %v2215
    %v2417 = vunpack.c.h.b16 %v2215
    %v2418 = vunpack.c.l.b16 %v2216
    %v2419 = vunpack.c.h.b16 %v2216
    %v2420 = vunpack.c.l.b16 %v2217
    %v2421 = vunpack.c.h.b16 %v2217
    %v2422 = vunpack.c.l.b16 %v2218
    %v2423 = vunpack.c.h.b16 %v2218
    %v2424 = vunpack.c.l.b16 %v2219
    %v2425 = vunpack.c.h.b16 %v2219
    %v2426 = vunpack.c.l.b16 %v2220
    %v2427 = vunpack.c.h.b16 %v2220
    %v2428 = vunpack.c.l.b16 %v2221
    %v2429 = vunpack.c.h.b16 %v2221
    %v2430 = vunpack.c.l.b16 %v2222
    %v2431 = vunpack.c.h.b16 %v2222
    %v2432 = vunpack.c.l.b16 %v2223
    %v2433 = vunpack.c.h.b16 %v2223
    %v2434 = vunpack.c.l.b16 %v2224
    %v2435 = vunpack.c.h.b16 %v2224
    %v2436 = vunpack.c.l.b16 %v2225
    %v2437 = vunpack.c.h.b16 %v2225
    %v2438 = vunpack.c.l.b16 %v2226
    %v2439 = vunpack.c.h.b16 %v2226
    %v2440 = vunpack.c.l.b16 %v2227
    %v2441 = vunpack.c.h.b16 %v2227
    %v2442 = vunpack.c.l.b16 %v2228
    %v2443 = vunpack.c.h.b16 %v2228
    %v2444 = vunpack.c.l.b16 %v2229
    %v2445 = vunpack.c.h.b16 %v2229
    %v2446 = vunpack.c.l.b16 %v2230
    %v2447 = vunpack.c.h.b16 %v2230
    %v2448 = vunpack.c.l.b16 %v2231
    %v2449 = vunpack.c.h.b16 %v2231
    %v2450 = vunpack.c.l.b16 %v2232
    %v2451 = vunpack.c.h.b16 %v2232
    %v2452 = vunpack.c.l.b16 %v2233
    %v2453 = vunpack.c.h.b16 %v2233
    %v2454 = vpack.c.b16 %v2330, %v2326
    %v2455 = vpack.c.b16 %v2331, %v2327
    %v2456 = vpack.c.b16 %v2332, %v2328
    %v2457 = vpack.c.b16 %v2333, %v2329
    %v2458 = vpack.c.b16 %v2338, %v2334
    %v2459 = vpack.c.b16 %v2339, %v2335
    %v2460 = vpack.c.b16 %v2340, %v2336
    %v2461 = vpack.c.b16 %v2341, %v2337
    %v2462 = vpack.c.b16 %v2346, %v2342
    %v2463 = vpack.c.b16 %v2347, %v2343
    %v2464 = vpack.c.b16 %v2348, %v2344
    %v2465 = vpack.c.b16 %v2349, %v2345
    %v2466 = vpack.c.b16 %v2354, %v2350
    %v2467 = vpack.c.b16 %v2355, %v2351
    %v2468 = vpack.c.b16 %v2356, %v2352
    %v2469 = vpack.c.b16 %v2357, %v2353
    %v2470 = vpack.c.b16 %v2362, %v2358
    %v2471 = vpack.c.b16 %v2363, %v2359
    %v2472 = vpack.c.b16 %v2364, %v2360
    %v2473 = vpack.c.b16 %v2365, %v2361
    %v2474 = vpack.c.b16 %v2370, %v2366
    %v2475 = vpack.c.b16 %v2371, %v2367
    %v2476 = vpack.c.b16 %v2372, %v2368
    %v2477 = vpack.c.b16 %v2373, %v2369
    %v2478 = vpack.c.b16 %v2378, %v2374
    %v2479 = vpack.c.b16 %v2379, %v2375
    %v2480 = vpack.c.b16 %v2380, %v2376
    %v2481 = vpack.c.b16 %v2381, %v2377
    %v2482 = vpack.c.b16 %v2386, %v2382
    %v2483 = vpack.c.b16 %v2387, %v2383
    %v2484 = vpack.c.b16 %v2388, %v2384
    %v2485 = vpack.c.b16 %v2389, %v2385
    %v2486 = vpack.c.b16 %v2394, %v2390
    %v2487 = vpack.c.b16 %v2395, %v2391
    %v2488 = vpack.c.b16 %v2396, %v2392
    %v2489 = vpack.c.b16 %v2397, %v2393
    %v2490 = vpack.c.b16 %v2402, %v2398
    %v2491 = vpack.c.b16 %v2403, %v2399
    %v2492 = vpack.c.b16 %v2404, %v2400
    %v2493 = vpack.c.b16 %v2405, %v2401
    %v2494 = vpack.c.b16 %v2410, %v2406
    %v2495 = vpack.c.b16 %v2411, %v2407
    %v2496 = vpack.c.b16 %v2412, %v2408
    %v2497 = vpack.c.b16 %v2413, %v2409
    %v2498 = vpack.c.b16 %v2418, %v2414
    %v2499 = vpack.c.b16 %v2419, %v2415
    %v2500 = vpack.c.b16 %v2420, %v2416
    %v2501 = vpack.c.b16 %v2421, %v2417
    %v2502 = vpack.c.b16 %v2426, %v2422
    %v2503 = vpack.c.b16 %v2427, %v2423
    %v2504 = vpack.c.b16 %v2428, %v2424
    %v2505 = vpack.c.b16 %v2429, %v2425
    %v2506 = vpack.c.b16 %v2434, %v2430
    %v2507 = vpack.c.b16 %v2435, %v2431
    %v2508 = vpack.c.b16 %v2436, %v2432
    %v2509 = vpack.c.b16 %v2437, %v2433
    %v2510 = vpack.c.b16 %v2442, %v2438
    %v2511 = vpack.c.b16 %v2443, %v2439
    %v2512 = vpack.c.b16 %v2444, %v2440
    %v2513 = vpack.c.b16 %v2445, %v2441
    %v2514 = vpack.c.b16 %v2450, %v2446
    %v2515 = vpack.c.b16 %v2451, %v2447
    %v2516 = vpack.c.b16 %v2452, %v2448
    %v2517 = vpack.c.b16 %v2453, %v2449
    %2582 = vmatprep.subr.bf16.mxu0 %v2483
    %2583 = vmatpush1.bf16.msra.mxu0 %v2482
    %2584 = vmatprep.subr.bf16.mxu0 %v2479
    %2585 = vmatpush1.bf16.msra.mxu0 %v2478
    %2586 = vmatprep.subr.bf16.mxu0 %v2475
    %2587 = vmatpush1.bf16.msra.mxu0 %v2474
    %2588 = vmatprep.subr.bf16.mxu0 %v2471
    %2589 = vmatpush1.bf16.msra.mxu0 %v2470
    %2590 = vmatprep.subr.bf16.mxu0 %v2467
    %2591 = vmatpush1.bf16.msra.mxu0 %v2466
    %2592 = vmatprep.subr.bf16.mxu0 %v2463
    %2593 = vmatpush1.bf16.msra.mxu0 %v2462
    %2594 = vmatprep.subr.bf16.mxu0 %v2459
    %2595 = vmatpush1.bf16.msra.mxu0 %v2458
    %2596 = vmatprep.subr.bf16.mxu0 %v2455
    %2597 = vmatpush1.bf16.msra.mxu0 %v2454
    %2598 = vmatprep.subr.bf16.mxu0 %v2515
    %2599 = vmatpush2.bf16.msra.mxu0 %v2514
    %2600 = vmatprep.subr.bf16.mxu0 %v2511
    %2601 = vmatpush2.bf16.msra.mxu0 %v2510
    %2602 = vmatprep.subr.bf16.mxu0 %v2507
    %2603 = vmatpush2.bf16.msra.mxu0 %v2506
    %2604 = vmatprep.subr.bf16.mxu0 %v2503
    %2605 = vmatpush2.bf16.msra.mxu0 %v2502
    %2606 = vmatprep.subr.bf16.mxu0 %v2499
    %2607 = vmatpush2.bf16.msra.mxu0 %v2498
    %2608 = vmatprep.subr.bf16.mxu0 %v2495
    %2609 = vmatpush2.bf16.msra.mxu0 %v2494
    %2610 = vmatprep.subr.bf16.mxu0 %v2491
    %2611 = vmatpush2.bf16.msra.mxu0 %v2490
    %2612 = vmatprep.subr.bf16.mxu0 %v2487
    %2613 = vmatpush2.bf16.msra.mxu0 %v2486
    %2614 = vmatprep.mubr.bf16.mxu0 %v2259
    %2615 = vmatmul.mubr.bf16.gmra.mxu0 %v2258
    %v2616 = vpop.f32.mrf.mxu0
    %v2617 = vadd.f32 %v2239, %v2616
    %v2618 = vpop.f32.mrf.mxu0
    %v2619 = vadd.f32 %v2243, %v2618
    %v2620 = vpop.f32.mrf.mxu0
    %v2621 = vpop.f32.mrf.mxu0
    %2622 = vdwg.mxu0
    %2623 = vmatprep.subr.bf16.mxu0 %v2485
    %2624 = vmatpush1.bf16.msra.mxu0 %v2484
    %2625 = vmatprep.subr.bf16.mxu0 %v2481
    %2626 = vmatpush1.bf16.msra.mxu0 %v2480
    %2627 = vmatprep.subr.bf16.mxu0 %v2477
    %2628 = vmatpush1.bf16.msra.mxu0 %v2476
    %2629 = vmatprep.subr.bf16.mxu0 %v2473
    %2630 = vmatpush1.bf16.msra.mxu0 %v2472
    %2631 = vmatprep.subr.bf16.mxu0 %v2469
    %2632 = vmatpush1.bf16.msra.mxu0 %v2468
    %2633 = vmatprep.subr.bf16.mxu0 %v2465
    %2634 = vmatpush1.bf16.msra.mxu0 %v2464
    %2635 = vmatprep.subr.bf16.mxu0 %v2461
    %2636 = vmatpush1.bf16.msra.mxu0 %v2460
    %2637 = vmatprep.subr.bf16.mxu0 %v2457
    %2638 = vmatpush1.bf16.msra.mxu0 %v2456
    %2639 = vmatprep.subr.bf16.mxu0 %v2517
    %2640 = vmatpush2.bf16.msra.mxu0 %v2516
    %2641 = vmatprep.subr.bf16.mxu0 %v2513
    %2642 = vmatpush2.bf16.msra.mxu0 %v2512
    %2643 = vmatprep.subr.bf16.mxu0 %v2509
    %2644 = vmatpush2.bf16.msra.mxu0 %v2508
    %2645 = vmatprep.subr.bf16.mxu0 %v2505
    %2646 = vmatpush2.bf16.msra.mxu0 %v2504
    %2647 = vmatprep.subr.bf16.mxu0 %v2501
    %2648 = vmatpush2.bf16.msra.mxu0 %v2500
    %2649 = vmatprep.subr.bf16.mxu0 %v2497
    %2650 = vmatpush2.bf16.msra.mxu0 %v2496
    %2651 = vmatprep.subr.bf16.mxu0 %v2493
    %2652 = vmatpush2.bf16.msra.mxu0 %v2492
    %2653 = vmatprep.subr.bf16.mxu0 %v2489
    %2654 = vmatpush2.bf16.msra.mxu0 %v2488
    %2655 = vmatprep.mubr.bf16.mxu0 %v2259
    %2656 = vmatmul.mubr.bf16.gmra.mxu0 %v2258
    %v2657 = vpop.f32.mrf.mxu0
    %v2658 = vadd.f32 %v2247, %v2657
    %v2659 = vpop.f32.mrf.mxu0
    %v2660 = vadd.f32 %v2251, %v2659
    %v2661 = vpop.f32.mrf.mxu0
    %v2662 = vpop.f32.mrf.mxu0
    %2663 = vdwg.mxu0
    %v2664 = vpack.c.bf16 %v2617, %v2617
    %v2665 = vpack.c.bf16 %v2619, %v2619
    %v2666 = vpack.c.bf16 %v2658, %v2658
    %v2667 = vpack.c.bf16 %v2660, %v2660
    %v2668 = vld [vmem:[#allocation3] sm:$0xff]
    %v2669 = vld [vmem:[#allocation3 + $0x8] sm:$0xff]
    %v2670 = vld [vmem:[#allocation3 + $0x10] sm:$0xff]
    %v2671 = vld [vmem:[#allocation3 + $0x18] sm:$0xff]
    %v2672 = vld [vmem:[#allocation3 + $0x20] sm:$0xff]
    %v2673 = vld [vmem:[#allocation3 + $0x28] sm:$0xff]
    %v2674 = vld [vmem:[#allocation3 + $0x30] sm:$0xff]
    %v2675 = vld [vmem:[#allocation3 + $0x38] sm:$0xff]
    %v2676 = vld [vmem:[#allocation3 + $0x40] sm:$0xff]
    %v2677 = vld [vmem:[#allocation3 + $0x48] sm:$0xff]
    %v2678 = vld [vmem:[#allocation3 + $0x50] sm:$0xff]
    %v2679 = vld [vmem:[#allocation3 + $0x58] sm:$0xff]
    %v2680 = vld [vmem:[#allocation3 + $0x60] sm:$0xff]
    %v2681 = vld [vmem:[#allocation3 + $0x68] sm:$0xff]
    %v2682 = vld [vmem:[#allocation3 + $0x70] sm:$0xff]
    %v2683 = vld [vmem:[#allocation3 + $0x78] sm:$0xff]
    %v2684 = vld [vmem:[#allocation3 + $0x80] sm:$0xff]
    %v2685 = vld [vmem:[#allocation3 + $0x88] sm:$0xff]
    %v2686 = vld [vmem:[#allocation3 + $0x90] sm:$0xff]
    %v2687 = vld [vmem:[#allocation3 + $0x98] sm:$0xff]
    %v2688 = vld [vmem:[#allocation3 + $0xa0] sm:$0xff]
    %v2689 = vld [vmem:[#allocation3 + $0xa8] sm:$0xff]
    %v2690 = vld [vmem:[#allocation3 + $0xb0] sm:$0xff]
    %v2691 = vld [vmem:[#allocation3 + $0xb8] sm:$0xff]
    %v2692 = vld [vmem:[#allocation3 + $0xc0] sm:$0xff]
    %v2693 = vld [vmem:[#allocation3 + $0xc8] sm:$0xff]
    %v2694 = vld [vmem:[#allocation3 + $0xd0] sm:$0xff]
    %v2695 = vld [vmem:[#allocation3 + $0xd8] sm:$0xff]
    %v2696 = vld [vmem:[#allocation3 + $0xe0] sm:$0xff]
    %v2697 = vld [vmem:[#allocation3 + $0xe8] sm:$0xff]
    %v2698 = vld [vmem:[#allocation3 + $0xf0] sm:$0xff]
    %v2699 = vld [vmem:[#allocation3 + $0xf8] sm:$0xff]
    %v2700 = vld [vmem:[#allocation3 + $0x100] sm:$0xff]
    %v2701 = vld [vmem:[#allocation3 + $0x108] sm:$0xff]
    %v2702 = vld [vmem:[#allocation3 + $0x110] sm:$0xff]
    %v2703 = vld [vmem:[#allocation3 + $0x118] sm:$0xff]
    %v2704 = vld [vmem:[#allocation3 + $0x120] sm:$0xff]
    %v2705 = vld [vmem:[#allocation3 + $0x128] sm:$0xff]
    %v2706 = vld [vmem:[#allocation3 + $0x130] sm:$0xff]
    %v2707 = vld [vmem:[#allocation3 + $0x138] sm:$0xff]
    %v2708 = vld [vmem:[#allocation3 + $0x140] sm:$0xff]
    %v2709 = vld [vmem:[#allocation3 + $0x148] sm:$0xff]
    %v2710 = vld [vmem:[#allocation3 + $0x150] sm:$0xff]
    %v2711 = vld [vmem:[#allocation3 + $0x158] sm:$0xff]
    %v2712 = vld [vmem:[#allocation3 + $0x160] sm:$0xff]
    %v2713 = vld [vmem:[#allocation3 + $0x168] sm:$0xff]
    %v2714 = vld [vmem:[#allocation3 + $0x170] sm:$0xff]
    %v2715 = vld [vmem:[#allocation3 + $0x178] sm:$0xff]
    %v2716 = vld [vmem:[#allocation3 + $0x180] sm:$0xff]
    %v2717 = vld [vmem:[#allocation3 + $0x188] sm:$0xff]
    %v2718 = vld [vmem:[#allocation3 + $0x190] sm:$0xff]
    %v2719 = vld [vmem:[#allocation3 + $0x198] sm:$0xff]
    %v2720 = vld [vmem:[#allocation3 + $0x1a0] sm:$0xff]
    %v2721 = vld [vmem:[#allocation3 + $0x1a8] sm:$0xff]
    %v2722 = vld [vmem:[#allocation3 + $0x1b0] sm:$0xff]
    %v2723 = vld [vmem:[#allocation3 + $0x1b8] sm:$0xff]
    %v2724 = vld [vmem:[#allocation3 + $0x1c0] sm:$0xff]
    %v2725 = vld [vmem:[#allocation3 + $0x1c8] sm:$0xff]
    %v2726 = vld [vmem:[#allocation3 + $0x1d0] sm:$0xff]
    %v2727 = vld [vmem:[#allocation3 + $0x1d8] sm:$0xff]
    %v2728 = vld [vmem:[#allocation3 + $0x1e0] sm:$0xff]
    %v2729 = vld [vmem:[#allocation3 + $0x1e8] sm:$0xff]
    %v2730 = vld [vmem:[#allocation3 + $0x1f0] sm:$0xff]
    %v2731 = vld [vmem:[#allocation3 + $0x1f8] sm:$0xff]
    %v2732 = vld [vmem:[#allocation3 + $0x200] sm:$0xff]
    %v2733 = vld [vmem:[#allocation3 + $0x208] sm:$0xff]
    %v2734 = vld [vmem:[#allocation3 + $0x210] sm:$0xff]
    %v2735 = vld [vmem:[#allocation3 + $0x218] sm:$0xff]
    %v2736 = vld [vmem:[#allocation3 + $0x220] sm:$0xff]
    %v2737 = vld [vmem:[#allocation3 + $0x228] sm:$0xff]
    %v2738 = vld [vmem:[#allocation3 + $0x230] sm:$0xff]
    %v2739 = vld [vmem:[#allocation3 + $0x238] sm:$0xff]
    %v2740 = vld [vmem:[#allocation3 + $0x240] sm:$0xff]
    %v2741 = vld [vmem:[#allocation3 + $0x248] sm:$0xff]
    %v2742 = vld [vmem:[#allocation3 + $0x250] sm:$0xff]
    %v2743 = vld [vmem:[#allocation3 + $0x258] sm:$0xff]
    %v2744 = vld [vmem:[#allocation3 + $0x260] sm:$0xff]
    %v2745 = vld [vmem:[#allocation3 + $0x268] sm:$0xff]
    %v2746 = vld [vmem:[#allocation3 + $0x270] sm:$0xff]
    %v2747 = vld [vmem:[#allocation3 + $0x278] sm:$0xff]
    %v2748 = vld [vmem:[#allocation3 + $0x280] sm:$0xff]
    %v2749 = vld [vmem:[#allocation3 + $0x288] sm:$0xff]
    %v2750 = vld [vmem:[#allocation3 + $0x290] sm:$0xff]
    %v2751 = vld [vmem:[#allocation3 + $0x298] sm:$0xff]
    %v2752 = vld [vmem:[#allocation3 + $0x2a0] sm:$0xff]
    %v2753 = vld [vmem:[#allocation3 + $0x2a8] sm:$0xff]
    %v2754 = vld [vmem:[#allocation3 + $0x2b0] sm:$0xff]
    %v2755 = vld [vmem:[#allocation3 + $0x2b8] sm:$0xff]
    %v2756 = vld [vmem:[#allocation3 + $0x2c0] sm:$0xff]
    %v2757 = vld [vmem:[#allocation3 + $0x2c8] sm:$0xff]
    %v2758 = vld [vmem:[#allocation3 + $0x2d0] sm:$0xff]
    %v2759 = vld [vmem:[#allocation3 + $0x2d8] sm:$0xff]
    %v2760 = vld [vmem:[#allocation3 + $0x2e0] sm:$0xff]
    %v2761 = vld [vmem:[#allocation3 + $0x2e8] sm:$0xff]
    %v2762 = vld [vmem:[#allocation3 + $0x2f0] sm:$0xff]
    %v2763 = vld [vmem:[#allocation3 + $0x2f8] sm:$0xff]
    %v2764 = vld [vmem:[#allocation3 + $0x300] sm:$0xff]
    %v2765 = vld [vmem:[#allocation3 + $0x308] sm:$0xff]
    %v2766 = vld [vmem:[#allocation3 + $0x310] sm:$0xff]
    %v2767 = vld [vmem:[#allocation3 + $0x318] sm:$0xff]
    %v2768 = vld [vmem:[#allocation3 + $0x320] sm:$0xff]
    %v2769 = vld [vmem:[#allocation3 + $0x328] sm:$0xff]
    %v2770 = vld [vmem:[#allocation3 + $0x330] sm:$0xff]
    %v2771 = vld [vmem:[#allocation3 + $0x338] sm:$0xff]
    %v2772 = vld [vmem:[#allocation3 + $0x340] sm:$0xff]
    %v2773 = vld [vmem:[#allocation3 + $0x348] sm:$0xff]
    %v2774 = vld [vmem:[#allocation3 + $0x350] sm:$0xff]
    %v2775 = vld [vmem:[#allocation3 + $0x358] sm:$0xff]
    %v2776 = vld [vmem:[#allocation3 + $0x360] sm:$0xff]
    %v2777 = vld [vmem:[#allocation3 + $0x368] sm:$0xff]
    %v2778 = vld [vmem:[#allocation3 + $0x370] sm:$0xff]
    %v2779 = vld [vmem:[#allocation3 + $0x378] sm:$0xff]
    %v2780 = vld [vmem:[#allocation3 + $0x380] sm:$0xff]
    %v2781 = vld [vmem:[#allocation3 + $0x388] sm:$0xff]
    %v2782 = vld [vmem:[#allocation3 + $0x390] sm:$0xff]
    %v2783 = vld [vmem:[#allocation3 + $0x398] sm:$0xff]
    %v2784 = vld [vmem:[#allocation3 + $0x3a0] sm:$0xff]
    %v2785 = vld [vmem:[#allocation3 + $0x3a8] sm:$0xff]
    %v2786 = vld [vmem:[#allocation3 + $0x3b0] sm:$0xff]
    %v2787 = vld [vmem:[#allocation3 + $0x3b8] sm:$0xff]
    %v2788 = vld [vmem:[#allocation3 + $0x3c0] sm:$0xff]
    %v2789 = vld [vmem:[#allocation3 + $0x3c8] sm:$0xff]
    %v2790 = vld [vmem:[#allocation3 + $0x3d0] sm:$0xff]
    %v2791 = vld [vmem:[#allocation3 + $0x3d8] sm:$0xff]
    %v2792 = vld [vmem:[#allocation3 + $0x3e0] sm:$0xff]
    %v2793 = vld [vmem:[#allocation3 + $0x3e8] sm:$0xff]
    %v2794 = vld [vmem:[#allocation3 + $0x3f0] sm:$0xff]
    %v2795 = vld [vmem:[#allocation3 + $0x3f8] sm:$0xff]
    %v2796 = vld [vmem:[%s5] sm:$0xf]
    %v2798 = vlaneseq
    %v2799 = vshrl.u32 %v2798, 7
    %v2800 = vsub.s32 0, %v2799
    %v2801 = vrot.slane %v2796, %v2800
    %v2802 = vlaneseq
    %v2803 = vshrl.u32 %v2802, 7
    %v2804 = vsub.s32 1, %v2803
    %v2805 = vrot.slane %v2796, %v2804
    %v2806 = vlaneseq
    %v2807 = vshrl.u32 %v2806, 7
    %v2808 = vsub.s32 2, %v2807
    %v2809 = vrot.slane %v2796, %v2808
    %v2810 = vlaneseq
    %v2811 = vshrl.u32 %v2810, 7
    %v2812 = vsub.s32 3, %v2811
    %v2813 = vrot.slane %v2796, %v2812
    %v2946 = vunpack.c.l.b16 %v2668
    %v2947 = vunpack.c.h.b16 %v2668
    %v2948 = vunpack.c.l.b16 %v2669
    %v2949 = vunpack.c.h.b16 %v2669
    %v2950 = vunpack.c.l.b16 %v2670
    %v2951 = vunpack.c.h.b16 %v2670
    %v2952 = vunpack.c.l.b16 %v2671
    %v2953 = vunpack.c.h.b16 %v2671
    %v2954 = vunpack.c.l.b16 %v2672
    %v2955 = vunpack.c.h.b16 %v2672
    %v2956 = vunpack.c.l.b16 %v2673
    %v2957 = vunpack.c.h.b16 %v2673
    %v2958 = vunpack.c.l.b16 %v2674
    %v2959 = vunpack.c.h.b16 %v2674
    %v2960 = vunpack.c.l.b16 %v2675
    %v2961 = vunpack.c.h.b16 %v2675
    %v2962 = vunpack.c.l.b16 %v2676
    %v2963 = vunpack.c.h.b16 %v2676
    %v2964 = vunpack.c.l.b16 %v2677
    %v2965 = vunpack.c.h.b16 %v2677
    %v2966 = vunpack.c.l.b16 %v2678
    %v2967 = vunpack.c.h.b16 %v2678
    %v2968 = vunpack.c.l.b16 %v2679
    %v2969 = vunpack.c.h.b16 %v2679
    %v2970 = vunpack.c.l.b16 %v2680
    %v2971 = vunpack.c.h.b16 %v2680
    %v2972 = vunpack.c.l.b16 %v2681
    %v2973 = vunpack.c.h.b16 %v2681
    %v2974 = vunpack.c.l.b16 %v2682
    %v2975 = vunpack.c.h.b16 %v2682
    %v2976 = vunpack.c.l.b16 %v2683
    %v2977 = vunpack.c.h.b16 %v2683
    %v2978 = vunpack.c.l.b16 %v2684
    %v2979 = vunpack.c.h.b16 %v2684
    %v2980 = vunpack.c.l.b16 %v2685
    %v2981 = vunpack.c.h.b16 %v2685
    %v2982 = vunpack.c.l.b16 %v2686
    %v2983 = vunpack.c.h.b16 %v2686
    %v2984 = vunpack.c.l.b16 %v2687
    %v2985 = vunpack.c.h.b16 %v2687
    %v2986 = vunpack.c.l.b16 %v2688
    %v2987 = vunpack.c.h.b16 %v2688
    %v2988 = vunpack.c.l.b16 %v2689
    %v2989 = vunpack.c.h.b16 %v2689
    %v2990 = vunpack.c.l.b16 %v2690
    %v2991 = vunpack.c.h.b16 %v2690
    %v2992 = vunpack.c.l.b16 %v2691
    %v2993 = vunpack.c.h.b16 %v2691
    %v2994 = vunpack.c.l.b16 %v2692
    %v2995 = vunpack.c.h.b16 %v2692
    %v2996 = vunpack.c.l.b16 %v2693
    %v2997 = vunpack.c.h.b16 %v2693
    %v2998 = vunpack.c.l.b16 %v2694
    %v2999 = vunpack.c.h.b16 %v2694
    %v3000 = vunpack.c.l.b16 %v2695
    %v3001 = vunpack.c.h.b16 %v2695
    %v3002 = vunpack.c.l.b16 %v2696
    %v3003 = vunpack.c.h.b16 %v2696
    %v3004 = vunpack.c.l.b16 %v2697
    %v3005 = vunpack.c.h.b16 %v2697
    %v3006 = vunpack.c.l.b16 %v2698
    %v3007 = vunpack.c.h.b16 %v2698
    %v3008 = vunpack.c.l.b16 %v2699
    %v3009 = vunpack.c.h.b16 %v2699
    %v3010 = vunpack.c.l.b16 %v2700
    %v3011 = vunpack.c.h.b16 %v2700
    %v3012 = vunpack.c.l.b16 %v2701
    %v3013 = vunpack.c.h.b16 %v2701
    %v3014 = vunpack.c.l.b16 %v2702
    %v3015 = vunpack.c.h.b16 %v2702
    %v3016 = vunpack.c.l.b16 %v2703
    %v3017 = vunpack.c.h.b16 %v2703
    %v3018 = vunpack.c.l.b16 %v2704
    %v3019 = vunpack.c.h.b16 %v2704
    %v3020 = vunpack.c.l.b16 %v2705
    %v3021 = vunpack.c.h.b16 %v2705
    %v3022 = vunpack.c.l.b16 %v2706
    %v3023 = vunpack.c.h.b16 %v2706
    %v3024 = vunpack.c.l.b16 %v2707
    %v3025 = vunpack.c.h.b16 %v2707
    %v3026 = vunpack.c.l.b16 %v2708
    %v3027 = vunpack.c.h.b16 %v2708
    %v3028 = vunpack.c.l.b16 %v2709
    %v3029 = vunpack.c.h.b16 %v2709
    %v3030 = vunpack.c.l.b16 %v2710
    %v3031 = vunpack.c.h.b16 %v2710
    %v3032 = vunpack.c.l.b16 %v2711
    %v3033 = vunpack.c.h.b16 %v2711
    %v3034 = vunpack.c.l.b16 %v2712
    %v3035 = vunpack.c.h.b16 %v2712
    %v3036 = vunpack.c.l.b16 %v2713
    %v3037 = vunpack.c.h.b16 %v2713
    %v3038 = vunpack.c.l.b16 %v2714
    %v3039 = vunpack.c.h.b16 %v2714
    %v3040 = vunpack.c.l.b16 %v2715
    %v3041 = vunpack.c.h.b16 %v2715
    %v3042 = vunpack.c.l.b16 %v2716
    %v3043 = vunpack.c.h.b16 %v2716
    %v3044 = vunpack.c.l.b16 %v2717
    %v3045 = vunpack.c.h.b16 %v2717
    %v3046 = vunpack.c.l.b16 %v2718
    %v3047 = vunpack.c.h.b16 %v2718
    %v3048 = vunpack.c.l.b16 %v2719
    %v3049 = vunpack.c.h.b16 %v2719
    %v3050 = vunpack.c.l.b16 %v2720
    %v3051 = vunpack.c.h.b16 %v2720
    %v3052 = vunpack.c.l.b16 %v2721
    %v3053 = vunpack.c.h.b16 %v2721
    %v3054 = vunpack.c.l.b16 %v2722
    %v3055 = vunpack.c.h.b16 %v2722
    %v3056 = vunpack.c.l.b16 %v2723
    %v3057 = vunpack.c.h.b16 %v2723
    %v3058 = vunpack.c.l.b16 %v2724
    %v3059 = vunpack.c.h.b16 %v2724
    %v3060 = vunpack.c.l.b16 %v2725
    %v3061 = vunpack.c.h.b16 %v2725
    %v3062 = vunpack.c.l.b16 %v2726
    %v3063 = vunpack.c.h.b16 %v2726
    %v3064 = vunpack.c.l.b16 %v2727
    %v3065 = vunpack.c.h.b16 %v2727
    %v3066 = vunpack.c.l.b16 %v2728
    %v3067 = vunpack.c.h.b16 %v2728
    %v3068 = vunpack.c.l.b16 %v2729
    %v3069 = vunpack.c.h.b16 %v2729
    %v3070 = vunpack.c.l.b16 %v2730
    %v3071 = vunpack.c.h.b16 %v2730
    %v3072 = vunpack.c.l.b16 %v2731
    %v3073 = vunpack.c.h.b16 %v2731
    %v3074 = vunpack.c.l.b16 %v2732
    %v3075 = vunpack.c.h.b16 %v2732
    %v3076 = vunpack.c.l.b16 %v2733
    %v3077 = vunpack.c.h.b16 %v2733
    %v3078 = vunpack.c.l.b16 %v2734
    %v3079 = vunpack.c.h.b16 %v2734
    %v3080 = vunpack.c.l.b16 %v2735
    %v3081 = vunpack.c.h.b16 %v2735
    %v3082 = vunpack.c.l.b16 %v2736
    %v3083 = vunpack.c.h.b16 %v2736
    %v3084 = vunpack.c.l.b16 %v2737
    %v3085 = vunpack.c.h.b16 %v2737
    %v3086 = vunpack.c.l.b16 %v2738
    %v3087 = vunpack.c.h.b16 %v2738
    %v3088 = vunpack.c.l.b16 %v2739
    %v3089 = vunpack.c.h.b16 %v2739
    %v3090 = vunpack.c.l.b16 %v2740
    %v3091 = vunpack.c.h.b16 %v2740
    %v3092 = vunpack.c.l.b16 %v2741
    %v3093 = vunpack.c.h.b16 %v2741
    %v3094 = vunpack.c.l.b16 %v2742
    %v3095 = vunpack.c.h.b16 %v2742
    %v3096 = vunpack.c.l.b16 %v2743
    %v3097 = vunpack.c.h.b16 %v2743
    %v3098 = vunpack.c.l.b16 %v2744
    %v3099 = vunpack.c.h.b16 %v2744
    %v3100 = vunpack.c.l.b16 %v2745
    %v3101 = vunpack.c.h.b16 %v2745
    %v3102 = vunpack.c.l.b16 %v2746
    %v3103 = vunpack.c.h.b16 %v2746
    %v3104 = vunpack.c.l.b16 %v2747
    %v3105 = vunpack.c.h.b16 %v2747
    %v3106 = vunpack.c.l.b16 %v2748
    %v3107 = vunpack.c.h.b16 %v2748
    %v3108 = vunpack.c.l.b16 %v2749
    %v3109 = vunpack.c.h.b16 %v2749
    %v3110 = vunpack.c.l.b16 %v2750
    %v3111 = vunpack.c.h.b16 %v2750
    %v3112 = vunpack.c.l.b16 %v2751
    %v3113 = vunpack.c.h.b16 %v2751
    %v3114 = vunpack.c.l.b16 %v2752
    %v3115 = vunpack.c.h.b16 %v2752
    %v3116 = vunpack.c.l.b16 %v2753
    %v3117 = vunpack.c.h.b16 %v2753
    %v3118 = vunpack.c.l.b16 %v2754
    %v3119 = vunpack.c.h.b16 %v2754
    %v3120 = vunpack.c.l.b16 %v2755
    %v3121 = vunpack.c.h.b16 %v2755
    %v3122 = vunpack.c.l.b16 %v2756
    %v3123 = vunpack.c.h.b16 %v2756
    %v3124 = vunpack.c.l.b16 %v2757
    %v3125 = vunpack.c.h.b16 %v2757
    %v3126 = vunpack.c.l.b16 %v2758
    %v3127 = vunpack.c.h.b16 %v2758
    %v3128 = vunpack.c.l.b16 %v2759
    %v3129 = vunpack.c.h.b16 %v2759
    %v3130 = vunpack.c.l.b16 %v2760
    %v3131 = vunpack.c.h.b16 %v2760
    %v3132 = vunpack.c.l.b16 %v2761
    %v3133 = vunpack.c.h.b16 %v2761
    %v3134 = vunpack.c.l.b16 %v2762
    %v3135 = vunpack.c.h.b16 %v2762
    %v3136 = vunpack.c.l.b16 %v2763
    %v3137 = vunpack.c.h.b16 %v2763
    %v3138 = vunpack.c.l.b16 %v2764
    %v3139 = vunpack.c.h.b16 %v2764
    %v3140 = vunpack.c.l.b16 %v2765
    %v3141 = vunpack.c.h.b16 %v2765
    %v3142 = vunpack.c.l.b16 %v2766
    %v3143 = vunpack.c.h.b16 %v2766
    %v3144 = vunpack.c.l.b16 %v2767
    %v3145 = vunpack.c.h.b16 %v2767
    %v3146 = vunpack.c.l.b16 %v2768
    %v3147 = vunpack.c.h.b16 %v2768
    %v3148 = vunpack.c.l.b16 %v2769
    %v3149 = vunpack.c.h.b16 %v2769
    %v3150 = vunpack.c.l.b16 %v2770
    %v3151 = vunpack.c.h.b16 %v2770
    %v3152 = vunpack.c.l.b16 %v2771
    %v3153 = vunpack.c.h.b16 %v2771
    %v3154 = vunpack.c.l.b16 %v2772
    %v3155 = vunpack.c.h.b16 %v2772
    %v3156 = vunpack.c.l.b16 %v2773
    %v3157 = vunpack.c.h.b16 %v2773
    %v3158 = vunpack.c.l.b16 %v2774
    %v3159 = vunpack.c.h.b16 %v2774
    %v3160 = vunpack.c.l.b16 %v2775
    %v3161 = vunpack.c.h.b16 %v2775
    %v3162 = vunpack.c.l.b16 %v2776
    %v3163 = vunpack.c.h.b16 %v2776
    %v3164 = vunpack.c.l.b16 %v2777
    %v3165 = vunpack.c.h.b16 %v2777
    %v3166 = vunpack.c.l.b16 %v2778
    %v3167 = vunpack.c.h.b16 %v2778
    %v3168 = vunpack.c.l.b16 %v2779
    %v3169 = vunpack.c.h.b16 %v2779
    %v3170 = vunpack.c.l.b16 %v2780
    %v3171 = vunpack.c.h.b16 %v2780
    %v3172 = vunpack.c.l.b16 %v2781
    %v3173 = vunpack.c.h.b16 %v2781
    %v3174 = vunpack.c.l.b16 %v2782
    %v3175 = vunpack.c.h.b16 %v2782
    %v3176 = vunpack.c.l.b16 %v2783
    %v3177 = vunpack.c.h.b16 %v2783
    %v3178 = vunpack.c.l.b16 %v2784
    %v3179 = vunpack.c.h.b16 %v2784
    %v3180 = vunpack.c.l.b16 %v2785
    %v3181 = vunpack.c.h.b16 %v2785
    %v3182 = vunpack.c.l.b16 %v2786
    %v3183 = vunpack.c.h.b16 %v2786
    %v3184 = vunpack.c.l.b16 %v2787
    %v3185 = vunpack.c.h.b16 %v2787
    %v3186 = vunpack.c.l.b16 %v2788
    %v3187 = vunpack.c.h.b16 %v2788
    %v3188 = vunpack.c.l.b16 %v2789
    %v3189 = vunpack.c.h.b16 %v2789
    %v3190 = vunpack.c.l.b16 %v2790
    %v3191 = vunpack.c.h.b16 %v2790
    %v3192 = vunpack.c.l.b16 %v2791
    %v3193 = vunpack.c.h.b16 %v2791
    %v3194 = vunpack.c.l.b16 %v2792
    %v3195 = vunpack.c.h.b16 %v2792
    %v3196 = vunpack.c.l.b16 %v2793
    %v3197 = vunpack.c.h.b16 %v2793
    %v3198 = vunpack.c.l.b16 %v2794
    %v3199 = vunpack.c.h.b16 %v2794
    %v3200 = vunpack.c.l.b16 %v2795
    %v3201 = vunpack.c.h.b16 %v2795
    %v3202 = vpack.c.b16 %v2950, %v2946
    %v3203 = vpack.c.b16 %v2951, %v2947
    %v3204 = vpack.c.b16 %v2952, %v2948
    %v3205 = vpack.c.b16 %v2953, %v2949
    %v3206 = vpack.c.b16 %v2958, %v2954
    %v3207 = vpack.c.b16 %v2959, %v2955
    %v3208 = vpack.c.b16 %v2960, %v2956
    %v3209 = vpack.c.b16 %v2961, %v2957
    %v3210 = vpack.c.b16 %v2966, %v2962
    %v3211 = vpack.c.b16 %v2967, %v2963
    %v3212 = vpack.c.b16 %v2968, %v2964
    %v3213 = vpack.c.b16 %v2969, %v2965
    %v3214 = vpack.c.b16 %v2974, %v2970
    %v3215 = vpack.c.b16 %v2975, %v2971
    %v3216 = vpack.c.b16 %v2976, %v2972
    %v3217 = vpack.c.b16 %v2977, %v2973
    %v3218 = vpack.c.b16 %v2982, %v2978
    %v3219 = vpack.c.b16 %v2983, %v2979
    %v3220 = vpack.c.b16 %v2984, %v2980
    %v3221 = vpack.c.b16 %v2985, %v2981
    %v3222 = vpack.c.b16 %v2990, %v2986
    %v3223 = vpack.c.b16 %v2991, %v2987
    %v3224 = vpack.c.b16 %v2992, %v2988
    %v3225 = vpack.c.b16 %v2993, %v2989
    %v3226 = vpack.c.b16 %v2998, %v2994
    %v3227 = vpack.c.b16 %v2999, %v2995
    %v3228 = vpack.c.b16 %v3000, %v2996
    %v3229 = vpack.c.b16 %v3001, %v2997
    %v3230 = vpack.c.b16 %v3006, %v3002
    %v3231 = vpack.c.b16 %v3007, %v3003
    %v3232 = vpack.c.b16 %v3008, %v3004
    %v3233 = vpack.c.b16 %v3009, %v3005
    %v3234 = vpack.c.b16 %v3014, %v3010
    %v3235 = vpack.c.b16 %v3015, %v3011
    %v3236 = vpack.c.b16 %v3016, %v3012
    %v3237 = vpack.c.b16 %v3017, %v3013
    %v3238 = vpack.c.b16 %v3022, %v3018
    %v3239 = vpack.c.b16 %v3023, %v3019
    %v3240 = vpack.c.b16 %v3024, %v3020
    %v3241 = vpack.c.b16 %v3025, %v3021
    %v3242 = vpack.c.b16 %v3030, %v3026
    %v3243 = vpack.c.b16 %v3031, %v3027
    %v3244 = vpack.c.b16 %v3032, %v3028
    %v3245 = vpack.c.b16 %v3033, %v3029
    %v3246 = vpack.c.b16 %v3038, %v3034
    %v3247 = vpack.c.b16 %v3039, %v3035
    %v3248 = vpack.c.b16 %v3040, %v3036
    %v3249 = vpack.c.b16 %v3041, %v3037
    %v3250 = vpack.c.b16 %v3046, %v3042
    %v3251 = vpack.c.b16 %v3047, %v3043
    %v3252 = vpack.c.b16 %v3048, %v3044
    %v3253 = vpack.c.b16 %v3049, %v3045
    %v3254 = vpack.c.b16 %v3054, %v3050
    %v3255 = vpack.c.b16 %v3055, %v3051
    %v3256 = vpack.c.b16 %v3056, %v3052
    %v3257 = vpack.c.b16 %v3057, %v3053
    %v3258 = vpack.c.b16 %v3062, %v3058
    %v3259 = vpack.c.b16 %v3063, %v3059
    %v3260 = vpack.c.b16 %v3064, %v3060
    %v3261 = vpack.c.b16 %v3065, %v3061
    %v3262 = vpack.c.b16 %v3070, %v3066
    %v3263 = vpack.c.b16 %v3071, %v3067
    %v3264 = vpack.c.b16 %v3072, %v3068
    %v3265 = vpack.c.b16 %v3073, %v3069
    %v3266 = vpack.c.b16 %v3078, %v3074
    %v3267 = vpack.c.b16 %v3079, %v3075
    %v3268 = vpack.c.b16 %v3080, %v3076
    %v3269 = vpack.c.b16 %v3081, %v3077
    %v3270 = vpack.c.b16 %v3086, %v3082
    %v3271 = vpack.c.b16 %v3087, %v3083
    %v3272 = vpack.c.b16 %v3088, %v3084
    %v3273 = vpack.c.b16 %v3089, %v3085
    %v3274 = vpack.c.b16 %v3094, %v3090
    %v3275 = vpack.c.b16 %v3095, %v3091
    %v3276 = vpack.c.b16 %v3096, %v3092
    %v3277 = vpack.c.b16 %v3097, %v3093
    %v3278 = vpack.c.b16 %v3102, %v3098
    %v3279 = vpack.c.b16 %v3103, %v3099
    %v3280 = vpack.c.b16 %v3104, %v3100
    %v3281 = vpack.c.b16 %v3105, %v3101
    %v3282 = vpack.c.b16 %v3110, %v3106
    %v3283 = vpack.c.b16 %v3111, %v3107
    %v3284 = vpack.c.b16 %v3112, %v3108
    %v3285 = vpack.c.b16 %v3113, %v3109
    %v3286 = vpack.c.b16 %v3118, %v3114
    %v3287 = vpack.c.b16 %v3119, %v3115
    %v3288 = vpack.c.b16 %v3120, %v3116
    %v3289 = vpack.c.b16 %v3121, %v3117
    %v3290 = vpack.c.b16 %v3126, %v3122
    %v3291 = vpack.c.b16 %v3127, %v3123
    %v3292 = vpack.c.b16 %v3128, %v3124
    %v3293 = vpack.c.b16 %v3129, %v3125
    %v3294 = vpack.c.b16 %v3134, %v3130
    %v3295 = vpack.c.b16 %v3135, %v3131
    %v3296 = vpack.c.b16 %v3136, %v3132
    %v3297 = vpack.c.b16 %v3137, %v3133
    %v3298 = vpack.c.b16 %v3142, %v3138
    %v3299 = vpack.c.b16 %v3143, %v3139
    %v3300 = vpack.c.b16 %v3144, %v3140
    %v3301 = vpack.c.b16 %v3145, %v3141
    %v3302 = vpack.c.b16 %v3150, %v3146
    %v3303 = vpack.c.b16 %v3151, %v3147
    %v3304 = vpack.c.b16 %v3152, %v3148
    %v3305 = vpack.c.b16 %v3153, %v3149
    %v3306 = vpack.c.b16 %v3158, %v3154
    %v3307 = vpack.c.b16 %v3159, %v3155
    %v3308 = vpack.c.b16 %v3160, %v3156
    %v3309 = vpack.c.b16 %v3161, %v3157
    %v3310 = vpack.c.b16 %v3166, %v3162
    %v3311 = vpack.c.b16 %v3167, %v3163
    %v3312 = vpack.c.b16 %v3168, %v3164
    %v3313 = vpack.c.b16 %v3169, %v3165
    %v3314 = vpack.c.b16 %v3174, %v3170
    %v3315 = vpack.c.b16 %v3175, %v3171
    %v3316 = vpack.c.b16 %v3176, %v3172
    %v3317 = vpack.c.b16 %v3177, %v3173
    %v3318 = vpack.c.b16 %v3182, %v3178
    %v3319 = vpack.c.b16 %v3183, %v3179
    %v3320 = vpack.c.b16 %v3184, %v3180
    %v3321 = vpack.c.b16 %v3185, %v3181
    %v3322 = vpack.c.b16 %v3190, %v3186
    %v3323 = vpack.c.b16 %v3191, %v3187
    %v3324 = vpack.c.b16 %v3192, %v3188
    %v3325 = vpack.c.b16 %v3193, %v3189
    %v3326 = vpack.c.b16 %v3198, %v3194
    %v3327 = vpack.c.b16 %v3199, %v3195
    %v3328 = vpack.c.b16 %v3200, %v3196
    %v3329 = vpack.c.b16 %v3201, %v3197
    %3458 = vmatprep.subr.bf16.mxu0 %v3231
    %3459 = vmatpush1.bf16.msra.mxu0 %v3230
    %3460 = vmatprep.subr.bf16.mxu0 %v3227
    %3461 = vmatpush1.bf16.msra.mxu0 %v3226
    %3462 = vmatprep.subr.bf16.mxu0 %v3223
    %3463 = vmatpush1.bf16.msra.mxu0 %v3222
    %3464 = vmatprep.subr.bf16.mxu0 %v3219
    %3465 = vmatpush1.bf16.msra.mxu0 %v3218
    %3466 = vmatprep.subr.bf16.mxu0 %v3215
    %3467 = vmatpush1.bf16.msra.mxu0 %v3214
    %3468 = vmatprep.subr.bf16.mxu0 %v3211
    %3469 = vmatpush1.bf16.msra.mxu0 %v3210
    %3470 = vmatprep.subr.bf16.mxu0 %v3207
    %3471 = vmatpush1.bf16.msra.mxu0 %v3206
    %3472 = vmatprep.subr.bf16.mxu0 %v3203
    %3473 = vmatpush1.bf16.msra.mxu0 %v3202
    %3474 = vmatprep.subr.bf16.mxu0 %v3263
    %3475 = vmatpush2.bf16.msra.mxu0 %v3262
    %3476 = vmatprep.subr.bf16.mxu0 %v3259
    %3477 = vmatpush2.bf16.msra.mxu0 %v3258
    %3478 = vmatprep.subr.bf16.mxu0 %v3255
    %3479 = vmatpush2.bf16.msra.mxu0 %v3254
    %3480 = vmatprep.subr.bf16.mxu0 %v3251
    %3481 = vmatpush2.bf16.msra.mxu0 %v3250
    %3482 = vmatprep.subr.bf16.mxu0 %v3247
    %3483 = vmatpush2.bf16.msra.mxu0 %v3246
    %3484 = vmatprep.subr.bf16.mxu0 %v3243
    %3485 = vmatpush2.bf16.msra.mxu0 %v3242
    %3486 = vmatprep.subr.bf16.mxu0 %v3239
    %3487 = vmatpush2.bf16.msra.mxu0 %v3238
    %3488 = vmatprep.subr.bf16.mxu0 %v3235
    %3489 = vmatpush2.bf16.msra.mxu0 %v3234
    %3490 = vmatprep.mubr.bf16.mxu0 %v2665
    %3491 = vmatmul.mubr.bf16.gmra.mxu0 %v2664
    %v3492 = vpop.f32.mrf.mxu0
    %v3493 = vadd.f32 %v2801, %v3492
    %v3494 = vpop.f32.mrf.mxu0
    %v3495 = vadd.f32 %v2805, %v3494
    %v3496 = vpop.f32.mrf.mxu0
    %v3497 = vpop.f32.mrf.mxu0
    %3498 = vdwg.mxu0
    %3499 = vmatprep.subr.bf16.mxu0 %v3295
    %3500 = vmatpush1.bf16.msra.mxu0 %v3294
    %3501 = vmatprep.subr.bf16.mxu0 %v3291
    %3502 = vmatpush1.bf16.msra.mxu0 %v3290
    %3503 = vmatprep.subr.bf16.mxu0 %v3287
    %3504 = vmatpush1.bf16.msra.mxu0 %v3286
    %3505 = vmatprep.subr.bf16.mxu0 %v3283
    %3506 = vmatpush1.bf16.msra.mxu0 %v3282
    %3507 = vmatprep.subr.bf16.mxu0 %v3279
    %3508 = vmatpush1.bf16.msra.mxu0 %v3278
    %3509 = vmatprep.subr.bf16.mxu0 %v3275
    %3510 = vmatpush1.bf16.msra.mxu0 %v3274
    %3511 = vmatprep.subr.bf16.mxu0 %v3271
    %3512 = vmatpush1.bf16.msra.mxu0 %v3270
    %3513 = vmatprep.subr.bf16.mxu0 %v3267
    %3514 = vmatpush1.bf16.msra.mxu0 %v3266
    %3515 = vmatprep.subr.bf16.mxu0 %v3327
    %3516 = vmatpush2.bf16.msra.mxu0 %v3326
    %3517 = vmatprep.subr.bf16.mxu0 %v3323
    %3518 = vmatpush2.bf16.msra.mxu0 %v3322
    %3519 = vmatprep.subr.bf16.mxu0 %v3319
    %3520 = vmatpush2.bf16.msra.mxu0 %v3318
    %3521 = vmatprep.subr.bf16.mxu0 %v3315
    %3522 = vmatpush2.bf16.msra.mxu0 %v3314
    %3523 = vmatprep.subr.bf16.mxu0 %v3311
    %3524 = vmatpush2.bf16.msra.mxu0 %v3310
    %3525 = vmatprep.subr.bf16.mxu0 %v3307
    %3526 = vmatpush2.bf16.msra.mxu0 %v3306
    %3527 = vmatprep.subr.bf16.mxu0 %v3303
    %3528 = vmatpush2.bf16.msra.mxu0 %v3302
    %3529 = vmatprep.subr.bf16.mxu0 %v3299
    %3530 = vmatpush2.bf16.msra.mxu0 %v3298
    %3531 = vmatprep.mubr.bf16.mxu0 %v2667
    %3532 = vmatmul.mubr.bf16.gmra.mxu0 %v2666
    %v3533 = vpop.f32.mrf.mxu0
    %v3534 = vadd.f32 %v3493, %v3533
    %v3535 = vpop.f32.mrf.mxu0
    %v3536 = vadd.f32 %v3495, %v3535
    %v3537 = vpop.f32.mrf.mxu0
    %v3538 = vpop.f32.mrf.mxu0
    %3539 = vdwg.mxu0
    %3540 = vmatprep.subr.bf16.mxu0 %v3233
    %3541 = vmatpush1.bf16.msra.mxu0 %v3232
    %3542 = vmatprep.subr.bf16.mxu0 %v3229
    %3543 = vmatpush1.bf16.msra.mxu0 %v3228
    %3544 = vmatprep.subr.bf16.mxu0 %v3225
    %3545 = vmatpush1.bf16.msra.mxu0 %v3224
    %3546 = vmatprep.subr.bf16.mxu0 %v3221
    %3547 = vmatpush1.bf16.msra.mxu0 %v3220
    %3548 = vmatprep.subr.bf16.mxu0 %v3217
    %3549 = vmatpush1.bf16.msra.mxu0 %v3216
    %3550 = vmatprep.subr.bf16.mxu0 %v3213
    %3551 = vmatpush1.bf16.msra.mxu0 %v3212
    %3552 = vmatprep.subr.bf16.mxu0 %v3209
    %3553 = vmatpush1.bf16.msra.mxu0 %v3208
    %3554 = vmatprep.subr.bf16.mxu0 %v3205
    %3555 = vmatpush1.bf16.msra.mxu0 %v3204
    %3556 = vmatprep.subr.bf16.mxu0 %v3265
    %3557 = vmatpush2.bf16.msra.mxu0 %v3264
    %3558 = vmatprep.subr.bf16.mxu0 %v3261
    %3559 = vmatpush2.bf16.msra.mxu0 %v3260
    %3560 = vmatprep.subr.bf16.mxu0 %v3257
    %3561 = vmatpush2.bf16.msra.mxu0 %v3256
    %3562 = vmatprep.subr.bf16.mxu0 %v3253
    %3563 = vmatpush2.bf16.msra.mxu0 %v3252
    %3564 = vmatprep.subr.bf16.mxu0 %v3249
    %3565 = vmatpush2.bf16.msra.mxu0 %v3248
    %3566 = vmatprep.subr.bf16.mxu0 %v3245
    %3567 = vmatpush2.bf16.msra.mxu0 %v3244
    %3568 = vmatprep.subr.bf16.mxu0 %v3241
    %3569 = vmatpush2.bf16.msra.mxu0 %v3240
    %3570 = vmatprep.subr.bf16.mxu0 %v3237
    %3571 = vmatpush2.bf16.msra.mxu0 %v3236
    %3572 = vmatprep.mubr.bf16.mxu0 %v2665
    %3573 = vmatmul.mubr.bf16.gmra.mxu0 %v2664
    %v3574 = vpop.f32.mrf.mxu0
    %v3575 = vadd.f32 %v2809, %v3574
    %v3576 = vpop.f32.mrf.mxu0
    %v3577 = vadd.f32 %v2813, %v3576
    %v3578 = vpop.f32.mrf.mxu0
    %v3579 = vpop.f32.mrf.mxu0
    %3580 = vdwg.mxu0
    %3581 = vmatprep.subr.bf16.mxu0 %v3297
    %3582 = vmatpush1.bf16.msra.mxu0 %v3296
    %3583 = vmatprep.subr.bf16.mxu0 %v3293
    %3584 = vmatpush1.bf16.msra.mxu0 %v3292
    %3585 = vmatprep.subr.bf16.mxu0 %v3289
    %3586 = vmatpush1.bf16.msra.mxu0 %v3288
    %3587 = vmatprep.subr.bf16.mxu0 %v3285
    %3588 = vmatpush1.bf16.msra.mxu0 %v3284
    %3589 = vmatprep.subr.bf16.mxu0 %v3281
    %3590 = vmatpush1.bf16.msra.mxu0 %v3280
    %3591 = vmatprep.subr.bf16.mxu0 %v3277
    %3592 = vmatpush1.bf16.msra.mxu0 %v3276
    %3593 = vmatprep.subr.bf16.mxu0 %v3273
    %3594 = vmatpush1.bf16.msra.mxu0 %v3272
    %3595 = vmatprep.subr.bf16.mxu0 %v3269
    %3596 = vmatpush1.bf16.msra.mxu0 %v3268
    %3597 = vmatprep.subr.bf16.mxu0 %v3329
    %3598 = vmatpush2.bf16.msra.mxu0 %v3328
    %3599 = vmatprep.subr.bf16.mxu0 %v3325
    %3600 = vmatpush2.bf16.msra.mxu0 %v3324
    %3601 = vmatprep.subr.bf16.mxu0 %v3321
    %3602 = vmatpush2.bf16.msra.mxu0 %v3320
    %3603 = vmatprep.subr.bf16.mxu0 %v3317
    %3604 = vmatpush2.bf16.msra.mxu0 %v3316
    %3605 = vmatprep.subr.bf16.mxu0 %v3313
    %3606 = vmatpush2.bf16.msra.mxu0 %v3312
    %3607 = vmatprep.subr.bf16.mxu0 %v3309
    %3608 = vmatpush2.bf16.msra.mxu0 %v3308
    %3609 = vmatprep.subr.bf16.mxu0 %v3305
    %3610 = vmatpush2.bf16.msra.mxu0 %v3304
    %3611 = vmatprep.subr.bf16.mxu0 %v3301
    %3612 = vmatpush2.bf16.msra.mxu0 %v3300
    %3613 = vmatprep.mubr.bf16.mxu0 %v2667
    %3614 = vmatmul.mubr.bf16.gmra.mxu0 %v2666
    %v3615 = vpop.f32.mrf.mxu0
    %v3616 = vadd.f32 %v3575, %v3615
    %v3617 = vpop.f32.mrf.mxu0
    %v3618 = vadd.f32 %v3577, %v3617
    %v3619 = vpop.f32.mrf.mxu0
    %v3620 = vpop.f32.mrf.mxu0
    %3621 = vdwg.mxu0
    %v3622 = vpack.c.bf16 %v3534, %v3534
    %v3623 = vpack.c.bf16 %v3536, %v3536
    %v3624 = vpack.c.bf16 %v3616, %v3616
    %v3625 = vpack.c.bf16 %v3618, %v3618
    %v3626 = vld [vmem:[#allocation4] sm:$0xf]
    %v3627 = vld [vmem:[#allocation4 + $0x4] sm:$0xf]
    %v3628 = vld [vmem:[#allocation4 + $0x8] sm:$0xf]
    %v3629 = vld [vmem:[#allocation4 + $0xc] sm:$0xf]
    %v3630 = vld [vmem:[#allocation4 + $0x10] sm:$0xf]
    %v3631 = vld [vmem:[#allocation4 + $0x14] sm:$0xf]
    %v3632 = vld [vmem:[#allocation4 + $0x18] sm:$0xf]
    %v3633 = vld [vmem:[#allocation4 + $0x1c] sm:$0xf]
    %v3634 = vld [vmem:[#allocation4 + $0x20] sm:$0xf]
    %v3635 = vld [vmem:[#allocation4 + $0x24] sm:$0xf]
    %v3636 = vld [vmem:[#allocation4 + $0x28] sm:$0xf]
    %v3637 = vld [vmem:[#allocation4 + $0x2c] sm:$0xf]
    %v3638 = vld [vmem:[#allocation4 + $0x30] sm:$0xf]
    %v3639 = vld [vmem:[#allocation4 + $0x34] sm:$0xf]
    %v3640 = vld [vmem:[#allocation4 + $0x38] sm:$0xf]
    %v3641 = vld [vmem:[#allocation4 + $0x3c] sm:$0xf]
    %v3642 = vld [vmem:[#allocation4 + $0x40] sm:$0xf]
    %v3643 = vld [vmem:[#allocation4 + $0x44] sm:$0xf]
    %v3644 = vld [vmem:[#allocation4 + $0x48] sm:$0xf]
    %v3645 = vld [vmem:[#allocation4 + $0x4c] sm:$0xf]
    %v3646 = vld [vmem:[#allocation4 + $0x50] sm:$0xf]
    %v3647 = vld [vmem:[#allocation4 + $0x54] sm:$0xf]
    %v3648 = vld [vmem:[#allocation4 + $0x58] sm:$0xf]
    %v3649 = vld [vmem:[#allocation4 + $0x5c] sm:$0xf]
    %v3650 = vld [vmem:[#allocation4 + $0x60] sm:$0xf]
    %v3651 = vld [vmem:[#allocation4 + $0x64] sm:$0xf]
    %v3652 = vld [vmem:[#allocation4 + $0x68] sm:$0xf]
    %v3653 = vld [vmem:[#allocation4 + $0x6c] sm:$0xf]
    %v3654 = vld [vmem:[#allocation4 + $0x70] sm:$0xf]
    %v3655 = vld [vmem:[#allocation4 + $0x74] sm:$0xf]
    %v3656 = vld [vmem:[#allocation4 + $0x78] sm:$0xf]
    %v3657 = vld [vmem:[#allocation4 + $0x7c] sm:$0xf]
    %v3658 = vld [vmem:[#allocation4 + $0x80] sm:$0xf]
    %v3659 = vld [vmem:[#allocation4 + $0x84] sm:$0xf]
    %v3660 = vld [vmem:[#allocation4 + $0x88] sm:$0xf]
    %v3661 = vld [vmem:[#allocation4 + $0x8c] sm:$0xf]
    %v3662 = vld [vmem:[#allocation4 + $0x90] sm:$0xf]
    %v3663 = vld [vmem:[#allocation4 + $0x94] sm:$0xf]
    %v3664 = vld [vmem:[#allocation4 + $0x98] sm:$0xf]
    %v3665 = vld [vmem:[#allocation4 + $0x9c] sm:$0xf]
    %v3666 = vld [vmem:[#allocation4 + $0xa0] sm:$0xf]
    %v3667 = vld [vmem:[#allocation4 + $0xa4] sm:$0xf]
    %v3668 = vld [vmem:[#allocation4 + $0xa8] sm:$0xf]
    %v3669 = vld [vmem:[#allocation4 + $0xac] sm:$0xf]
    %v3670 = vld [vmem:[#allocation4 + $0xb0] sm:$0xf]
    %v3671 = vld [vmem:[#allocation4 + $0xb4] sm:$0xf]
    %v3672 = vld [vmem:[#allocation4 + $0xb8] sm:$0xf]
    %v3673 = vld [vmem:[#allocation4 + $0xbc] sm:$0xf]
    %v3674 = vld [vmem:[#allocation4 + $0xc0] sm:$0xf]
    %v3675 = vld [vmem:[#allocation4 + $0xc4] sm:$0xf]
    %v3676 = vld [vmem:[#allocation4 + $0xc8] sm:$0xf]
    %v3677 = vld [vmem:[#allocation4 + $0xcc] sm:$0xf]
    %v3678 = vld [vmem:[#allocation4 + $0xd0] sm:$0xf]
    %v3679 = vld [vmem:[#allocation4 + $0xd4] sm:$0xf]
    %v3680 = vld [vmem:[#allocation4 + $0xd8] sm:$0xf]
    %v3681 = vld [vmem:[#allocation4 + $0xdc] sm:$0xf]
    %v3682 = vld [vmem:[#allocation4 + $0xe0] sm:$0xf]
    %v3683 = vld [vmem:[#allocation4 + $0xe4] sm:$0xf]
    %v3684 = vld [vmem:[#allocation4 + $0xe8] sm:$0xf]
    %v3685 = vld [vmem:[#allocation4 + $0xec] sm:$0xf]
    %v3686 = vld [vmem:[#allocation4 + $0xf0] sm:$0xf]
    %v3687 = vld [vmem:[#allocation4 + $0xf4] sm:$0xf]
    %v3688 = vld [vmem:[#allocation4 + $0xf8] sm:$0xf]
    %v3689 = vld [vmem:[#allocation4 + $0xfc] sm:$0xf]
    %v3690 = vld [vmem:[%s6] sm:$0x1]
    %v3692 = vlaneseq
    %v3693 = vshrl.u32 %v3692, 7
    %v3694 = vsub.s32 0, %v3693
    %v3695 = vrot.slane %v3690, %v3694
    %v3761 = vunpack.c.l.b16 %v3626
    %v3762 = vunpack.c.l.b16 %v3627
    %v3763 = vunpack.c.l.b16 %v3628
    %v3764 = vunpack.c.l.b16 %v3629
    %v3765 = vunpack.c.l.b16 %v3630
    %v3766 = vunpack.c.l.b16 %v3631
    %v3767 = vunpack.c.l.b16 %v3632
    %v3768 = vunpack.c.l.b16 %v3633
    %v3769 = vunpack.c.l.b16 %v3634
    %v3770 = vunpack.c.l.b16 %v3635
    %v3771 = vunpack.c.l.b16 %v3636
    %v3772 = vunpack.c.l.b16 %v3637
    %v3773 = vunpack.c.l.b16 %v3638
    %v3774 = vunpack.c.l.b16 %v3639
    %v3775 = vunpack.c.l.b16 %v3640
    %v3776 = vunpack.c.l.b16 %v3641
    %v3777 = vunpack.c.l.b16 %v3642
    %v3778 = vunpack.c.l.b16 %v3643
    %v3779 = vunpack.c.l.b16 %v3644
    %v3780 = vunpack.c.l.b16 %v3645
    %v3781 = vunpack.c.l.b16 %v3646
    %v3782 = vunpack.c.l.b16 %v3647
    %v3783 = vunpack.c.l.b16 %v3648
    %v3784 = vunpack.c.l.b16 %v3649
    %v3785 = vunpack.c.l.b16 %v3650
    %v3786 = vunpack.c.l.b16 %v3651
    %v3787 = vunpack.c.l.b16 %v3652
    %v3788 = vunpack.c.l.b16 %v3653
    %v3789 = vunpack.c.l.b16 %v3654
    %v3790 = vunpack.c.l.b16 %v3655
    %v3791 = vunpack.c.l.b16 %v3656
    %v3792 = vunpack.c.l.b16 %v3657
    %v3793 = vunpack.c.l.b16 %v3658
    %v3794 = vunpack.c.l.b16 %v3659
    %v3795 = vunpack.c.l.b16 %v3660
    %v3796 = vunpack.c.l.b16 %v3661
    %v3797 = vunpack.c.l.b16 %v3662
    %v3798 = vunpack.c.l.b16 %v3663
    %v3799 = vunpack.c.l.b16 %v3664
    %v3800 = vunpack.c.l.b16 %v3665
    %v3801 = vunpack.c.l.b16 %v3666
    %v3802 = vunpack.c.l.b16 %v3667
    %v3803 = vunpack.c.l.b16 %v3668
    %v3804 = vunpack.c.l.b16 %v3669
    %v3805 = vunpack.c.l.b16 %v3670
    %v3806 = vunpack.c.l.b16 %v3671
    %v3807 = vunpack.c.l.b16 %v3672
    %v3808 = vunpack.c.l.b16 %v3673
    %v3809 = vunpack.c.l.b16 %v3674
    %v3810 = vunpack.c.l.b16 %v3675
    %v3811 = vunpack.c.l.b16 %v3676
    %v3812 = vunpack.c.l.b16 %v3677
    %v3813 = vunpack.c.l.b16 %v3678
    %v3814 = vunpack.c.l.b16 %v3679
    %v3815 = vunpack.c.l.b16 %v3680
    %v3816 = vunpack.c.l.b16 %v3681
    %v3817 = vunpack.c.l.b16 %v3682
    %v3818 = vunpack.c.l.b16 %v3683
    %v3819 = vunpack.c.l.b16 %v3684
    %v3820 = vunpack.c.l.b16 %v3685
    %v3821 = vunpack.c.l.b16 %v3686
    %v3822 = vunpack.c.l.b16 %v3687
    %v3823 = vunpack.c.l.b16 %v3688
    %v3824 = vunpack.c.l.b16 %v3689
    %v3825 = vpack.c.b16 %v3762, %v3761
    %v3826 = vpack.c.b16 %v3764, %v3763
    %v3827 = vpack.c.b16 %v3766, %v3765
    %v3828 = vpack.c.b16 %v3768, %v3767
    %v3829 = vpack.c.b16 %v3770, %v3769
    %v3830 = vpack.c.b16 %v3772, %v3771
    %v3831 = vpack.c.b16 %v3774, %v3773
    %v3832 = vpack.c.b16 %v3776, %v3775
    %v3833 = vpack.c.b16 %v3778, %v3777
    %v3834 = vpack.c.b16 %v3780, %v3779
    %v3835 = vpack.c.b16 %v3782, %v3781
    %v3836 = vpack.c.b16 %v3784, %v3783
    %v3837 = vpack.c.b16 %v3786, %v3785
    %v3838 = vpack.c.b16 %v3788, %v3787
    %v3839 = vpack.c.b16 %v3790, %v3789
    %v3840 = vpack.c.b16 %v3792, %v3791
    %v3841 = vpack.c.b16 %v3794, %v3793
    %v3842 = vpack.c.b16 %v3796, %v3795
    %v3843 = vpack.c.b16 %v3798, %v3797
    %v3844 = vpack.c.b16 %v3800, %v3799
    %v3845 = vpack.c.b16 %v3802, %v3801
    %v3846 = vpack.c.b16 %v3804, %v3803
    %v3847 = vpack.c.b16 %v3806, %v3805
    %v3848 = vpack.c.b16 %v3808, %v3807
    %v3849 = vpack.c.b16 %v3810, %v3809
    %v3850 = vpack.c.b16 %v3812, %v3811
    %v3851 = vpack.c.b16 %v3814, %v3813
    %v3852 = vpack.c.b16 %v3816, %v3815
    %v3853 = vpack.c.b16 %v3818, %v3817
    %v3854 = vpack.c.b16 %v3820, %v3819
    %v3855 = vpack.c.b16 %v3822, %v3821
    %v3856 = vpack.c.b16 %v3824, %v3823
    %3889 = vmatprep.subr.bf16.mxu0 0
    %3890 = vmatpush1.bf16.msra.mxu0 %v3832
    %3891 = vmatprep.subr.bf16.mxu0 0
    %3892 = vmatpush1.bf16.msra.mxu0 %v3831
    %3893 = vmatprep.subr.bf16.mxu0 0
    %3894 = vmatpush1.bf16.msra.mxu0 %v3830
    %3895 = vmatprep.subr.bf16.mxu0 0
    %3896 = vmatpush1.bf16.msra.mxu0 %v3829
    %3897 = vmatprep.subr.bf16.mxu0 0
    %3898 = vmatpush1.bf16.msra.mxu0 %v3828
    %3899 = vmatprep.subr.bf16.mxu0 0
    %3900 = vmatpush1.bf16.msra.mxu0 %v3827
    %3901 = vmatprep.subr.bf16.mxu0 0
    %3902 = vmatpush1.bf16.msra.mxu0 %v3826
    %3903 = vmatprep.subr.bf16.mxu0 0
    %3904 = vmatpush1.bf16.msra.mxu0 %v3825
    %3905 = vmatprep.subr.bf16.mxu0 0
    %3906 = vmatpush2.bf16.msra.mxu0 %v3840
    %3907 = vmatprep.subr.bf16.mxu0 0
    %3908 = vmatpush2.bf16.msra.mxu0 %v3839
    %3909 = vmatprep.subr.bf16.mxu0 0
    %3910 = vmatpush2.bf16.msra.mxu0 %v3838
    %3911 = vmatprep.subr.bf16.mxu0 0
    %3912 = vmatpush2.bf16.msra.mxu0 %v3837
    %3913 = vmatprep.subr.bf16.mxu0 0
    %3914 = vmatpush2.bf16.msra.mxu0 %v3836
    %3915 = vmatprep.subr.bf16.mxu0 0
    %3916 = vmatpush2.bf16.msra.mxu0 %v3835
    %3917 = vmatprep.subr.bf16.mxu0 0
    %3918 = vmatpush2.bf16.msra.mxu0 %v3834
    %3919 = vmatprep.subr.bf16.mxu0 0
    %3920 = vmatpush2.bf16.msra.mxu0 %v3833
    %3921 = vmatprep.mubr.bf16.mxu0 %v3623
    %3922 = vmatmul.mubr.bf16.gmra.mxu0 %v3622
    %v3923 = vpop.f32.mrf.mxu0
    %v3924 = vadd.f32 %v3695, %v3923
    %v3925 = vpop.f32.mrf.mxu0
    %v3926 = vpop.f32.mrf.mxu0
    %v3927 = vpop.f32.mrf.mxu0
    %3928 = vdwg.mxu0
    %3929 = vmatprep.subr.bf16.mxu0 0
    %3930 = vmatpush1.bf16.msra.mxu0 %v3848
    %3931 = vmatprep.subr.bf16.mxu0 0
    %3932 = vmatpush1.bf16.msra.mxu0 %v3847
    %3933 = vmatprep.subr.bf16.mxu0 0
    %3934 = vmatpush1.bf16.msra.mxu0 %v3846
    %3935 = vmatprep.subr.bf16.mxu0 0
    %3936 = vmatpush1.bf16.msra.mxu0 %v3845
    %3937 = vmatprep.subr.bf16.mxu0 0
    %3938 = vmatpush1.bf16.msra.mxu0 %v3844
    %3939 = vmatprep.subr.bf16.mxu0 0
    %3940 = vmatpush1.bf16.msra.mxu0 %v3843
    %3941 = vmatprep.subr.bf16.mxu0 0
    %3942 = vmatpush1.bf16.msra.mxu0 %v3842
    %3943 = vmatprep.subr.bf16.mxu0 0
    %3944 = vmatpush1.bf16.msra.mxu0 %v3841
    %3945 = vmatprep.subr.bf16.mxu0 0
    %3946 = vmatpush2.bf16.msra.mxu0 %v3856
    %3947 = vmatprep.subr.bf16.mxu0 0
    %3948 = vmatpush2.bf16.msra.mxu0 %v3855
    %3949 = vmatprep.subr.bf16.mxu0 0
    %3950 = vmatpush2.bf16.msra.mxu0 %v3854
    %3951 = vmatprep.subr.bf16.mxu0 0
    %3952 = vmatpush2.bf16.msra.mxu0 %v3853
    %3953 = vmatprep.subr.bf16.mxu0 0
    %3954 = vmatpush2.bf16.msra.mxu0 %v3852
    %3955 = vmatprep.subr.bf16.mxu0 0
    %3956 = vmatpush2.bf16.msra.mxu0 %v3851
    %3957 = vmatprep.subr.bf16.mxu0 0
    %3958 = vmatpush2.bf16.msra.mxu0 %v3850
    %3959 = vmatprep.subr.bf16.mxu0 0
    %3960 = vmatpush2.bf16.msra.mxu0 %v3849
    %3961 = vmatprep.mubr.bf16.mxu0 %v3625
    %3962 = vmatmul.mubr.bf16.gmra.mxu0 %v3624
    %v3963 = vpop.f32.mrf.mxu0
    %v3964 = vadd.f32 %v3924, %v3963
    %v3965 = vpop.f32.mrf.mxu0
    %v3966 = vpop.f32.mrf.mxu0
    %v3967 = vpop.f32.mrf.mxu0
    %3968 = vdwg.mxu0
    %vm3969 = vcmask 1041408
    %v3970 = vsel %vm3969, %v3964, -inf
    %3971 = vmax.xlane.f32.xlu0 %v3970
    %v3972 = vpop.xlane.xlu0 %3971
    %v3973 = vsub.f32 %v3964, %v3972
    %v3974 = vmul.f32 %v3973, 1.442695
    %v3975 = vpow.pop %v3974
    %v3976 = vsel %vm3969, %v3975, 0.0
    %3977 = vadd.xlane.f32.xlu0 %v3976
    %v3978 = vpop.xlane.xlu0 %3977
    %v3979 = vlog2.pop %v3978
    %v3980 = vmul.f32 %v3979, 0.6931472
    %v3981 = vsub.f32 %v3973, %v3980
    %3982 = vst [vmem:[#allocation11] sm:$0x3] %v3981
    // Predicated region
    $region80: #{lstm_forward.1} parent=1 // pred_check
      _
    $region81: #{lstm_forward.1} parent=1 // pred_check_branch
      %3984 = sbr.rel (0) target = $region83
    $region82: #{lstm_forward.1} parent=1 // pred_region
      %s3986 = ssub.s32 32, 32
      %3987 = vsyncadd [#allocation8], %s3986
      %s3989 = sshll.u32 [#allocation11], 4
      %s3990 = int_to_ptr.vmem [resolvable:$true] %s3989
      %3992 = dma.vmem_to_hbm [thread:$0]  %s3990, 32, %s10, [#allocation8]
    $region83: #{lstm_forward.1} parent=1 // pred_fallthru
      _
    // Predicated region
    $region84: #{lstm_forward.1} parent=1 // pred_check
      _
    $region85: #{lstm_forward.1} parent=1 // pred_check_branch
      %3994 = sbr.rel (0) target = $region87
    $region86: #{lstm_forward.1} parent=1 // pred_region
      %3995 = dma.done [#allocation8], 32
    $region87: #{lstm_forward.1} parent=1 // pred_fallthru
      _
    %3996 = vsyncpa [#allocation7], 1
    %3997 = vsyncpa [#allocation10], 1
    %3998 = vsyncpa [#allocation8], 1
  %3999 = vsyncmov [#allocation5]
  %s4000 = vpop.sfrf %3999
  %p4001 = scmp.eq.s32.totalorder %s4000, 0
  %p4002 = pneg %p4001
  %4004 = shalt.err (%p4002)
  %s4005 = scalar_lea.sflag [#allocation5], 1
  %4006 = vsyncmov %s4005
  %s4007 = vpop.sfrf %4006
  %p4008 = scmp.eq.s32.totalorder %s4007, 0
  %p4009 = pneg %p4008
  %4011 = shalt.err (%p4009)
  %s4012 = scalar_lea.sflag [#allocation5], 2
  %4013 = vsyncmov %s4012
  %s4014 = vpop.sfrf %4013
  %p4015 = scmp.eq.s32.totalorder %s4014, 0
  %p4016 = pneg %p4015
  %4018 = shalt.err (%p4016)

</llo_original>
